<compile_context>
chip_gen: v7x
topology: tpu7x:2x2x1
jax: 0.10.0
libtpu: 0.0.40
codegen_flags: <defaults>
</compile_context>

<pallas_src>
import jax
import jax.numpy as jnp
from jax.experimental import pallas as pl
from jax.experimental.pallas import tpu as pltpu

EPS = 1e-5
_VMEM_LIMIT = 48 * 1024 * 1024          # < 64 MiB physical on v7x, > default scoped
_GEMM_DTYPE = jnp.bfloat16              # MXU input dtype; accumulation is f32


# ---------------------------------------------------------------------------
# Pallas GEMM:  W (M, K) @ patches (B, K, N) -> (B, M, N), f32, optional tanh
# ---------------------------------------------------------------------------
def _pick_tile(dim, prefs):
    for p in prefs:
        if dim >= p and dim % p == 0:
            return p
    return dim                           # full extent (allowed by BlockSpec)


def pallas_conv_gemm(w_mat, patches, activation=None):
    M, K = w_mat.shape
    B, K2, Nn = patches.shape
    assert K == K2
    tm = 128 if M % 128 == 0 else M                 # full extent for small Cout
    tn = _pick_tile(Nn, (256, 128))                 # lane-dense spatial axis
    tk = K if K <= 2048 else _pick_tile(K, (512, 256, 128))
    nm, nn, nk = M // tm, Nn // tn, K // tk
    out_shape = jax.ShapeDtypeStruct((B, M, Nn), jnp.float32)

    if nk == 1:
        # No reduction grid axis: no scratch accumulator, no init/store pl.when.
        def kernel(w_ref, p_ref, o_ref):
            acc = jnp.dot(w_ref[...], p_ref[...],
                          preferred_element_type=jnp.float32)
            if activation == "tanh":
                acc = jnp.tanh(acc)                  # fused epilogue (EUP slot)
            o_ref[...] = acc.astype(o_ref.dtype)

        grid = (B, nm, nn)
        in_specs = [pl.BlockSpec((tm, tk), lambda b, i, j: (i, 0)),
                    pl.BlockSpec((None, tk, tn), lambda b, i, j: (b, 0, j))]
        out_specs = pl.BlockSpec((None, tm, tn), lambda b, i, j: (b, i, j))
        scratch = []
        dims = ("parallel", "parallel", "parallel")
    else:
        def kernel(w_ref, p_ref, o_ref, acc_ref):
            @pl.when(pl.program_id(3) == 0)
            def _():
                acc_ref[...] = jnp.zeros_like(acc_ref)

            acc_ref[...] += jnp.dot(w_ref[...], p_ref[...],
                                    preferred_element_type=jnp.float32)

            @pl.when(pl.program_id(3) == pl.num_programs(3) - 1)
            def _():
                r = acc_ref[...]
                if activation == "tanh":
                    r = jnp.tanh(r)
                o_ref[...] = r.astype(o_ref.dtype)

        grid = (B, nm, nn, nk)
        in_specs = [pl.BlockSpec((tm, tk), lambda b, i, j, k: (i, k)),
                    pl.BlockSpec((None, tk, tn), lambda b, i, j, k: (b, k, j))]
        out_specs = pl.BlockSpec((None, tm, tn), lambda b, i, j, k: (b, i, j))
        scratch = [pltpu.VMEM((tm, tn), jnp.float32)]
        dims = ("parallel", "parallel", "parallel", "arbitrary")

    return pl.pallas_call(
        kernel,
        out_shape=out_shape,
        grid_spec=pltpu.PrefetchScalarGridSpec(
            num_scalar_prefetch=0, grid=grid,
            in_specs=in_specs, out_specs=out_specs, scratch_shapes=scratch),
        compiler_params=pltpu.CompilerParams(
            dimension_semantics=dims, vmem_limit_bytes=_VMEM_LIMIT),
    )(w_mat, patches)


# ---------------------------------------------------------------------------
# Pallas InstanceNorm (+ReLU / +residual) on (N, C, H*W): reduce over lanes.
# ---------------------------------------------------------------------------
def _in_affine(x, g, b):
    mean = jnp.mean(x, axis=-1, keepdims=True)
    var = jnp.mean(jnp.square(x - mean), axis=-1, keepdims=True)
    return (x - mean) * jax.lax.rsqrt(var + EPS) * g + b


def _in_plain_kernel(x_ref, g_ref, b_ref, o_ref):
    o_ref[...] = _in_affine(x_ref[...], g_ref[...], b_ref[...])


def _in_relu_kernel(x_ref, g_ref, b_ref, o_ref):
    o_ref[...] = jnp.maximum(_in_affine(x_ref[...], g_ref[...], b_ref[...]), 0.0)


def _in_residual_kernel(x_ref, g_ref, b_ref, r_ref, o_ref):
    o_ref[...] = _in_affine(x_ref[...], g_ref[...], b_ref[...]) + r_ref[...]


def instance_norm(x_nchw, gamma_c1, beta_c1, relu=False, residual=None):
    N, C, H, W = x_nchw.shape
    HW = H * W
    xr = x_nchw.reshape(N, C, HW)                       # contiguous reshape
    tc = 8 if C % 8 == 0 else C
    grid = (N, C // tc)
    x_spec = pl.BlockSpec((None, tc, HW), lambda n, ci: (n, ci, 0))
    gb_spec = pl.BlockSpec((tc, 1), lambda n, ci: (ci, 0))

    if residual is not None:
        kernel = _in_residual_kernel
        args = (xr, gamma_c1, beta_c1, residual.reshape(N, C, HW))
        in_specs = [x_spec, gb_spec, gb_spec, x_spec]
    else:
        kernel = _in_relu_kernel if relu else _in_plain_kernel
        args = (xr, gamma_c1, beta_c1)
        in_specs = [x_spec, gb_spec, gb_spec]

    out = pl.pallas_call(
        kernel,
        out_shape=jax.ShapeDtypeStruct((N, C, HW), jnp.float32),
        grid_spec=pltpu.PrefetchScalarGridSpec(
            num_scalar_prefetch=0, grid=grid,
            in_specs=in_specs, out_specs=x_spec),
        compiler_params=pltpu.CompilerParams(
            dimension_semantics=("parallel", "parallel"),
            vmem_limit_bytes=_VMEM_LIMIT),
    )(*args)
    return out.reshape(N, C, H, W)


# ---------------------------------------------------------------------------
# im2col (NCHW) + conv wrappers
# ---------------------------------------------------------------------------
def _im2col_nchw(x, kh, kw, stride, pad):
    """x:(N,C,H,W) -> patches:(N, kh*kw*C, Ho*Wo), K ordered as (kh, kw, C)."""
    x = x.astype(_GEMM_DTYPE)
    if pad:
        x = jnp.pad(x, ((0, 0), (0, 0), (pad, pad), (pad, pad)))
    N, C, Hp, Wp = x.shape
    Ho = (Hp - kh) // stride + 1
    Wo = (Wp - kw) // stride + 1
    parts = []
    for i in range(kh):
        for j in range(kw):
            parts.append(x[:, :,
                           i:i + stride * (Ho - 1) + 1:stride,
                           j:j + stride * (Wo - 1) + 1:stride])
    patches = jnp.concatenate(parts, axis=1)            # one fused concat
    return patches.reshape(N, kh * kw * C, Ho * Wo), Ho, Wo


def conv2d(x_nchw, w_mat, kh, kw, stride, pad, activation=None):
    """Conv2d, bias=False. w_mat: pre-laid-out (Cout, kh*kw*Cin) bf16."""
    N = x_nchw.shape[0]
    Cout = w_mat.shape[0]
    patches, Ho, Wo = _im2col_nchw(x_nchw, kh, kw, stride, pad)
    out = pallas_conv_gemm(w_mat, patches, activation)   # (N, Cout, Ho*Wo)
    return out.reshape(N, Cout, Ho, Wo)


def conv_transpose2d(x_nchw, w_big):
    """ConvTranspose2d(k=4, s=2, p=1), bias=False, via sub-pixel decomposition.

    w_big: (4*Cout, 4*Cin) — the four 2x2 sub-kernels stacked on the output
    channel axis (built once in preprocess_params). One stride-1 2x2 conv over
    the 1-padded input produces all four output parities; interleave them.
    """
    N, C, H, W = x_nchw.shape
    Cout = w_big.shape[0] // 4
    xp = jnp.pad(x_nchw.astype(_GEMM_DTYPE), ((0, 0), (0, 0), (1, 1), (1, 1)))
    patches, Ho, Wo = _im2col_nchw(xp, 2, 2, 1, 0)       # Ho = H+1, Wo = W+1
    out = pallas_conv_gemm(w_big, patches)               # (N, 4*Cout, (H+1)*(W+1))
    out = out.reshape(N, 4, Cout, H + 1, W + 1)
    y00 = out[:, 0, :, 0:H, 0:W]                         # parity (0,0)
    y01 = out[:, 1, :, 0:H, 1:W + 1]                     # parity (0,1)
    y10 = out[:, 2, :, 1:H + 1, 0:W]                     # parity (1,0)
    y11 = out[:, 3, :, 1:H + 1, 1:W + 1]                 # parity (1,1)
    y = jnp.stack([y00, y01, y10, y11], axis=-1).reshape(N, Cout, H, W, 2, 2)
    y = jnp.transpose(y, (0, 1, 2, 4, 3, 5)).reshape(N, Cout, 2 * H, 2 * W)
    return y


# ---------------------------------------------------------------------------
# Parameters: random init (PyTorch layouts) + one-time GEMM-layout preprocess
# ---------------------------------------------------------------------------
def init_generator_params(key, num_features=8, num_residuals=2, c_dim=5):
    params = {}

    def conv_w(k, shape):
        return (0.05 * jax.random.normal(k, shape)).astype(jnp.float32)

    def in_gb(k, c):
        k1, k2 = jax.random.split(k)
        g = (1.0 + 0.1 * jax.random.normal(k1, (c,))).astype(jnp.float32)
        b = (0.05 * jax.random.normal(k2, (c,))).astype(jnp.float32)
        return g, b

    keys = iter(jax.random.split(key, 64))
    nf = num_features
    params['init_w'] = conv_w(next(keys), (nf, 3 + c_dim, 7, 7))
    params['init_g'], params['init_b'] = in_gb(next(keys), nf)
    for i in range(2):
        params[f'down{i}_w'] = conv_w(next(keys), (nf * 2, nf, 4, 4))
        params[f'down{i}_g'], params[f'down{i}_b'] = in_gb(next(keys), nf * 2)
        nf *= 2
    for i in range(num_residuals):
        params[f'res{i}_w1'] = conv_w(next(keys), (nf, nf, 3, 3))
        params[f'res{i}_g1'], params[f'res{i}_b1'] = in_gb(next(keys), nf)
        params[f'res{i}_w2'] = conv_w(next(keys), (nf, nf, 3, 3))
        params[f'res{i}_g2'], params[f'res{i}_b2'] = in_gb(next(keys), nf)
    for i in range(2):
        params[f'up{i}_w'] = conv_w(next(keys), (nf, nf // 2, 4, 4))  # (Cin,Cout,4,4)
        params[f'up{i}_g'], params[f'up{i}_b'] = in_gb(next(keys), nf // 2)
        nf //= 2
    params['final_w'] = conv_w(next(keys), (3, nf, 7, 7))
    return params


def _conv_w_to_mat(w):
    """(Cout, Cin, kh, kw) -> (Cout, kh*kw*Cin), matching im2col K order."""
    Cout, Cin, kh, kw = w.shape
    return jnp.transpose(w, (0, 2, 3, 1)).reshape(Cout, kh * kw * Cin).astype(_GEMM_DTYPE)


def _deconv_w_to_mat(w):
    """ConvTranspose weight (Cin, Cout, 4, 4) -> stacked sub-pixel (4*Cout, 4*Cin)."""
    Cin, Cout, kh, kw = w.shape
    assert kh == 4 and kw == 4
    tap = {0: (3, 1), 1: (2, 0)}          # output parity -> kernel taps for (d=0, d=1)
    subs = []
    for rp in (0, 1):
        for rq in (0, 1):
            sub = jnp.stack(
                [jnp.stack([w[:, :, tap[rp][di], tap[rq][dj]] for dj in (0, 1)],
                           axis=0) for di in (0, 1)],
                axis=0)                                  # (di, dj, Cin, Cout)
            sub = jnp.transpose(sub, (3, 0, 1, 2)).reshape(Cout, 4 * Cin)
            subs.append(sub)
    return jnp.concatenate(subs, axis=0).astype(_GEMM_DTYPE)


def _gb(p):
    return p.reshape(-1, 1).astype(jnp.float32)


def preprocess_params(params, num_residuals=2):
    """One-time hoist of all weight re-layouts out of the forward pass."""
    pp = {'init_w': _conv_w_to_mat(params['init_w']),
          'init_g': _gb(params['init_g']), 'init_b': _gb(params['init_b'])}
    for i in range(2):
        pp[f'down{i}_w'] = _conv_w_to_mat(params[f'down{i}_w'])
        pp[f'down{i}_g'] = _gb(params[f'down{i}_g'])
        pp[f'down{i}_b'] = _gb(params[f'down{i}_b'])
    for i in range(num_residuals):
        pp[f'res{i}_w1'] = _conv_w_to_mat(params[f'res{i}_w1'])
        pp[f'res{i}_g1'] = _gb(params[f'res{i}_g1'])
        pp[f'res{i}_b1'] = _gb(params[f'res{i}_b1'])
        pp[f'res{i}_w2'] = _conv_w_to_mat(params[f'res{i}_w2'])
        pp[f'res{i}_g2'] = _gb(params[f'res{i}_g2'])
        pp[f'res{i}_b2'] = _gb(params[f'res{i}_b2'])
    for i in range(2):
        pp[f'up{i}_w'] = _deconv_w_to_mat(params[f'up{i}_w'])
        pp[f'up{i}_g'] = _gb(params[f'up{i}_g'])
        pp[f'up{i}_b'] = _gb(params[f'up{i}_b'])
    pp['final_w'] = _conv_w_to_mat(params['final_w'])
    return pp


# ---------------------------------------------------------------------------
# Generator forward (NCHW in, NCHW out)
# ---------------------------------------------------------------------------
def generator_forward(pp, x_nchw, c, num_residuals=2):
    N, _, H, W = x_nchw.shape
    x = x_nchw.astype(jnp.float32)
    c_map = jnp.broadcast_to(c.astype(jnp.float32)[:, :, None, None],
                             (N, c.shape[1], H, W))
    x = jnp.concatenate([x, c_map], axis=1)

    # initial conv block
    x = conv2d(x, pp['init_w'], 7, 7, stride=1, pad=3)
    x = instance_norm(x, pp['init_g'], pp['init_b'], relu=True)

    # down-sampling
    for i in range(2):
        x = conv2d(x, pp[f'down{i}_w'], 4, 4, stride=2, pad=1)
        x = instance_norm(x, pp[f'down{i}_g'], pp[f'down{i}_b'], relu=True)

    # residual blocks
    for i in range(num_residuals):
        r = x
        h = conv2d(x, pp[f'res{i}_w1'], 3, 3, stride=1, pad=1)
        h = instance_norm(h, pp[f'res{i}_g1'], pp[f'res{i}_b1'], relu=True)
        h = conv2d(h, pp[f'res{i}_w2'], 3, 3, stride=1, pad=1)
        x = instance_norm(h, pp[f'res{i}_g2'], pp[f'res{i}_b2'], residual=r)

    # up-sampling (sub-pixel ConvTranspose)
    for i in range(2):
        x = conv_transpose2d(x, pp[f'up{i}_w'])
        x = instance_norm(x, pp[f'up{i}_g'], pp[f'up{i}_b'], relu=True)

    # final conv with tanh fused into the GEMM epilogue
    x = conv2d(x, pp['final_w'], 7, 7, stride=1, pad=3, activation="tanh")
    return x


if __name__ == "__main__":
    NUM_FEATURES = 8
    NUM_RESIDUALS = 2
    C_DIM = 5
    B, H, W = 2, 16, 16

    key = jax.random.PRNGKey(0)
    kp, kx, kc = jax.random.split(key, 3)
    params = init_generator_params(kp, NUM_FEATURES, NUM_RESIDUALS, C_DIM)
    pp = preprocess_params(params, NUM_RESIDUALS)   # one-time weight re-layout
    x = jax.random.normal(kx, (B, 3, H, W), dtype=jnp.float32)
    c = jax.random.normal(kc, (B, C_DIM), dtype=jnp.float32)

    fwd = jax.jit(lambda p, xx, cc: generator_forward(p, xx, cc, NUM_RESIDUALS))
    out = jax.block_until_ready(fwd(pp, x, c))

    assert out.shape == (B, 3, H, W), out.shape
    assert bool(jnp.all(jnp.isfinite(out)))
    assert bool(jnp.all(jnp.abs(out) <= 1.0))       # tanh range
    print("KERNEL_OK")
</pallas_src>

<mosaic_0001>
module attributes {stable_mosaic.version = 11 : i64} {
  func.func @kernel(%arg0: i32, %arg1: i32, %arg2: i32, %arg3: memref<8x392xbf16, #tpu.memory_space<vmem>>, %arg4: memref<1x392x256xbf16, #tpu.memory_space<vmem>>, %arg5: memref<1x8x256xf32, #tpu.memory_space<vmem>>) attributes {dimension_semantics = [#tpu.dimension_semantics<parallel>, #tpu.dimension_semantics<parallel>, #tpu.dimension_semantics<parallel>], iteration_bounds = array<i64: 2, 1, 1>, scalar_prefetch = 0 : i64, scratch_operands = 0 : i64, tpu.core_type = #tpu.core_type<tc>, window_params = [{transform_indices = @transform_0, window_bounds = array<i64: 8, 392>}, {transform_indices = @transform_1, window_bounds = array<i64: 1, 392, 256>}, {transform_indices = @transform_2, window_bounds = array<i64: 1, 8, 256>}]} {
    %c0 = arith.constant 0 : index
    %c0_0 = arith.constant 0 : index
    %0 = vector.load %arg3[%c0, %c0_0] : memref<8x392xbf16, #tpu.memory_space<vmem>>, vector<8x392xbf16>
    %c0_1 = arith.constant 0 : index
    %c0_2 = arith.constant 0 : index
    %c0_3 = arith.constant 0 : index
    %1 = vector.load %arg4[%c0_1, %c0_2, %c0_3] : memref<1x392x256xbf16, #tpu.memory_space<vmem>>, vector<1x392x256xbf16>
    %2 = vector.shape_cast %1 : vector<1x392x256xbf16> to vector<392x256xbf16>
    %cst = arith.constant dense<0.000000e+00> : vector<8x256xf32>
    %3 = tpu.matmul %0, %2, %cst {dimension_numbers = #tpu.dot_dimension_numbers<[1], [0], [0], [1], [0, 0, 1, 1], [], []>} : vector<8x392xbf16>, vector<392x256xbf16>, vector<8x256xf32> -> vector<8x256xf32>
    %c0_4 = arith.constant 0 : index
    %c0_5 = arith.constant 0 : index
    %c0_6 = arith.constant 0 : index
    %4 = vector.load %arg5[%c0_4, %c0_5, %c0_6] : memref<1x8x256xf32, #tpu.memory_space<vmem>>, vector<1x8x256xf32>
    %5 = vector.shape_cast %4 : vector<1x8x256xf32> to vector<8x256xf32>
    %6 = vector.shape_cast %3 : vector<8x256xf32> to vector<1x8x256xf32>
    tpu.vector_store %arg5[%c0_4, %c0_5, %c0_6], %6 {strides = array<i32>} : memref<1x8x256xf32, #tpu.memory_space<vmem>>, vector<1x8x256xf32>,
    return
  }
  func.func @transform_0(%arg0: i32, %arg1: i32, %arg2: i32) -> (i32, i32) {
    %c0_i32 = arith.constant 0 : i32
    %c0_i32_0 = arith.constant 0 : i32
    return %arg1, %c0_i32 : i32, i32
  }
  func.func @transform_1(%arg0: i32, %arg1: i32, %arg2: i32) -> (i32, i32, i32) {
    %c0_i32 = arith.constant 0 : i32
    %c0_i32_0 = arith.constant 0 : i32
    return %arg0, %c0_i32, %arg2 : i32, i32, i32
  }
  func.func @transform_2(%arg0: i32, %arg1: i32, %arg2: i32) -> (i32, i32, i32) {
    %c0_i32 = arith.constant 0 : i32
    return %arg0, %arg1, %arg2 : i32, i32, i32
  }
}

module attributes {stable_mosaic.version = 11 : i64} {
  func.func @_in_relu_kernel(%arg0: i32, %arg1: i32, %arg2: memref<1x8x256xf32, #tpu.memory_space<vmem>>, %arg3: memref<8x1xf32, #tpu.memory_space<vmem>>, %arg4: memref<8x1xf32, #tpu.memory_space<vmem>>, %arg5: memref<1x8x256xf32, #tpu.memory_space<vmem>>) attributes {dimension_semantics = [#tpu.dimension_semantics<parallel>, #tpu.dimension_semantics<parallel>], iteration_bounds = array<i64: 2, 1>, scalar_prefetch = 0 : i64, scratch_operands = 0 : i64, tpu.core_type = #tpu.core_type<tc>, window_params = [{transform_indices = @transform_0, window_bounds = array<i64: 1, 8, 256>}, {transform_indices = @transform_1, window_bounds = array<i64: 8, 1>}, {transform_indices = @transform_2, window_bounds = array<i64: 8, 1>}, {transform_indices = @transform_3, window_bounds = array<i64: 1, 8, 256>}]} {
    %c0 = arith.constant 0 : index
    %c0_0 = arith.constant 0 : index
    %c0_1 = arith.constant 0 : index
    %0 = vector.load %arg2[%c0, %c0_0, %c0_1] : memref<1x8x256xf32, #tpu.memory_space<vmem>>, vector<1x8x256xf32>
    %1 = vector.shape_cast %0 : vector<1x8x256xf32> to vector<8x256xf32>
    %c0_2 = arith.constant 0 : index
    %c0_3 = arith.constant 0 : index
    %2 = vector.load %arg3[%c0_2, %c0_3] : memref<8x1xf32, #tpu.memory_space<vmem>>, vector<8x1xf32>
    %c0_4 = arith.constant 0 : index
    %c0_5 = arith.constant 0 : index
    %3 = vector.load %arg4[%c0_4, %c0_5] : memref<8x1xf32, #tpu.memory_space<vmem>>, vector<8x1xf32>
    %cst = arith.constant dense<0.000000e+00> : vector<8xf32>
    %4 = vector.multi_reduction <add>, %1, %cst [1] : vector<8x256xf32> to vector<8xf32>
    %5 = vector.shape_cast %4 : vector<8xf32> to vector<8x1xf32>
    %cst_6 = arith.constant 2.560000e+02 : f32
    %6 = vector.broadcast %cst_6 : f32 to vector<8x1xf32>
    %7 = arith.divf %5, %6 : vector<8x1xf32>
    %8 = vector.broadcast %7 : vector<8x1xf32> to vector<8x256xf32>
    %9 = arith.subf %1, %8 : vector<8x256xf32>
    %10 = arith.mulf %9, %9 : vector<8x256xf32>
    %cst_7 = arith.constant dense<0.000000e+00> : vector<8xf32>
    %11 = vector.multi_reduction <add>, %10, %cst_7 [1] : vector<8x256xf32> to vector<8xf32>
    %12 = vector.shape_cast %11 : vector<8xf32> to vector<8x1xf32>
    %cst_8 = arith.constant 2.560000e+02 : f32
    %13 = vector.broadcast %cst_8 : f32 to vector<8x1xf32>
    %14 = arith.divf %12, %13 : vector<8x1xf32>
    %15 = vector.broadcast %7 : vector<8x1xf32> to vector<8x256xf32>
    %16 = arith.subf %1, %15 : vector<8x256xf32>
    %cst_9 = arith.constant 9.99999974E-6 : f32
    %17 = vector.broadcast %cst_9 : f32 to vector<8x1xf32>
    %18 = arith.addf %14, %17 : vector<8x1xf32>
    %19 = math.rsqrt %18 : vector<8x1xf32>
    %20 = vector.broadcast %19 : vector<8x1xf32> to vector<8x256xf32>
    %21 = arith.mulf %16, %20 : vector<8x256xf32>
    %22 = vector.broadcast %2 : vector<8x1xf32> to vector<8x256xf32>
    %23 = arith.mulf %21, %22 : vector<8x256xf32>
    %24 = vector.broadcast %3 : vector<8x1xf32> to vector<8x256xf32>
    %25 = arith.addf %23, %24 : vector<8x256xf32>
    %cst_10 = arith.constant 0.000000e+00 : f32
    %26 = vector.broadcast %cst_10 : f32 to vector<8x256xf32>
    %27 = arith.maximumf %25, %26 : vector<8x256xf32>
    %c0_11 = arith.constant 0 : index
    %c0_12 = arith.constant 0 : index
    %c0_13 = arith.constant 0 : index
    %28 = vector.load %arg5[%c0_11, %c0_12, %c0_13] : memref<1x8x256xf32, #tpu.memory_space<vmem>>, vector<1x8x256xf32>
    %29 = vector.shape_cast %28 : vector<1x8x256xf32> to vector<8x256xf32>
    %30 = vector.shape_cast %27 : vector<8x256xf32> to vector<1x8x256xf32>
    tpu.vector_store %arg5[%c0_11, %c0_12, %c0_13], %30 {strides = array<i32>} : memref<1x8x256xf32, #tpu.memory_space<vmem>>, vector<1x8x256xf32>,
    return
  }
  func.func @transform_0(%arg0: i32, %arg1: i32) -> (i32, i32, i32) {
    %c0_i32 = arith.constant 0 : i32
    %c0_i32_0 = arith.constant 0 : i32
    return %arg0, %arg1, %c0_i32 : i32, i32, i32
  }
  func.func @transform_1(%arg0: i32, %arg1: i32) -> (i32, i32) {
    %c0_i32 = arith.constant 0 : i32
    %c0_i32_0 = arith.constant 0 : i32
    return %arg1, %c0_i32 : i32, i32
  }
  func.func @transform_2(%arg0: i32, %arg1: i32) -> (i32, i32) {
    %c0_i32 = arith.constant 0 : i32
    %c0_i32_0 = arith.constant 0 : i32
    return %arg1, %c0_i32 : i32, i32
  }
  func.func @transform_3(%arg0: i32, %arg1: i32) -> (i32, i32, i32) {
    %c0_i32 = arith.constant 0 : i32
    %c0_i32_0 = arith.constant 0 : i32
    return %arg0, %arg1, %c0_i32 : i32, i32, i32
  }
}

module attributes {stable_mosaic.version = 11 : i64} {
  func.func @kernel(%arg0: i32, %arg1: i32, %arg2: i32, %arg3: memref<16x128xbf16, #tpu.memory_space<vmem>>, %arg4: memref<1x128x64xbf16, #tpu.memory_space<vmem>>, %arg5: memref<1x16x64xf32, #tpu.memory_space<vmem>>) attributes {dimension_semantics = [#tpu.dimension_semantics<parallel>, #tpu.dimension_semantics<parallel>, #tpu.dimension_semantics<parallel>], iteration_bounds = array<i64: 2, 1, 1>, scalar_prefetch = 0 : i64, scratch_operands = 0 : i64, tpu.core_type = #tpu.core_type<tc>, window_params = [{transform_indices = @transform_0, window_bounds = array<i64: 16, 128>}, {transform_indices = @transform_1, window_bounds = array<i64: 1, 128, 64>}, {transform_indices = @transform_2, window_bounds = array<i64: 1, 16, 64>}]} {
    %c0 = arith.constant 0 : index
    %c0_0 = arith.constant 0 : index
    %0 = vector.load %arg3[%c0, %c0_0] : memref<16x128xbf16, #tpu.memory_space<vmem>>, vector<16x128xbf16>
    %c0_1 = arith.constant 0 : index
    %c0_2 = arith.constant 0 : index
    %c0_3 = arith.constant 0 : index
    %1 = vector.load %arg4[%c0_1, %c0_2, %c0_3] : memref<1x128x64xbf16, #tpu.memory_space<vmem>>, vector<1x128x64xbf16>
    %2 = vector.shape_cast %1 : vector<1x128x64xbf16> to vector<128x64xbf16>
    %cst = arith.constant dense<0.000000e+00> : vector<16x64xf32>
    %3 = tpu.matmul %0, %2, %cst {dimension_numbers = #tpu.dot_dimension_numbers<[1], [0], [0], [1], [0, 0, 1, 1], [], []>} : vector<16x128xbf16>, vector<128x64xbf16>, vector<16x64xf32> -> vector<16x64xf32>
    %c0_4 = arith.constant 0 : index
    %c0_5 = arith.constant 0 : index
    %c0_6 = arith.constant 0 : index
    %4 = vector.load %arg5[%c0_4, %c0_5, %c0_6] : memref<1x16x64xf32, #tpu.memory_space<vmem>>, vector<1x16x64xf32>
    %5 = vector.shape_cast %4 : vector<1x16x64xf32> to vector<16x64xf32>
    %6 = vector.shape_cast %3 : vector<16x64xf32> to vector<1x16x64xf32>
    tpu.vector_store %arg5[%c0_4, %c0_5, %c0_6], %6 {strides = array<i32>} : memref<1x16x64xf32, #tpu.memory_space<vmem>>, vector<1x16x64xf32>,
    return
  }
  func.func @transform_0(%arg0: i32, %arg1: i32, %arg2: i32) -> (i32, i32) {
    %c0_i32 = arith.constant 0 : i32
    %c0_i32_0 = arith.constant 0 : i32
    return %arg1, %c0_i32 : i32, i32
  }
  func.func @transform_1(%arg0: i32, %arg1: i32, %arg2: i32) -> (i32, i32, i32) {
    %c0_i32 = arith.constant 0 : i32
    %c0_i32_0 = arith.constant 0 : i32
    return %arg0, %c0_i32, %arg2 : i32, i32, i32
  }
  func.func @transform_2(%arg0: i32, %arg1: i32, %arg2: i32) -> (i32, i32, i32) {
    %c0_i32 = arith.constant 0 : i32
    return %arg0, %arg1, %arg2 : i32, i32, i32
  }
}

module attributes {stable_mosaic.version = 11 : i64} {
  func.func @_in_relu_kernel(%arg0: i32, %arg1: i32, %arg2: memref<1x8x64xf32, #tpu.memory_space<vmem>>, %arg3: memref<8x1xf32, #tpu.memory_space<vmem>>, %arg4: memref<8x1xf32, #tpu.memory_space<vmem>>, %arg5: memref<1x8x64xf32, #tpu.memory_space<vmem>>) attributes {dimension_semantics = [#tpu.dimension_semantics<parallel>, #tpu.dimension_semantics<parallel>], iteration_bounds = array<i64: 2, 2>, scalar_prefetch = 0 : i64, scratch_operands = 0 : i64, tpu.core_type = #tpu.core_type<tc>, window_params = [{transform_indices = @transform_0, window_bounds = array<i64: 1, 8, 64>}, {transform_indices = @transform_1, window_bounds = array<i64: 8, 1>}, {transform_indices = @transform_2, window_bounds = array<i64: 8, 1>}, {transform_indices = @transform_3, window_bounds = array<i64: 1, 8, 64>}]} {
    %c0 = arith.constant 0 : index
    %c0_0 = arith.constant 0 : index
    %c0_1 = arith.constant 0 : index
    %0 = vector.load %arg2[%c0, %c0_0, %c0_1] : memref<1x8x64xf32, #tpu.memory_space<vmem>>, vector<1x8x64xf32>
    %1 = vector.shape_cast %0 : vector<1x8x64xf32> to vector<8x64xf32>
    %c0_2 = arith.constant 0 : index
    %c0_3 = arith.constant 0 : index
    %2 = vector.load %arg3[%c0_2, %c0_3] : memref<8x1xf32, #tpu.memory_space<vmem>>, vector<8x1xf32>
    %c0_4 = arith.constant 0 : index
    %c0_5 = arith.constant 0 : index
    %3 = vector.load %arg4[%c0_4, %c0_5] : memref<8x1xf32, #tpu.memory_space<vmem>>, vector<8x1xf32>
    %cst = arith.constant dense<0.000000e+00> : vector<8xf32>
    %4 = vector.multi_reduction <add>, %1, %cst [1] : vector<8x64xf32> to vector<8xf32>
    %5 = vector.shape_cast %4 : vector<8xf32> to vector<8x1xf32>
    %cst_6 = arith.constant 6.400000e+01 : f32
    %6 = vector.broadcast %cst_6 : f32 to vector<8x1xf32>
    %7 = arith.divf %5, %6 : vector<8x1xf32>
    %8 = vector.broadcast %7 : vector<8x1xf32> to vector<8x64xf32>
    %9 = arith.subf %1, %8 : vector<8x64xf32>
    %10 = arith.mulf %9, %9 : vector<8x64xf32>
    %cst_7 = arith.constant dense<0.000000e+00> : vector<8xf32>
    %11 = vector.multi_reduction <add>, %10, %cst_7 [1] : vector<8x64xf32> to vector<8xf32>
    %12 = vector.shape_cast %11 : vector<8xf32> to vector<8x1xf32>
    %cst_8 = arith.constant 6.400000e+01 : f32
    %13 = vector.broadcast %cst_8 : f32 to vector<8x1xf32>
    %14 = arith.divf %12, %13 : vector<8x1xf32>
    %15 = vector.broadcast %7 : vector<8x1xf32> to vector<8x64xf32>
    %16 = arith.subf %1, %15 : vector<8x64xf32>
    %cst_9 = arith.constant 9.99999974E-6 : f32
    %17 = vector.broadcast %cst_9 : f32 to vector<8x1xf32>
    %18 = arith.addf %14, %17 : vector<8x1xf32>
    %19 = math.rsqrt %18 : vector<8x1xf32>
    %20 = vector.broadcast %19 : vector<8x1xf32> to vector<8x64xf32>
    %21 = arith.mulf %16, %20 : vector<8x64xf32>
    %22 = vector.broadcast %2 : vector<8x1xf32> to vector<8x64xf32>
    %23 = arith.mulf %21, %22 : vector<8x64xf32>
    %24 = vector.broadcast %3 : vector<8x1xf32> to vector<8x64xf32>
    %25 = arith.addf %23, %24 : vector<8x64xf32>
    %cst_10 = arith.constant 0.000000e+00 : f32
    %26 = vector.broadcast %cst_10 : f32 to vector<8x64xf32>
    %27 = arith.maximumf %25, %26 : vector<8x64xf32>
    %c0_11 = arith.constant 0 : index
    %c0_12 = arith.constant 0 : index
    %c0_13 = arith.constant 0 : index
    %28 = vector.load %arg5[%c0_11, %c0_12, %c0_13] : memref<1x8x64xf32, #tpu.memory_space<vmem>>, vector<1x8x64xf32>
    %29 = vector.shape_cast %28 : vector<1x8x64xf32> to vector<8x64xf32>
    %30 = vector.shape_cast %27 : vector<8x64xf32> to vector<1x8x64xf32>
    tpu.vector_store %arg5[%c0_11, %c0_12, %c0_13], %30 {strides = array<i32>} : memref<1x8x64xf32, #tpu.memory_space<vmem>>, vector<1x8x64xf32>,
    return
  }
  func.func @transform_0(%arg0: i32, %arg1: i32) -> (i32, i32, i32) {
    %c0_i32 = arith.constant 0 : i32
    %c0_i32_0 = arith.constant 0 : i32
    return %arg0, %arg1, %c0_i32 : i32, i32, i32
  }
  func.func @transform_1(%arg0: i32, %arg1: i32) -> (i32, i32) {
    %c0_i32 = arith.constant 0 : i32
    %c0_i32_0 = arith.constant 0 : i32
    return %arg1, %c0_i32 : i32, i32
  }
  func.func @transform_2(%arg0: i32, %arg1: i32) -> (i32, i32) {
    %c0_i32 = arith.constant 0 : i32
    %c0_i32_0 = arith.constant 0 : i32
    return %arg1, %c0_i32 : i32, i32
  }
  func.func @transform_3(%arg0: i32, %arg1: i32) -> (i32, i32, i32) {
    %c0_i32 = arith.constant 0 : i32
    %c0_i32_0 = arith.constant 0 : i32
    return %arg0, %arg1, %c0_i32 : i32, i32, i32
  }
}

module attributes {stable_mosaic.version = 11 : i64} {
  func.func @_in_relu_kernel(%arg0: i32, %arg1: i32, %arg2: memref<1x8x16xf32, #tpu.memory_space<vmem>>, %arg3: memref<8x1xf32, #tpu.memory_space<vmem>>, %arg4: memref<8x1xf32, #tpu.memory_space<vmem>>, %arg5: memref<1x8x16xf32, #tpu.memory_space<vmem>>) attributes {dimension_semantics = [#tpu.dimension_semantics<parallel>, #tpu.dimension_semantics<parallel>], iteration_bounds = array<i64: 2, 4>, scalar_prefetch = 0 : i64, scratch_operands = 0 : i64, tpu.core_type = #tpu.core_type<tc>, window_params = [{transform_indices = @transform_0, window_bounds = array<i64: 1, 8, 16>}, {transform_indices = @transform_1, window_bounds = array<i64: 8, 1>}, {transform_indices = @transform_2, window_bounds = array<i64: 8, 1>}, {transform_indices = @transform_3, window_bounds = array<i64: 1, 8, 16>}]} {
    %c0 = arith.constant 0 : index
    %c0_0 = arith.constant 0 : index
    %c0_1 = arith.constant 0 : index
    %0 = vector.load %arg2[%c0, %c0_0, %c0_1] : memref<1x8x16xf32, #tpu.memory_space<vmem>>, vector<1x8x16xf32>
    %1 = vector.shape_cast %0 : vector<1x8x16xf32> to vector<8x16xf32>
    %c0_2 = arith.constant 0 : index
    %c0_3 = arith.constant 0 : index
    %2 = vector.load %arg3[%c0_2, %c0_3] : memref<8x1xf32, #tpu.memory_space<vmem>>, vector<8x1xf32>
    %c0_4 = arith.constant 0 : index
    %c0_5 = arith.constant 0 : index
    %3 = vector.load %arg4[%c0_4, %c0_5] : memref<8x1xf32, #tpu.memory_space<vmem>>, vector<8x1xf32>
    %cst = arith.constant dense<0.000000e+00> : vector<8xf32>
    %4 = vector.multi_reduction <add>, %1, %cst [1] : vector<8x16xf32> to vector<8xf32>
    %5 = vector.shape_cast %4 : vector<8xf32> to vector<8x1xf32>
    %cst_6 = arith.constant 1.600000e+01 : f32
    %6 = vector.broadcast %cst_6 : f32 to vector<8x1xf32>
    %7 = arith.divf %5, %6 : vector<8x1xf32>
    %8 = vector.broadcast %7 : vector<8x1xf32> to vector<8x16xf32>
    %9 = arith.subf %1, %8 : vector<8x16xf32>
    %10 = arith.mulf %9, %9 : vector<8x16xf32>
    %cst_7 = arith.constant dense<0.000000e+00> : vector<8xf32>
    %11 = vector.multi_reduction <add>, %10, %cst_7 [1] : vector<8x16xf32> to vector<8xf32>
    %12 = vector.shape_cast %11 : vector<8xf32> to vector<8x1xf32>
    %cst_8 = arith.constant 1.600000e+01 : f32
    %13 = vector.broadcast %cst_8 : f32 to vector<8x1xf32>
    %14 = arith.divf %12, %13 : vector<8x1xf32>
    %15 = vector.broadcast %7 : vector<8x1xf32> to vector<8x16xf32>
    %16 = arith.subf %1, %15 : vector<8x16xf32>
    %cst_9 = arith.constant 9.99999974E-6 : f32
    %17 = vector.broadcast %cst_9 : f32 to vector<8x1xf32>
    %18 = arith.addf %14, %17 : vector<8x1xf32>
    %19 = math.rsqrt %18 : vector<8x1xf32>
    %20 = vector.broadcast %19 : vector<8x1xf32> to vector<8x16xf32>
    %21 = arith.mulf %16, %20 : vector<8x16xf32>
    %22 = vector.broadcast %2 : vector<8x1xf32> to vector<8x16xf32>
    %23 = arith.mulf %21, %22 : vector<8x16xf32>
    %24 = vector.broadcast %3 : vector<8x1xf32> to vector<8x16xf32>
    %25 = arith.addf %23, %24 : vector<8x16xf32>
    %cst_10 = arith.constant 0.000000e+00 : f32
    %26 = vector.broadcast %cst_10 : f32 to vector<8x16xf32>
    %27 = arith.maximumf %25, %26 : vector<8x16xf32>
    %c0_11 = arith.constant 0 : index
    %c0_12 = arith.constant 0 : index
    %c0_13 = arith.constant 0 : index
    %28 = vector.load %arg5[%c0_11, %c0_12, %c0_13] : memref<1x8x16xf32, #tpu.memory_space<vmem>>, vector<1x8x16xf32>
    %29 = vector.shape_cast %28 : vector<1x8x16xf32> to vector<8x16xf32>
    %30 = vector.shape_cast %27 : vector<8x16xf32> to vector<1x8x16xf32>
    tpu.vector_store %arg5[%c0_11, %c0_12, %c0_13], %30 {strides = array<i32>} : memref<1x8x16xf32, #tpu.memory_space<vmem>>, vector<1x8x16xf32>,
    return
  }
  func.func @transform_0(%arg0: i32, %arg1: i32) -> (i32, i32, i32) {
    %c0_i32 = arith.constant 0 : i32
    %c0_i32_0 = arith.constant 0 : i32
    return %arg0, %arg1, %c0_i32 : i32, i32, i32
  }
  func.func @transform_1(%arg0: i32, %arg1: i32) -> (i32, i32) {
    %c0_i32 = arith.constant 0 : i32
    %c0_i32_0 = arith.constant 0 : i32
    return %arg1, %c0_i32 : i32, i32
  }
  func.func @transform_2(%arg0: i32, %arg1: i32) -> (i32, i32) {
    %c0_i32 = arith.constant 0 : i32
    %c0_i32_0 = arith.constant 0 : i32
    return %arg1, %c0_i32 : i32, i32
  }
  func.func @transform_3(%arg0: i32, %arg1: i32) -> (i32, i32, i32) {
    %c0_i32 = arith.constant 0 : i32
    %c0_i32_0 = arith.constant 0 : i32
    return %arg0, %arg1, %c0_i32 : i32, i32, i32
  }
}

module attributes {stable_mosaic.version = 11 : i64} {
  func.func @kernel(%arg0: i32, %arg1: i32, %arg2: i32, %arg3: memref<32x256xbf16, #tpu.memory_space<vmem>>, %arg4: memref<1x256x16xbf16, #tpu.memory_space<vmem>>, %arg5: memref<1x32x16xf32, #tpu.memory_space<vmem>>) attributes {dimension_semantics = [#tpu.dimension_semantics<parallel>, #tpu.dimension_semantics<parallel>, #tpu.dimension_semantics<parallel>], iteration_bounds = array<i64: 2, 1, 1>, scalar_prefetch = 0 : i64, scratch_operands = 0 : i64, tpu.core_type = #tpu.core_type<tc>, window_params = [{transform_indices = @transform_0, window_bounds = array<i64: 32, 256>}, {transform_indices = @transform_1, window_bounds = array<i64: 1, 256, 16>}, {transform_indices = @transform_2, window_bounds = array<i64: 1, 32, 16>}]} {
    %c0 = arith.constant 0 : index
    %c0_0 = arith.constant 0 : index
    %0 = vector.load %arg3[%c0, %c0_0] : memref<32x256xbf16, #tpu.memory_space<vmem>>, vector<32x256xbf16>
    %c0_1 = arith.constant 0 : index
    %c0_2 = arith.constant 0 : index
    %c0_3 = arith.constant 0 : index
    %1 = vector.load %arg4[%c0_1, %c0_2, %c0_3] : memref<1x256x16xbf16, #tpu.memory_space<vmem>>, vector<1x256x16xbf16>
    %2 = vector.shape_cast %1 : vector<1x256x16xbf16> to vector<256x16xbf16>
    %cst = arith.constant dense<0.000000e+00> : vector<32x16xf32>
    %3 = tpu.matmul %0, %2, %cst {dimension_numbers = #tpu.dot_dimension_numbers<[1], [0], [0], [1], [0, 0, 1, 1], [], []>} : vector<32x256xbf16>, vector<256x16xbf16>, vector<32x16xf32> -> vector<32x16xf32>
    %c0_4 = arith.constant 0 : index
    %c0_5 = arith.constant 0 : index
    %c0_6 = arith.constant 0 : index
    %4 = vector.load %arg5[%c0_4, %c0_5, %c0_6] : memref<1x32x16xf32, #tpu.memory_space<vmem>>, vector<1x32x16xf32>
    %5 = vector.shape_cast %4 : vector<1x32x16xf32> to vector<32x16xf32>
    %6 = vector.shape_cast %3 : vector<32x16xf32> to vector<1x32x16xf32>
    tpu.vector_store %arg5[%c0_4, %c0_5, %c0_6], %6 {strides = array<i32>} : memref<1x32x16xf32, #tpu.memory_space<vmem>>, vector<1x32x16xf32>,
    return
  }
  func.func @transform_0(%arg0: i32, %arg1: i32, %arg2: i32) -> (i32, i32) {
    %c0_i32 = arith.constant 0 : i32
    %c0_i32_0 = arith.constant 0 : i32
    return %arg1, %c0_i32 : i32, i32
  }
  func.func @transform_1(%arg0: i32, %arg1: i32, %arg2: i32) -> (i32, i32, i32) {
    %c0_i32 = arith.constant 0 : i32
    %c0_i32_0 = arith.constant 0 : i32
    return %arg0, %c0_i32, %arg2 : i32, i32, i32
  }
  func.func @transform_2(%arg0: i32, %arg1: i32, %arg2: i32) -> (i32, i32, i32) {
    %c0_i32 = arith.constant 0 : i32
    return %arg0, %arg1, %arg2 : i32, i32, i32
  }
}

module attributes {stable_mosaic.version = 11 : i64} {
  func.func @kernel(%arg0: i32, %arg1: i32, %arg2: i32, %arg3: memref<32x288xbf16, #tpu.memory_space<vmem>>, %arg4: memref<1x288x16xbf16, #tpu.memory_space<vmem>>, %arg5: memref<1x32x16xf32, #tpu.memory_space<vmem>>) attributes {dimension_semantics = [#tpu.dimension_semantics<parallel>, #tpu.dimension_semantics<parallel>, #tpu.dimension_semantics<parallel>], iteration_bounds = array<i64: 2, 1, 1>, scalar_prefetch = 0 : i64, scratch_operands = 0 : i64, tpu.core_type = #tpu.core_type<tc>, window_params = [{transform_indices = @transform_0, window_bounds = array<i64: 32, 288>}, {transform_indices = @transform_1, window_bounds = array<i64: 1, 288, 16>}, {transform_indices = @transform_2, window_bounds = array<i64: 1, 32, 16>}]} {
    %c0 = arith.constant 0 : index
    %c0_0 = arith.constant 0 : index
    %0 = vector.load %arg3[%c0, %c0_0] : memref<32x288xbf16, #tpu.memory_space<vmem>>, vector<32x288xbf16>
    %c0_1 = arith.constant 0 : index
    %c0_2 = arith.constant 0 : index
    %c0_3 = arith.constant 0 : index
    %1 = vector.load %arg4[%c0_1, %c0_2, %c0_3] : memref<1x288x16xbf16, #tpu.memory_space<vmem>>, vector<1x288x16xbf16>
    %2 = vector.shape_cast %1 : vector<1x288x16xbf16> to vector<288x16xbf16>
    %cst = arith.constant dense<0.000000e+00> : vector<32x16xf32>
    %3 = tpu.matmul %0, %2, %cst {dimension_numbers = #tpu.dot_dimension_numbers<[1], [0], [0], [1], [0, 0, 1, 1], [], []>} : vector<32x288xbf16>, vector<288x16xbf16>, vector<32x16xf32> -> vector<32x16xf32>
    %c0_4 = arith.constant 0 : index
    %c0_5 = arith.constant 0 : index
    %c0_6 = arith.constant 0 : index
    %4 = vector.load %arg5[%c0_4, %c0_5, %c0_6] : memref<1x32x16xf32, #tpu.memory_space<vmem>>, vector<1x32x16xf32>
    %5 = vector.shape_cast %4 : vector<1x32x16xf32> to vector<32x16xf32>
    %6 = vector.shape_cast %3 : vector<32x16xf32> to vector<1x32x16xf32>
    tpu.vector_store %arg5[%c0_4, %c0_5, %c0_6], %6 {strides = array<i32>} : memref<1x32x16xf32, #tpu.memory_space<vmem>>, vector<1x32x16xf32>,
    return
  }
  func.func @transform_0(%arg0: i32, %arg1: i32, %arg2: i32) -> (i32, i32) {
    %c0_i32 = arith.constant 0 : i32
    %c0_i32_0 = arith.constant 0 : i32
    return %arg1, %c0_i32 : i32, i32
  }
  func.func @transform_1(%arg0: i32, %arg1: i32, %arg2: i32) -> (i32, i32, i32) {
    %c0_i32 = arith.constant 0 : i32
    %c0_i32_0 = arith.constant 0 : i32
    return %arg0, %c0_i32, %arg2 : i32, i32, i32
  }
  func.func @transform_2(%arg0: i32, %arg1: i32, %arg2: i32) -> (i32, i32, i32) {
    %c0_i32 = arith.constant 0 : i32
    return %arg0, %arg1, %arg2 : i32, i32, i32
  }
}

module attributes {stable_mosaic.version = 11 : i64} {
  func.func @_in_residual_kernel(%arg0: i32, %arg1: i32, %arg2: memref<1x8x16xf32, #tpu.memory_space<vmem>>, %arg3: memref<8x1xf32, #tpu.memory_space<vmem>>, %arg4: memref<8x1xf32, #tpu.memory_space<vmem>>, %arg5: memref<1x8x16xf32, #tpu.memory_space<vmem>>, %arg6: memref<1x8x16xf32, #tpu.memory_space<vmem>>) attributes {dimension_semantics = [#tpu.dimension_semantics<parallel>, #tpu.dimension_semantics<parallel>], iteration_bounds = array<i64: 2, 4>, scalar_prefetch = 0 : i64, scratch_operands = 0 : i64, tpu.core_type = #tpu.core_type<tc>, window_params = [{transform_indices = @transform_0, window_bounds = array<i64: 1, 8, 16>}, {transform_indices = @transform_1, window_bounds = array<i64: 8, 1>}, {transform_indices = @transform_2, window_bounds = array<i64: 8, 1>}, {transform_indices = @transform_3, window_bounds = array<i64: 1, 8, 16>}, {transform_indices = @transform_4, window_bounds = array<i64: 1, 8, 16>}]} {
    %c0 = arith.constant 0 : index
    %c0_0 = arith.constant 0 : index
    %c0_1 = arith.constant 0 : index
    %0 = vector.load %arg2[%c0, %c0_0, %c0_1] : memref<1x8x16xf32, #tpu.memory_space<vmem>>, vector<1x8x16xf32>
    %1 = vector.shape_cast %0 : vector<1x8x16xf32> to vector<8x16xf32>
    %c0_2 = arith.constant 0 : index
    %c0_3 = arith.constant 0 : index
    %2 = vector.load %arg3[%c0_2, %c0_3] : memref<8x1xf32, #tpu.memory_space<vmem>>, vector<8x1xf32>
    %c0_4 = arith.constant 0 : index
    %c0_5 = arith.constant 0 : index
    %3 = vector.load %arg4[%c0_4, %c0_5] : memref<8x1xf32, #tpu.memory_space<vmem>>, vector<8x1xf32>
    %cst = arith.constant dense<0.000000e+00> : vector<8xf32>
    %4 = vector.multi_reduction <add>, %1, %cst [1] : vector<8x16xf32> to vector<8xf32>
    %5 = vector.shape_cast %4 : vector<8xf32> to vector<8x1xf32>
    %cst_6 = arith.constant 1.600000e+01 : f32
    %6 = vector.broadcast %cst_6 : f32 to vector<8x1xf32>
    %7 = arith.divf %5, %6 : vector<8x1xf32>
    %8 = vector.broadcast %7 : vector<8x1xf32> to vector<8x16xf32>
    %9 = arith.subf %1, %8 : vector<8x16xf32>
    %10 = arith.mulf %9, %9 : vector<8x16xf32>
    %cst_7 = arith.constant dense<0.000000e+00> : vector<8xf32>
    %11 = vector.multi_reduction <add>, %10, %cst_7 [1] : vector<8x16xf32> to vector<8xf32>
    %12 = vector.shape_cast %11 : vector<8xf32> to vector<8x1xf32>
    %cst_8 = arith.constant 1.600000e+01 : f32
    %13 = vector.broadcast %cst_8 : f32 to vector<8x1xf32>
    %14 = arith.divf %12, %13 : vector<8x1xf32>
    %15 = vector.broadcast %7 : vector<8x1xf32> to vector<8x16xf32>
    %16 = arith.subf %1, %15 : vector<8x16xf32>
    %cst_9 = arith.constant 9.99999974E-6 : f32
    %17 = vector.broadcast %cst_9 : f32 to vector<8x1xf32>
    %18 = arith.addf %14, %17 : vector<8x1xf32>
    %19 = math.rsqrt %18 : vector<8x1xf32>
    %20 = vector.broadcast %19 : vector<8x1xf32> to vector<8x16xf32>
    %21 = arith.mulf %16, %20 : vector<8x16xf32>
    %22 = vector.broadcast %2 : vector<8x1xf32> to vector<8x16xf32>
    %23 = arith.mulf %21, %22 : vector<8x16xf32>
    %24 = vector.broadcast %3 : vector<8x1xf32> to vector<8x16xf32>
    %25 = arith.addf %23, %24 : vector<8x16xf32>
    %c0_10 = arith.constant 0 : index
    %c0_11 = arith.constant 0 : index
    %c0_12 = arith.constant 0 : index
    %26 = vector.load %arg5[%c0_10, %c0_11, %c0_12] : memref<1x8x16xf32, #tpu.memory_space<vmem>>, vector<1x8x16xf32>
    %27 = vector.shape_cast %26 : vector<1x8x16xf32> to vector<8x16xf32>
    %28 = arith.addf %25, %27 : vector<8x16xf32>
    %c0_13 = arith.constant 0 : index
    %c0_14 = arith.constant 0 : index
    %c0_15 = arith.constant 0 : index
    %29 = vector.load %arg6[%c0_13, %c0_14, %c0_15] : memref<1x8x16xf32, #tpu.memory_space<vmem>>, vector<1x8x16xf32>
    %30 = vector.shape_cast %29 : vector<1x8x16xf32> to vector<8x16xf32>
    %31 = vector.shape_cast %28 : vector<8x16xf32> to vector<1x8x16xf32>
    tpu.vector_store %arg6[%c0_13, %c0_14, %c0_15], %31 {strides = array<i32>} : memref<1x8x16xf32, #tpu.memory_space<vmem>>, vector<1x8x16xf32>,
    return
  }
  func.func @transform_0(%arg0: i32, %arg1: i32) -> (i32, i32, i32) {
    %c0_i32 = arith.constant 0 : i32
    %c0_i32_0 = arith.constant 0 : i32
    return %arg0, %arg1, %c0_i32 : i32, i32, i32
  }
  func.func @transform_1(%arg0: i32, %arg1: i32) -> (i32, i32) {
    %c0_i32 = arith.constant 0 : i32
    %c0_i32_0 = arith.constant 0 : i32
    return %arg1, %c0_i32 : i32, i32
  }
  func.func @transform_2(%arg0: i32, %arg1: i32) -> (i32, i32) {
    %c0_i32 = arith.constant 0 : i32
    %c0_i32_0 = arith.constant 0 : i32
    return %arg1, %c0_i32 : i32, i32
  }
  func.func @transform_3(%arg0: i32, %arg1: i32) -> (i32, i32, i32) {
    %c0_i32 = arith.constant 0 : i32
    %c0_i32_0 = arith.constant 0 : i32
    return %arg0, %arg1, %c0_i32 : i32, i32, i32
  }
  func.func @transform_4(%arg0: i32, %arg1: i32) -> (i32, i32, i32) {
    %c0_i32 = arith.constant 0 : i32
    %c0_i32_0 = arith.constant 0 : i32
    return %arg0, %arg1, %c0_i32 : i32, i32, i32
  }
}

module attributes {stable_mosaic.version = 11 : i64} {
  func.func @kernel(%arg0: i32, %arg1: i32, %arg2: i32, %arg3: memref<64x128xbf16, #tpu.memory_space<vmem>>, %arg4: memref<1x128x25xbf16, #tpu.memory_space<vmem>>, %arg5: memref<1x64x25xf32, #tpu.memory_space<vmem>>) attributes {dimension_semantics = [#tpu.dimension_semantics<parallel>, #tpu.dimension_semantics<parallel>, #tpu.dimension_semantics<parallel>], iteration_bounds = array<i64: 2, 1, 1>, scalar_prefetch = 0 : i64, scratch_operands = 0 : i64, tpu.core_type = #tpu.core_type<tc>, window_params = [{transform_indices = @transform_0, window_bounds = array<i64: 64, 128>}, {transform_indices = @transform_1, window_bounds = array<i64: 1, 128, 25>}, {transform_indices = @transform_2, window_bounds = array<i64: 1, 64, 25>}]} {
    %c0 = arith.constant 0 : index
    %c0_0 = arith.constant 0 : index
    %0 = vector.load %arg3[%c0, %c0_0] : memref<64x128xbf16, #tpu.memory_space<vmem>>, vector<64x128xbf16>
    %c0_1 = arith.constant 0 : index
    %c0_2 = arith.constant 0 : index
    %c0_3 = arith.constant 0 : index
    %1 = vector.load %arg4[%c0_1, %c0_2, %c0_3] : memref<1x128x25xbf16, #tpu.memory_space<vmem>>, vector<1x128x25xbf16>
    %2 = vector.shape_cast %1 : vector<1x128x25xbf16> to vector<128x25xbf16>
    %cst = arith.constant dense<0.000000e+00> : vector<64x25xf32>
    %3 = tpu.matmul %0, %2, %cst {dimension_numbers = #tpu.dot_dimension_numbers<[1], [0], [0], [1], [0, 0, 1, 1], [], []>} : vector<64x128xbf16>, vector<128x25xbf16>, vector<64x25xf32> -> vector<64x25xf32>
    %c0_4 = arith.constant 0 : index
    %c0_5 = arith.constant 0 : index
    %c0_6 = arith.constant 0 : index
    %4 = vector.load %arg5[%c0_4, %c0_5, %c0_6] : memref<1x64x25xf32, #tpu.memory_space<vmem>>, vector<1x64x25xf32>
    %5 = vector.shape_cast %4 : vector<1x64x25xf32> to vector<64x25xf32>
    %6 = vector.shape_cast %3 : vector<64x25xf32> to vector<1x64x25xf32>
    tpu.vector_store %arg5[%c0_4, %c0_5, %c0_6], %6 {strides = array<i32>} : memref<1x64x25xf32, #tpu.memory_space<vmem>>, vector<1x64x25xf32>,
    return
  }
  func.func @transform_0(%arg0: i32, %arg1: i32, %arg2: i32) -> (i32, i32) {
    %c0_i32 = arith.constant 0 : i32
    %c0_i32_0 = arith.constant 0 : i32
    return %arg1, %c0_i32 : i32, i32
  }
  func.func @transform_1(%arg0: i32, %arg1: i32, %arg2: i32) -> (i32, i32, i32) {
    %c0_i32 = arith.constant 0 : i32
    %c0_i32_0 = arith.constant 0 : i32
    return %arg0, %c0_i32, %arg2 : i32, i32, i32
  }
  func.func @transform_2(%arg0: i32, %arg1: i32, %arg2: i32) -> (i32, i32, i32) {
    %c0_i32 = arith.constant 0 : i32
    return %arg0, %arg1, %arg2 : i32, i32, i32
  }
}

module attributes {stable_mosaic.version = 11 : i64} {
  func.func @kernel(%arg0: i32, %arg1: i32, %arg2: i32, %arg3: memref<32x64xbf16, #tpu.memory_space<vmem>>, %arg4: memref<1x64x81xbf16, #tpu.memory_space<vmem>>, %arg5: memref<1x32x81xf32, #tpu.memory_space<vmem>>) attributes {dimension_semantics = [#tpu.dimension_semantics<parallel>, #tpu.dimension_semantics<parallel>, #tpu.dimension_semantics<parallel>], iteration_bounds = array<i64: 2, 1, 1>, scalar_prefetch = 0 : i64, scratch_operands = 0 : i64, tpu.core_type = #tpu.core_type<tc>, window_params = [{transform_indices = @transform_0, window_bounds = array<i64: 32, 64>}, {transform_indices = @transform_1, window_bounds = array<i64: 1, 64, 81>}, {transform_indices = @transform_2, window_bounds = array<i64: 1, 32, 81>}]} {
    %c0 = arith.constant 0 : index
    %c0_0 = arith.constant 0 : index
    %0 = vector.load %arg3[%c0, %c0_0] : memref<32x64xbf16, #tpu.memory_space<vmem>>, vector<32x64xbf16>
    %c0_1 = arith.constant 0 : index
    %c0_2 = arith.constant 0 : index
    %c0_3 = arith.constant 0 : index
    %1 = vector.load %arg4[%c0_1, %c0_2, %c0_3] : memref<1x64x81xbf16, #tpu.memory_space<vmem>>, vector<1x64x81xbf16>
    %2 = vector.shape_cast %1 : vector<1x64x81xbf16> to vector<64x81xbf16>
    %cst = arith.constant dense<0.000000e+00> : vector<32x81xf32>
    %3 = tpu.matmul %0, %2, %cst {dimension_numbers = #tpu.dot_dimension_numbers<[1], [0], [0], [1], [0, 0, 1, 1], [], []>} : vector<32x64xbf16>, vector<64x81xbf16>, vector<32x81xf32> -> vector<32x81xf32>
    %c0_4 = arith.constant 0 : index
    %c0_5 = arith.constant 0 : index
    %c0_6 = arith.constant 0 : index
    %4 = vector.load %arg5[%c0_4, %c0_5, %c0_6] : memref<1x32x81xf32, #tpu.memory_space<vmem>>, vector<1x32x81xf32>
    %5 = vector.shape_cast %4 : vector<1x32x81xf32> to vector<32x81xf32>
    %6 = vector.shape_cast %3 : vector<32x81xf32> to vector<1x32x81xf32>
    tpu.vector_store %arg5[%c0_4, %c0_5, %c0_6], %6 {strides = array<i32>} : memref<1x32x81xf32, #tpu.memory_space<vmem>>, vector<1x32x81xf32>,
    return
  }
  func.func @transform_0(%arg0: i32, %arg1: i32, %arg2: i32) -> (i32, i32) {
    %c0_i32 = arith.constant 0 : i32
    %c0_i32_0 = arith.constant 0 : i32
    return %arg1, %c0_i32 : i32, i32
  }
  func.func @transform_1(%arg0: i32, %arg1: i32, %arg2: i32) -> (i32, i32, i32) {
    %c0_i32 = arith.constant 0 : i32
    %c0_i32_0 = arith.constant 0 : i32
    return %arg0, %c0_i32, %arg2 : i32, i32, i32
  }
  func.func @transform_2(%arg0: i32, %arg1: i32, %arg2: i32) -> (i32, i32, i32) {
    %c0_i32 = arith.constant 0 : i32
    return %arg0, %arg1, %arg2 : i32, i32, i32
  }
}

module attributes {stable_mosaic.version = 11 : i64} {
  func.func @kernel(%arg0: i32, %arg1: i32, %arg2: i32, %arg3: memref<3x392xbf16, #tpu.memory_space<vmem>>, %arg4: memref<1x392x256xbf16, #tpu.memory_space<vmem>>, %arg5: memref<1x3x256xf32, #tpu.memory_space<vmem>>) attributes {dimension_semantics = [#tpu.dimension_semantics<parallel>, #tpu.dimension_semantics<parallel>, #tpu.dimension_semantics<parallel>], iteration_bounds = array<i64: 2, 1, 1>, scalar_prefetch = 0 : i64, scratch_operands = 0 : i64, tpu.core_type = #tpu.core_type<tc>, window_params = [{transform_indices = @transform_0, window_bounds = array<i64: 3, 392>}, {transform_indices = @transform_1, window_bounds = array<i64: 1, 392, 256>}, {transform_indices = @transform_2, window_bounds = array<i64: 1, 3, 256>}]} {
    %c0 = arith.constant 0 : index
    %c0_0 = arith.constant 0 : index
    %0 = vector.load %arg3[%c0, %c0_0] : memref<3x392xbf16, #tpu.memory_space<vmem>>, vector<3x392xbf16>
    %c0_1 = arith.constant 0 : index
    %c0_2 = arith.constant 0 : index
    %c0_3 = arith.constant 0 : index
    %1 = vector.load %arg4[%c0_1, %c0_2, %c0_3] : memref<1x392x256xbf16, #tpu.memory_space<vmem>>, vector<1x392x256xbf16>
    %2 = vector.shape_cast %1 : vector<1x392x256xbf16> to vector<392x256xbf16>
    %cst = arith.constant dense<0.000000e+00> : vector<3x256xf32>
    %3 = tpu.matmul %0, %2, %cst {dimension_numbers = #tpu.dot_dimension_numbers<[1], [0], [0], [1], [0, 0, 1, 1], [], []>} : vector<3x392xbf16>, vector<392x256xbf16>, vector<3x256xf32> -> vector<3x256xf32>
    %4 = math.tanh %3 : vector<3x256xf32>
    %c0_4 = arith.constant 0 : index
    %c0_5 = arith.constant 0 : index
    %c0_6 = arith.constant 0 : index
    %5 = vector.load %arg5[%c0_4, %c0_5, %c0_6] : memref<1x3x256xf32, #tpu.memory_space<vmem>>, vector<1x3x256xf32>
    %6 = vector.shape_cast %5 : vector<1x3x256xf32> to vector<3x256xf32>
    %7 = vector.shape_cast %4 : vector<3x256xf32> to vector<1x3x256xf32>
    tpu.vector_store %arg5[%c0_4, %c0_5, %c0_6], %7 {strides = array<i32>} : memref<1x3x256xf32, #tpu.memory_space<vmem>>, vector<1x3x256xf32>,
    return
  }
  func.func @transform_0(%arg0: i32, %arg1: i32, %arg2: i32) -> (i32, i32) {
    %c0_i32 = arith.constant 0 : i32
    %c0_i32_0 = arith.constant 0 : i32
    return %arg1, %c0_i32 : i32, i32
  }
  func.func @transform_1(%arg0: i32, %arg1: i32, %arg2: i32) -> (i32, i32, i32) {
    %c0_i32 = arith.constant 0 : i32
    %c0_i32_0 = arith.constant 0 : i32
    return %arg0, %c0_i32, %arg2 : i32, i32, i32
  }
  func.func @transform_2(%arg0: i32, %arg1: i32, %arg2: i32) -> (i32, i32, i32) {
    %c0_i32 = arith.constant 0 : i32
    return %arg0, %arg1, %arg2 : i32, i32, i32
  }
}

</mosaic_0001>

<llo_original>
// kernel: _lambda_.19
$region0: #{_lambda_.19}
  #allocation0 [shape = 'u32[]', space=smem, size = 0x4, offset = 0x4, fixed_abs, tag = 'smem constant byte address 0x4 - core index']
  #allocation1 [shape = 'u32[144,128]{1,0:T(1,128)}', space=vmem, size = 0x12000, scoped, tag = 'internal scratch']
  %s0 = inlined_call_operand.vmem [shape: bf16[8,392], index: 0, kind: input, shape index: {}]
  %s1 = inlined_call_operand.vmem [shape: bf16[2,392,256], index: 1, kind: input, shape index: {}]
  %s2 = inlined_call_operand.vmem [shape: f32[2,8,256], index: 2, kind: output, shape index: {}]
  %s3 = sld [smem:[#allocation0]]
  $region41: #{_lambda_.19} parent=0
    _
  %s5 = ssub.s32 1, %s3
  %s6 = scalar_select 0, %s5, %s3
  loop: start=0, step=1, limit=4
  $region2: #{_lambda_.19} parent=0 // loop_pre_header
    _
  $region3: #{_lambda_.19} parent=0 // loop_header
    %s8 = sphi 0, %s12
    %p9 = scmp.ge.s32.totalorder %s8, 4
    %s15 = sphi 0, %s34
    %s16 = sphi 0, %s30
    %s17 = sphi 0, %s26
    %s18 = sphi 0, %s15
    %s19 = sphi 0, %s16
    %s20 = sphi 0, %s17
    %s21 = sphi 0, %s18
    %s22 = sphi 0, %s19
    %s23 = sphi 0, %s20
    %s37 = sphi 0, %s39
    %s40 = sphi 0, %s37
    %s41 = sphi 0, %s40
    %s57 = sphi 0, %s41
    %s65 = sphi 0, %s67
    %s68 = sphi 0, %s65
    %s69 = sphi 0, %s68
    %s85 = sphi 0, %s69
    %s95 = sphi 0, %s97
    %s98 = sphi 0, %s95
    %s99 = sphi 0, %s98
    %s115 = sphi 0, %s99
  $region4: #{_lambda_.19} parent=0 // loop_header_branch
    %11 = sbr.rel (%p9) target = $region8
  $region5: #{_lambda_.19} parent=0 // loop_body
    %s13 = ssub.s32 %s8, 1
    %s14 = ssub.s32 %s8, 2
    %s24 = sadd.s32 1, %s17
    %p25 = scmp.ge.s32.totalorder %s24, 1
    %s26 = scalar_select %p25, 0, %s24
    %s27 = sadd.s32 1, %s16
    %s28 = scalar_select %p25, %s27, %s16
    %p29 = scmp.ge.s32.totalorder %s28, 1
    %s30 = scalar_select %p29, 0, %s28
    %s31 = sadd.s32 1, %s15
    %s32 = scalar_select %p29, %s31, %s15
    %p33 = scmp.ge.s32.totalorder %s32, 2
    %s34 = scalar_select %p33, 0, %s32
    %s35 = ssub.s32 %s16, %s30
    %p36 = scmp.eq.s32.totalorder %s35, 0
    %s38 = sadd.s32 %s37, 1
    %s39 = scalar_select %p36, %s37, %s38
    %p42 = pneg %p36
    %p43 = scmp.eq.s32.totalorder %s8, 1
    %p44 = por %p42, %p43
    %p45 = scmp.ne.s32.totalorder %s37, %s40
    %p46 = scmp.eq.s32.totalorder %s8, 0
    %p47 = por %p45, %p46
    %p48 = scmp.ne.s32.totalorder %s37, %s40
    %p49 = scmp.eq.s32.totalorder %s13, 1
    %p50 = por %p48, %p49
    %p51 = scmp.ne.s32.totalorder %s40, %s41
    %p52 = scmp.eq.s32.totalorder %s13, 0
    %p53 = por %p51, %p52
    %p54 = scmp.ne.s32.totalorder %s40, %s41
    %p55 = scmp.eq.s32.totalorder %s14, 1
    %p56 = por %p54, %p55
    %p58 = scmp.ne.s32.totalorder %s41, %s57
    %p59 = scmp.eq.s32.totalorder %s14, 0
    %p60 = por %p58, %p59
    %s61 = ssub.s32 %s15, %s34
    %s62 = ssub.s32 %s17, %s26
    %s63 = sor.u32 %s61, %s62
    %p64 = scmp.eq.s32.totalorder %s63, 0
    %s66 = sadd.s32 %s65, 1
    %s67 = scalar_select %p64, %s65, %s66
    %p70 = pneg %p64
    %p71 = scmp.eq.s32.totalorder %s8, 1
    %p72 = por %p70, %p71
    %p73 = scmp.ne.s32.totalorder %s65, %s68
    %p74 = scmp.eq.s32.totalorder %s8, 0
    %p75 = por %p73, %p74
    %p76 = scmp.ne.s32.totalorder %s65, %s68
    %p77 = scmp.eq.s32.totalorder %s13, 1
    %p78 = por %p76, %p77
    %p79 = scmp.ne.s32.totalorder %s68, %s69
    %p80 = scmp.eq.s32.totalorder %s13, 0
    %p81 = por %p79, %p80
    %p82 = scmp.ne.s32.totalorder %s68, %s69
    %p83 = scmp.eq.s32.totalorder %s14, 1
    %p84 = por %p82, %p83
    %p86 = scmp.ne.s32.totalorder %s69, %s85
    %p87 = scmp.eq.s32.totalorder %s14, 0
    %p88 = por %p86, %p87
    %s89 = ssub.s32 %s15, %s34
    %s90 = ssub.s32 %s16, %s30
    %s91 = sor.u32 %s89, %s90
    %s92 = ssub.s32 %s17, %s26
    %s93 = sor.u32 %s91, %s92
    %p94 = scmp.eq.s32.totalorder %s93, 0
    %s96 = sadd.s32 %s95, 1
    %s97 = scalar_select %p94, %s95, %s96
    %p100 = pneg %p94
    %p101 = scmp.eq.s32.totalorder %s8, 1
    %p102 = por %p100, %p101
    %p103 = scmp.ne.s32.totalorder %s95, %s98
    %p104 = scmp.eq.s32.totalorder %s8, 0
    %p105 = por %p103, %p104
    %p106 = scmp.ne.s32.totalorder %s95, %s98
    %p107 = scmp.eq.s32.totalorder %s13, 1
    %p108 = por %p106, %p107
    %p109 = scmp.ne.s32.totalorder %s98, %s99
    %p110 = scmp.eq.s32.totalorder %s13, 0
    %p111 = por %p109, %p110
    %p112 = scmp.ne.s32.totalorder %s98, %s99
    %p113 = scmp.eq.s32.totalorder %s14, 1
    %p114 = por %p112, %p113
    %p116 = scmp.ne.s32.totalorder %s99, %s115
    %p117 = scmp.eq.s32.totalorder %s14, 0
    %p118 = por %p116, %p117
    %p119 = scmp.le.s32.totalorder 1, %s8
    %p120 = scmp.lt.s32.totalorder %s8, 3
    %p121 = pnand %p119, %p120
    %p122 = pneg %p121
    // Predicated region
    $region9: #{_lambda_.19} parent=5 // pred_check
      _
    $region10: #{_lambda_.19} parent=5 // pred_check_branch
      %124 = sbr.rel (%p121) target = $region12
    $region11: #{_lambda_.19} parent=5 // pred_region
      %s125 = ssub.s32 %s8, 1
      // Predicated region
      $region13: #{_lambda_.19} parent=11 // pred_check
        %p126 = pneg %p53
      $region14: #{_lambda_.19} parent=11 // pred_check_branch
        %128 = sbr.rel (%p126) target = $region16
      $region15: #{_lambda_.19} parent=11 // pred_region
        %p129 = scmp.lt.s32.totalorder %s19, 0
        %s130 = scalar_select %p129, %s19, 0
        %s131 = smul.addr %s130, 4
        %s132 = smul.addr %s131, 4
        %s133 = scalar_lea.vmem %s0, %s132
      $region16: #{_lambda_.19} parent=11 // pred_fallthru
        _
    $region12: #{_lambda_.19} parent=5 // pred_fallthru
      _
    %p134 = scmp.lt.s32.totalorder %s8, 2
    // Predicated region
    $region17: #{_lambda_.19} parent=5 // pred_check
      %p135 = pneg %p134
    $region18: #{_lambda_.19} parent=5 // pred_check_branch
      %137 = sbr.rel (%p135) target = $region20
    $region19: #{_lambda_.19} parent=5 // pred_region
      // Predicated region
      $region21: #{_lambda_.19} parent=19 // pred_check
        %p138 = pneg %p75
      $region22: #{_lambda_.19} parent=19 // pred_check_branch
        %140 = sbr.rel (%p138) target = $region24
      $region23: #{_lambda_.19} parent=19 // pred_region
        %s141 = smul.u32 2, %s17
        %p142 = scmp.lt.s32.totalorder %s15, 1
        %s143 = scalar_select %p142, %s15, 1
        %p144 = scmp.lt.s32.totalorder %s141, 1
        %s145 = scalar_select %p144, %s141, 1
        %s146 = smul.addr %s143, 98
        %s147 = sadd.s32 %s145, %s146
        %s148 = smul.addr %s147, 4
        %s149 = scalar_lea.vmem %s1, %s148
        %s150 = smul.u32 2, %s17
      $region24: #{_lambda_.19} parent=19 // pred_fallthru
        _
    $region20: #{_lambda_.19} parent=5 // pred_fallthru
      _
    %p151 = scmp.le.s32.totalorder 1, %s8
    %p152 = scmp.lt.s32.totalorder %s8, 3
    %p153 = pnand %p151, %p152
    %p154 = pneg %p153
    // Predicated region
    $region25: #{_lambda_.19} parent=5 // pred_check
      _
    $region26: #{_lambda_.19} parent=5 // pred_check_branch
      %156 = sbr.rel (%p153) target = $region28
    $region27: #{_lambda_.19} parent=5 // pred_region
      %s157 = ssub.s32 %s8, 1
      %p158 = scmp.lt.s32.totalorder %s19, 0
      %s159 = scalar_select %p158, %s19, 0
      %s160 = smul.addr %s159, 4
      %s161 = smul.addr %s160, 4
      %s162 = scalar_lea.vmem %s0, %s161
      %p163 = pneg %p53
      %p164 = pneg %p50
      %s165 = smul.u32 2, %s20
      %p166 = scmp.lt.s32.totalorder %s18, 1
      %s167 = scalar_select %p166, %s18, 1
      %p168 = scmp.lt.s32.totalorder %s165, 1
      %s169 = scalar_select %p168, %s165, 1
      %s170 = smul.addr %s167, 98
      %s171 = sadd.s32 %s169, %s170
      %s172 = smul.addr %s171, 4
      %s173 = scalar_lea.vmem %s1, %s172
      %p174 = pneg %p81
      %p175 = pneg %p78
      %p176 = pneg %p111
      %p177 = pneg %p108
      %s178 = smul.u32 2, %s20
      %p179 = scmp.lt.s32.totalorder %s18, 1
      %s180 = scalar_select %p179, %s18, 1
      %p181 = scmp.lt.s32.totalorder %s19, 0
      %s182 = scalar_select %p181, %s19, 0
      %p183 = scmp.lt.s32.totalorder %s178, 1
      %s184 = scalar_select %p183, %s178, 1
      %s185 = smul.addr %s182, 2
      %s186 = sadd.s32 %s184, %s185
      %s187 = smul.addr %s180, 2
      %s188 = sadd.s32 %s186, %s187
      %s189 = smul.addr %s188, 8
      %s190 = scalar_lea.vmem %s2, %s189
      %p191 = scmp.lt.s32.totalorder %s19, 0
      %s192 = scalar_select %p191, %s19, 0
      %s193 = smul.addr %s192, 4
      %s194 = smul.addr %s193, 4
      %s195 = scalar_lea.vmem %s0, %s194
      %s196 = smul.u32 2, %s20
      %p197 = scmp.lt.s32.totalorder %s18, 1
      %s198 = scalar_select %p197, %s18, 1
      %p199 = scmp.lt.s32.totalorder %s196, 1
      %s200 = scalar_select %p199, %s196, 1
      %s201 = smul.addr %s198, 98
      %s202 = sadd.s32 %s200, %s201
      %s203 = smul.addr %s202, 4
      %s204 = scalar_lea.vmem %s1, %s203
      %s205 = smul.u32 2, %s20
      %s206 = smul.u32 2, %s20
      %p207 = scmp.lt.s32.totalorder %s18, 1
      %s208 = scalar_select %p207, %s18, 1
      %p209 = scmp.lt.s32.totalorder %s19, 0
      %s210 = scalar_select %p209, %s19, 0
      %p211 = scmp.lt.s32.totalorder %s206, 1
      %s212 = scalar_select %p211, %s206, 1
      %s213 = smul.addr %s210, 2
      %s214 = sadd.s32 %s212, %s213
      %s215 = smul.addr %s208, 2
      %s216 = sadd.s32 %s214, %s215
      %s217 = smul.addr %s216, 8
      %s218 = scalar_lea.vmem %s2, %s217
      %s219 = smul.u32 2, %s20
      %v221 = vld [vmem:[%s195] sm:$0xff]
      %v222 = vld [vmem:[%s195 + $0x8] sm:$0xff]
      %v223 = vld [vmem:[%s204] sm:$0xff]
      %v224 = vld [vmem:[%s204 + $0x8] sm:$0xff]
      %v225 = vld [vmem:[%s204 + $0x10] sm:$0xff]
      %v226 = vld [vmem:[%s204 + $0x18] sm:$0xff]
      %v227 = vld [vmem:[%s204 + $0x20] sm:$0xff]
      %v228 = vld [vmem:[%s204 + $0x28] sm:$0xff]
      %v229 = vld [vmem:[%s204 + $0x30] sm:$0xff]
      %v230 = vld [vmem:[%s204 + $0x38] sm:$0xff]
      %v231 = vld [vmem:[%s204 + $0x40] sm:$0xff]
      %v232 = vld [vmem:[%s204 + $0x48] sm:$0xff]
      %v233 = vld [vmem:[%s204 + $0x50] sm:$0xff]
      %v234 = vld [vmem:[%s204 + $0x58] sm:$0xff]
      %v235 = vld [vmem:[%s204 + $0x60] sm:$0xff]
      %v236 = vld [vmem:[%s204 + $0x68] sm:$0xff]
      %v237 = vld [vmem:[%s204 + $0x70] sm:$0xff]
      %v238 = vld [vmem:[%s204 + $0x78] sm:$0xff]
      %v239 = vld [vmem:[%s204 + $0x80] sm:$0xff]
      %v240 = vld [vmem:[%s204 + $0x88] sm:$0xff]
      %v241 = vld [vmem:[%s204 + $0x90] sm:$0xff]
      %v242 = vld [vmem:[%s204 + $0x98] sm:$0xff]
      %v243 = vld [vmem:[%s204 + $0xa0] sm:$0xff]
      %v244 = vld [vmem:[%s204 + $0xa8] sm:$0xff]
      %v245 = vld [vmem:[%s204 + $0xb0] sm:$0xff]
      %v246 = vld [vmem:[%s204 + $0xb8] sm:$0xff]
      %v247 = vld [vmem:[%s204 + $0xc0] sm:$0xff]
      %v248 = vld [vmem:[%s204 + $0xc8] sm:$0xff]
      %v249 = vld [vmem:[%s204 + $0xd0] sm:$0xff]
      %v250 = vld [vmem:[%s204 + $0xd8] sm:$0xff]
      %v251 = vld [vmem:[%s204 + $0xe0] sm:$0xff]
      %v252 = vld [vmem:[%s204 + $0xe8] sm:$0xff]
      %v253 = vld [vmem:[%s204 + $0xf0] sm:$0xff]
      %v254 = vld [vmem:[%s204 + $0xf8] sm:$0xff]
      %v255 = vld [vmem:[%s204 + $0x100] sm:$0xff]
      %v256 = vld [vmem:[%s204 + $0x108] sm:$0xff]
      %v257 = vld [vmem:[%s204 + $0x110] sm:$0xff]
      %v258 = vld [vmem:[%s204 + $0x118] sm:$0xff]
      %v259 = vld [vmem:[%s204 + $0x120] sm:$0xff]
      %v260 = vld [vmem:[%s204 + $0x128] sm:$0xff]
      %v261 = vld [vmem:[%s204 + $0x130] sm:$0xff]
      %v262 = vld [vmem:[%s204 + $0x138] sm:$0xff]
      %v263 = vld [vmem:[%s204 + $0x140] sm:$0xff]
      %v264 = vld [vmem:[%s204 + $0x148] sm:$0xff]
      %v265 = vld [vmem:[%s204 + $0x150] sm:$0xff]
      %v266 = vld [vmem:[%s204 + $0x158] sm:$0xff]
      %v267 = vld [vmem:[%s204 + $0x160] sm:$0xff]
      %v268 = vld [vmem:[%s204 + $0x168] sm:$0xff]
      %v269 = vld [vmem:[%s204 + $0x170] sm:$0xff]
      %v270 = vld [vmem:[%s204 + $0x178] sm:$0xff]
      %v271 = vld [vmem:[%s204 + $0x180] sm:$0xff]
      %v274 = vunpack.c.l.b16 %v221
      %v275 = vunpack.c.h.b16 %v221
      %v276 = vunpack.c.l.b16 %v222
      %v277 = vunpack.c.h.b16 %v222
      %v278 = vpack.c.b16 %v274, %v274
      %v279 = vpack.c.b16 %v275, %v275
      %v280 = vpack.c.b16 %v276, %v276
      %v281 = vpack.c.b16 %v277, %v277
      %v334 = vunpack.c.l.b16 %v223
      %v335 = vunpack.c.h.b16 %v223
      %v336 = vunpack.c.l.b16 %v224
      %v337 = vunpack.c.h.b16 %v224
      %v338 = vunpack.c.l.b16 %v225
      %v339 = vunpack.c.h.b16 %v225
      %v340 = vunpack.c.l.b16 %v226
      %v341 = vunpack.c.h.b16 %v226
      %v342 = vunpack.c.l.b16 %v227
      %v343 = vunpack.c.h.b16 %v227
      %v344 = vunpack.c.l.b16 %v228
      %v345 = vunpack.c.h.b16 %v228
      %v346 = vunpack.c.l.b16 %v229
      %v347 = vunpack.c.h.b16 %v229
      %v348 = vunpack.c.l.b16 %v230
      %v349 = vunpack.c.h.b16 %v230
      %v350 = vunpack.c.l.b16 %v231
      %v351 = vunpack.c.h.b16 %v231
      %v352 = vunpack.c.l.b16 %v232
      %v353 = vunpack.c.h.b16 %v232
      %v354 = vunpack.c.l.b16 %v233
      %v355 = vunpack.c.h.b16 %v233
      %v356 = vunpack.c.l.b16 %v234
      %v357 = vunpack.c.h.b16 %v234
      %v358 = vunpack.c.l.b16 %v235
      %v359 = vunpack.c.h.b16 %v235
      %v360 = vunpack.c.l.b16 %v236
      %v361 = vunpack.c.h.b16 %v236
      %v362 = vunpack.c.l.b16 %v237
      %v363 = vunpack.c.h.b16 %v237
      %v364 = vunpack.c.l.b16 %v238
      %v365 = vunpack.c.h.b16 %v238
      %v366 = vunpack.c.l.b16 %v239
      %v367 = vunpack.c.h.b16 %v239
      %v368 = vunpack.c.l.b16 %v240
      %v369 = vunpack.c.h.b16 %v240
      %v370 = vunpack.c.l.b16 %v241
      %v371 = vunpack.c.h.b16 %v241
      %v372 = vunpack.c.l.b16 %v242
      %v373 = vunpack.c.h.b16 %v242
      %v374 = vunpack.c.l.b16 %v243
      %v375 = vunpack.c.h.b16 %v243
      %v376 = vunpack.c.l.b16 %v244
      %v377 = vunpack.c.h.b16 %v244
      %v378 = vunpack.c.l.b16 %v245
      %v379 = vunpack.c.h.b16 %v245
      %v380 = vunpack.c.l.b16 %v246
      %v381 = vunpack.c.h.b16 %v246
      %v382 = vunpack.c.l.b16 %v247
      %v383 = vunpack.c.h.b16 %v247
      %v384 = vunpack.c.l.b16 %v248
      %v385 = vunpack.c.h.b16 %v248
      %v386 = vunpack.c.l.b16 %v249
      %v387 = vunpack.c.h.b16 %v249
      %v388 = vunpack.c.l.b16 %v250
      %v389 = vunpack.c.h.b16 %v250
      %v390 = vunpack.c.l.b16 %v251
      %v391 = vunpack.c.h.b16 %v251
      %v392 = vunpack.c.l.b16 %v252
      %v393 = vunpack.c.h.b16 %v252
      %v394 = vunpack.c.l.b16 %v253
      %v395 = vunpack.c.h.b16 %v253
      %v396 = vunpack.c.l.b16 %v254
      %v397 = vunpack.c.h.b16 %v254
      %v398 = vunpack.c.l.b16 %v255
      %v399 = vunpack.c.h.b16 %v255
      %v400 = vunpack.c.l.b16 %v256
      %v401 = vunpack.c.h.b16 %v256
      %v402 = vunpack.c.l.b16 %v257
      %v403 = vunpack.c.h.b16 %v257
      %v404 = vunpack.c.l.b16 %v258
      %v405 = vunpack.c.h.b16 %v258
      %v406 = vunpack.c.l.b16 %v259
      %v407 = vunpack.c.h.b16 %v259
      %v408 = vunpack.c.l.b16 %v260
      %v409 = vunpack.c.h.b16 %v260
      %v410 = vunpack.c.l.b16 %v261
      %v411 = vunpack.c.h.b16 %v261
      %v412 = vunpack.c.l.b16 %v262
      %v413 = vunpack.c.h.b16 %v262
      %v414 = vunpack.c.l.b16 %v263
      %v415 = vunpack.c.h.b16 %v263
      %v416 = vunpack.c.l.b16 %v264
      %v417 = vunpack.c.h.b16 %v264
      %v418 = vunpack.c.l.b16 %v265
      %v419 = vunpack.c.h.b16 %v265
      %v420 = vunpack.c.l.b16 %v266
      %v421 = vunpack.c.h.b16 %v266
      %v422 = vunpack.c.l.b16 %v267
      %v423 = vunpack.c.h.b16 %v267
      %v424 = vunpack.c.l.b16 %v268
      %v425 = vunpack.c.h.b16 %v268
      %v426 = vunpack.c.l.b16 %v269
      %v427 = vunpack.c.h.b16 %v269
      %v428 = vunpack.c.l.b16 %v270
      %v429 = vunpack.c.h.b16 %v270
      %v430 = vunpack.c.l.b16 %v271
      %v431 = vunpack.c.h.b16 %v271
      %v432 = vpack.c.b16 %v336, %v334
      %v433 = vpack.c.b16 %v337, %v335
      %v434 = vpack.c.b16 %v340, %v338
      %v435 = vpack.c.b16 %v341, %v339
      %v436 = vpack.c.b16 %v344, %v342
      %v437 = vpack.c.b16 %v345, %v343
      %v438 = vpack.c.b16 %v348, %v346
      %v439 = vpack.c.b16 %v349, %v347
      %v440 = vpack.c.b16 %v352, %v350
      %v441 = vpack.c.b16 %v353, %v351
      %v442 = vpack.c.b16 %v356, %v354
      %v443 = vpack.c.b16 %v357, %v355
      %v444 = vpack.c.b16 %v360, %v358
      %v445 = vpack.c.b16 %v361, %v359
      %v446 = vpack.c.b16 %v364, %v362
      %v447 = vpack.c.b16 %v365, %v363
      %v448 = vpack.c.b16 %v368, %v366
      %v449 = vpack.c.b16 %v369, %v367
      %v450 = vpack.c.b16 %v372, %v370
      %v451 = vpack.c.b16 %v373, %v371
      %v452 = vpack.c.b16 %v376, %v374
      %v453 = vpack.c.b16 %v377, %v375
      %v454 = vpack.c.b16 %v380, %v378
      %v455 = vpack.c.b16 %v381, %v379
      %v456 = vpack.c.b16 %v384, %v382
      %v457 = vpack.c.b16 %v385, %v383
      %v458 = vpack.c.b16 %v388, %v386
      %v459 = vpack.c.b16 %v389, %v387
      %v460 = vpack.c.b16 %v392, %v390
      %v461 = vpack.c.b16 %v393, %v391
      %v462 = vpack.c.b16 %v396, %v394
      %v463 = vpack.c.b16 %v397, %v395
      %v464 = vpack.c.b16 %v400, %v398
      %v465 = vpack.c.b16 %v401, %v399
      %v466 = vpack.c.b16 %v404, %v402
      %v467 = vpack.c.b16 %v405, %v403
      %v468 = vpack.c.b16 %v408, %v406
      %v469 = vpack.c.b16 %v409, %v407
      %v470 = vpack.c.b16 %v412, %v410
      %v471 = vpack.c.b16 %v413, %v411
      %v472 = vpack.c.b16 %v416, %v414
      %v473 = vpack.c.b16 %v417, %v415
      %v474 = vpack.c.b16 %v420, %v418
      %v475 = vpack.c.b16 %v421, %v419
      %v476 = vpack.c.b16 %v424, %v422
      %v477 = vpack.c.b16 %v425, %v423
      %v478 = vpack.c.b16 %v428, %v426
      %v479 = vpack.c.b16 %v429, %v427
      %v480 = vpack.c.b16 %v430, %v430
      %v481 = vpack.c.b16 %v431, %v431
      %vm530 = vcmask 64512
      %v532 = vsel %vm530, %v281, 0
      %vm534 = vcmask 1043456
      %v536 = vsel %vm534, %v480, 0
      %v539 = vsel %vm534, %v481, 0
      %541 = vmatprep.subr.bf16.mxu0 %v433
      %542 = vmatpush1.bf16.msra.mxu0 %v432
      %543 = vmatprep.subr.bf16.mxu0 %v435
      %544 = vmatpush1.bf16.msra.mxu0 %v434
      %545 = vmatprep.subr.bf16.mxu0 %v437
      %546 = vmatpush1.bf16.msra.mxu0 %v436
      %547 = vmatprep.subr.bf16.mxu0 %v439
      %548 = vmatpush1.bf16.msra.mxu0 %v438
      %549 = vmatprep.subr.bf16.mxu0 %v441
      %550 = vmatpush1.bf16.msra.mxu0 %v440
      %551 = vmatprep.subr.bf16.mxu0 %v443
      %552 = vmatpush1.bf16.msra.mxu0 %v442
      %553 = vmatprep.subr.bf16.mxu0 %v445
      %554 = vmatpush1.bf16.msra.mxu0 %v444
      %555 = vmatprep.subr.bf16.mxu0 %v447
      %556 = vmatpush1.bf16.msra.mxu0 %v446
      %557 = vmatprep.subr.bf16.mxu0 %v449
      %558 = vmatpush1.bf16.msra.mxu0 %v448
      %559 = vmatprep.subr.bf16.mxu0 %v451
      %560 = vmatpush1.bf16.msra.mxu0 %v450
      %561 = vmatprep.subr.bf16.mxu0 %v453
      %562 = vmatpush1.bf16.msra.mxu0 %v452
      %563 = vmatprep.subr.bf16.mxu0 %v455
      %564 = vmatpush1.bf16.msra.mxu0 %v454
      %565 = vmatprep.subr.bf16.mxu0 %v457
      %566 = vmatpush1.bf16.msra.mxu0 %v456
      %567 = vmatprep.subr.bf16.mxu0 %v459
      %568 = vmatpush1.bf16.msra.mxu0 %v458
      %569 = vmatprep.subr.bf16.mxu0 %v461
      %570 = vmatpush1.bf16.msra.mxu0 %v460
      %571 = vmatprep.subr.bf16.mxu0 %v463
      %572 = vmatpush1.bf16.msra.mxu0 %v462
      %573 = vmatprep.mubr.bf16.mxu0 %v279
      %574 = vmatmul.mubr.bf16.gmra.mrb[0].mxu0 %v278
      %v575 = vpop.f32.mrb[0].mxu0
      %v576 = vadd.f32 0.0, %v575
      %v577 = vpop.f32.mrb[0].mxu0
      %v578 = vadd.f32 0.0, %v577
      %v579 = vpop.f32.mrb[0].mxu0
      %v580 = vpop.f32.mrb[0].mxu0
      %581 = vdwg.mxu0
      %582 = vmatprep.subr.bf16.mxu0 %v465
      %583 = vmatpush1.bf16.msra.mxu0 %v464
      %584 = vmatprep.subr.bf16.mxu0 %v467
      %585 = vmatpush1.bf16.msra.mxu0 %v466
      %586 = vmatprep.subr.bf16.mxu0 %v469
      %587 = vmatpush1.bf16.msra.mxu0 %v468
      %588 = vmatprep.subr.bf16.mxu0 %v471
      %589 = vmatpush1.bf16.msra.mxu0 %v470
      %590 = vmatprep.subr.bf16.mxu0 %v473
      %591 = vmatpush1.bf16.msra.mxu0 %v472
      %592 = vmatprep.subr.bf16.mxu0 %v475
      %593 = vmatpush1.bf16.msra.mxu0 %v474
      %594 = vmatprep.subr.bf16.mxu0 %v477
      %595 = vmatpush1.bf16.msra.mxu0 %v476
      %596 = vmatprep.subr.bf16.mxu0 %v479
      %597 = vmatpush1.bf16.msra.mxu0 %v478
      %598 = vmatprep.subr.bf16.mxu0 %v539
      %599 = vmatpush1.bf16.msra.mxu0 %v536
      %600 = vmatprep.subr.bf16.mxu0 0
      %601 = vmatpush1.bf16.msra.mxu0 0
      %602 = vmatprep.subr.bf16.mxu0 0
      %603 = vmatpush1.bf16.msra.mxu0 0
      %604 = vmatprep.subr.bf16.mxu0 0
      %605 = vmatpush1.bf16.msra.mxu0 0
      %606 = vmatprep.subr.bf16.mxu0 0
      %607 = vmatpush1.bf16.msra.mxu0 0
      %608 = vmatprep.subr.bf16.mxu0 0
      %609 = vmatpush1.bf16.msra.mxu0 0
      %610 = vmatprep.subr.bf16.mxu0 0
      %611 = vmatpush1.bf16.msra.mxu0 0
      %612 = vmatprep.subr.bf16.mxu0 0
      %613 = vmatpush1.bf16.msra.mxu0 0
      %614 = vmatprep.mubr.bf16.mxu0 %v532
      %615 = vmatmul.mubr.bf16.gmra.mrb[0].mxu0 %v280
      %v616 = vpop.f32.mrb[0].mxu0
      %v617 = vadd.f32 %v576, %v616
      %v618 = vpop.f32.mrb[0].mxu0
      %v619 = vadd.f32 %v578, %v618
      %v620 = vpop.f32.mrb[0].mxu0
      %v621 = vpop.f32.mrb[0].mxu0
      %622 = vdwg.mxu0
      %623 = vst [vmem:[%s218] sm:$0xff] %v617
      %624 = vst [vmem:[%s218 + $0x8] sm:$0xff] %v619
      %s625 = smul.u32 2, %s20
      %p626 = scmp.lt.s32.totalorder %s18, 1
      %s627 = scalar_select %p626, %s18, 1
      %p628 = scmp.lt.s32.totalorder %s19, 0
      %s629 = scalar_select %p628, %s19, 0
      %p630 = scmp.lt.s32.totalorder %s625, 1
      %s631 = scalar_select %p630, %s625, 1
      %s632 = smul.addr %s629, 2
      %s633 = sadd.s32 %s631, %s632
      %s634 = smul.addr %s627, 2
      %s635 = sadd.s32 %s633, %s634
      %s636 = smul.addr %s635, 8
      %s637 = scalar_lea.vmem %s2, %s636
      // Predicated region
      $region29: #{_lambda_.19} parent=27 // pred_check
        %p638 = pneg %p108
      $region30: #{_lambda_.19} parent=27 // pred_check_branch
        %640 = sbr.rel (%p638) target = $region32
      $region31: #{_lambda_.19} parent=27 // pred_region
        %s641 = smul.u32 2, %s20
      $region32: #{_lambda_.19} parent=27 // pred_fallthru
        _
    $region28: #{_lambda_.19} parent=5 // pred_fallthru
      _
    %p642 = scmp.le.s32.totalorder 2, %s8
    // Predicated region
    $region33: #{_lambda_.19} parent=5 // pred_check
      %p643 = pneg %p642
    $region34: #{_lambda_.19} parent=5 // pred_check_branch
      %645 = sbr.rel (%p643) target = $region36
    $region35: #{_lambda_.19} parent=5 // pred_region
      %s646 = ssub.s32 %s8, 2
      // Predicated region
      $region37: #{_lambda_.19} parent=35 // pred_check
        %p647 = pneg %p114
      $region38: #{_lambda_.19} parent=35 // pred_check_branch
        %649 = sbr.rel (%p647) target = $region40
      $region39: #{_lambda_.19} parent=35 // pred_region
        %s650 = smul.u32 2, %s23
        %p651 = scmp.lt.s32.totalorder %s21, 1
        %s652 = scalar_select %p651, %s21, 1
        %p653 = scmp.lt.s32.totalorder %s22, 0
        %s654 = scalar_select %p653, %s22, 0
        %p655 = scmp.lt.s32.totalorder %s650, 1
        %s656 = scalar_select %p655, %s650, 1
        %s657 = smul.addr %s654, 2
        %s658 = sadd.s32 %s656, %s657
        %s659 = smul.addr %s652, 2
        %s660 = sadd.s32 %s658, %s659
        %s661 = smul.addr %s660, 8
        %s662 = scalar_lea.vmem %s2, %s661
      $region40: #{_lambda_.19} parent=35 // pred_fallthru
        _
    $region36: #{_lambda_.19} parent=5 // pred_fallthru
      _
  $region6: #{_lambda_.19} parent=0 // loop_footer
    %s12 = sadd.s32 1, %s8
  $region7: #{_lambda_.19} parent=0 // loop_footer_branch
    %7 = sbr.rel target = $region3
  $region8: #{_lambda_.19} parent=0 // loop_exit
    _

// kernel: _lambda_.20
$region0: #{_lambda_.20}
  #allocation0 [shape = 'u32[]', space=smem, size = 0x4, offset = 0x4, fixed_abs, tag = 'smem constant byte address 0x4 - core index']
  #allocation1 [shape = 'u32[144,128]{1,0:T(1,128)}', space=vmem, size = 0x12000, scoped, tag = 'internal scratch']
  %s0 = inlined_call_operand.vmem [shape: f32[2,8,256], index: 0, kind: input, shape index: {}]
  %s1 = inlined_call_operand.vmem [shape: f32[8,1], index: 1, kind: input, shape index: {}]
  %s2 = inlined_call_operand.vmem [shape: f32[8,1], index: 2, kind: input, shape index: {}]
  %s3 = inlined_call_operand.vmem [shape: f32[2,8,256], index: 3, kind: output, shape index: {}]
  %s4 = sld [smem:[#allocation0]]
  $region45: #{_lambda_.20} parent=0
    _
  %s6 = ssub.s32 1, %s4
  %s7 = scalar_select 0, %s6, %s4
  loop: start=0, step=1, limit=4
  $region2: #{_lambda_.20} parent=0 // loop_pre_header
    _
  $region3: #{_lambda_.20} parent=0 // loop_header
    %s9 = sphi 0, %s13
    %p10 = scmp.ge.s32.totalorder %s9, 4
    %s16 = sphi 0, %s28
    %s17 = sphi 0, %s24
    %s18 = sphi 0, %s16
    %s19 = sphi 0, %s17
    %s20 = sphi 0, %s18
    %s21 = sphi 0, %s19
    %s33 = sphi 0, %s35
    %s36 = sphi 0, %s33
    %s37 = sphi 0, %s36
    %s53 = sphi 0, %s37
    %s59 = sphi 0, %s61
    %s62 = sphi 0, %s59
    %s63 = sphi 0, %s62
    %s79 = sphi 0, %s63
    %s85 = sphi 0, %s87
    %s88 = sphi 0, %s85
    %s89 = sphi 0, %s88
    %s105 = sphi 0, %s89
    %s113 = sphi 0, %s115
    %s116 = sphi 0, %s113
    %s117 = sphi 0, %s116
    %s133 = sphi 0, %s117
  $region4: #{_lambda_.20} parent=0 // loop_header_branch
    %12 = sbr.rel (%p10) target = $region8
  $region5: #{_lambda_.20} parent=0 // loop_body
    %s14 = ssub.s32 %s9, 1
    %s15 = ssub.s32 %s9, 2
    %s22 = sadd.s32 1, %s17
    %p23 = scmp.ge.s32.totalorder %s22, 1
    %s24 = scalar_select %p23, 0, %s22
    %s25 = sadd.s32 1, %s16
    %s26 = scalar_select %p23, %s25, %s16
    %p27 = scmp.ge.s32.totalorder %s26, 2
    %s28 = scalar_select %p27, 0, %s26
    %s29 = ssub.s32 %s16, %s28
    %s30 = ssub.s32 %s17, %s24
    %s31 = sor.u32 %s29, %s30
    %p32 = scmp.eq.s32.totalorder %s31, 0
    %s34 = sadd.s32 %s33, 1
    %s35 = scalar_select %p32, %s33, %s34
    %p38 = pneg %p32
    %p39 = scmp.eq.s32.totalorder %s9, 1
    %p40 = por %p38, %p39
    %p41 = scmp.ne.s32.totalorder %s33, %s36
    %p42 = scmp.eq.s32.totalorder %s9, 0
    %p43 = por %p41, %p42
    %p44 = scmp.ne.s32.totalorder %s33, %s36
    %p45 = scmp.eq.s32.totalorder %s14, 1
    %p46 = por %p44, %p45
    %p47 = scmp.ne.s32.totalorder %s36, %s37
    %p48 = scmp.eq.s32.totalorder %s14, 0
    %p49 = por %p47, %p48
    %p50 = scmp.ne.s32.totalorder %s36, %s37
    %p51 = scmp.eq.s32.totalorder %s15, 1
    %p52 = por %p50, %p51
    %p54 = scmp.ne.s32.totalorder %s37, %s53
    %p55 = scmp.eq.s32.totalorder %s15, 0
    %p56 = por %p54, %p55
    %s57 = ssub.s32 %s17, %s24
    %p58 = scmp.eq.s32.totalorder %s57, 0
    %s60 = sadd.s32 %s59, 1
    %s61 = scalar_select %p58, %s59, %s60
    %p64 = pneg %p58
    %p65 = scmp.eq.s32.totalorder %s9, 1
    %p66 = por %p64, %p65
    %p67 = scmp.ne.s32.totalorder %s59, %s62
    %p68 = scmp.eq.s32.totalorder %s9, 0
    %p69 = por %p67, %p68
    %p70 = scmp.ne.s32.totalorder %s59, %s62
    %p71 = scmp.eq.s32.totalorder %s14, 1
    %p72 = por %p70, %p71
    %p73 = scmp.ne.s32.totalorder %s62, %s63
    %p74 = scmp.eq.s32.totalorder %s14, 0
    %p75 = por %p73, %p74
    %p76 = scmp.ne.s32.totalorder %s62, %s63
    %p77 = scmp.eq.s32.totalorder %s15, 1
    %p78 = por %p76, %p77
    %p80 = scmp.ne.s32.totalorder %s63, %s79
    %p81 = scmp.eq.s32.totalorder %s15, 0
    %p82 = por %p80, %p81
    %s83 = ssub.s32 %s17, %s24
    %p84 = scmp.eq.s32.totalorder %s83, 0
    %s86 = sadd.s32 %s85, 1
    %s87 = scalar_select %p84, %s85, %s86
    %p90 = pneg %p84
    %p91 = scmp.eq.s32.totalorder %s9, 1
    %p92 = por %p90, %p91
    %p93 = scmp.ne.s32.totalorder %s85, %s88
    %p94 = scmp.eq.s32.totalorder %s9, 0
    %p95 = por %p93, %p94
    %p96 = scmp.ne.s32.totalorder %s85, %s88
    %p97 = scmp.eq.s32.totalorder %s14, 1
    %p98 = por %p96, %p97
    %p99 = scmp.ne.s32.totalorder %s88, %s89
    %p100 = scmp.eq.s32.totalorder %s14, 0
    %p101 = por %p99, %p100
    %p102 = scmp.ne.s32.totalorder %s88, %s89
    %p103 = scmp.eq.s32.totalorder %s15, 1
    %p104 = por %p102, %p103
    %p106 = scmp.ne.s32.totalorder %s89, %s105
    %p107 = scmp.eq.s32.totalorder %s15, 0
    %p108 = por %p106, %p107
    %s109 = ssub.s32 %s16, %s28
    %s110 = ssub.s32 %s17, %s24
    %s111 = sor.u32 %s109, %s110
    %p112 = scmp.eq.s32.totalorder %s111, 0
    %s114 = sadd.s32 %s113, 1
    %s115 = scalar_select %p112, %s113, %s114
    %p118 = pneg %p112
    %p119 = scmp.eq.s32.totalorder %s9, 1
    %p120 = por %p118, %p119
    %p121 = scmp.ne.s32.totalorder %s113, %s116
    %p122 = scmp.eq.s32.totalorder %s9, 0
    %p123 = por %p121, %p122
    %p124 = scmp.ne.s32.totalorder %s113, %s116
    %p125 = scmp.eq.s32.totalorder %s14, 1
    %p126 = por %p124, %p125
    %p127 = scmp.ne.s32.totalorder %s116, %s117
    %p128 = scmp.eq.s32.totalorder %s14, 0
    %p129 = por %p127, %p128
    %p130 = scmp.ne.s32.totalorder %s116, %s117
    %p131 = scmp.eq.s32.totalorder %s15, 1
    %p132 = por %p130, %p131
    %p134 = scmp.ne.s32.totalorder %s117, %s133
    %p135 = scmp.eq.s32.totalorder %s15, 0
    %p136 = por %p134, %p135
    %p137 = scmp.le.s32.totalorder 1, %s9
    %p138 = scmp.lt.s32.totalorder %s9, 3
    %p139 = pnand %p137, %p138
    %p140 = pneg %p139
    // Predicated region
    $region9: #{_lambda_.20} parent=5 // pred_check
      _
    $region10: #{_lambda_.20} parent=5 // pred_check_branch
      %142 = sbr.rel (%p139) target = $region12
    $region11: #{_lambda_.20} parent=5 // pred_region
      %s143 = ssub.s32 %s9, 1
      // Predicated region
      $region13: #{_lambda_.20} parent=11 // pred_check
        %p144 = pneg %p75
      $region14: #{_lambda_.20} parent=11 // pred_check_branch
        %146 = sbr.rel (%p144) target = $region16
      $region15: #{_lambda_.20} parent=11 // pred_region
        %p147 = scmp.lt.s32.totalorder %s19, 0
        %s148 = scalar_select %p147, %s19, 0
        %s149 = smul.addr %s148, 8
        %s150 = scalar_lea.vmem %s1, %s149
      $region16: #{_lambda_.20} parent=11 // pred_fallthru
        _
      // Predicated region
      $region17: #{_lambda_.20} parent=11 // pred_check
        %p151 = pneg %p101
      $region18: #{_lambda_.20} parent=11 // pred_check_branch
        %153 = sbr.rel (%p151) target = $region20
      $region19: #{_lambda_.20} parent=11 // pred_region
        %p154 = scmp.lt.s32.totalorder %s19, 0
        %s155 = scalar_select %p154, %s19, 0
        %s156 = smul.addr %s155, 8
        %s157 = scalar_lea.vmem %s2, %s156
      $region20: #{_lambda_.20} parent=11 // pred_fallthru
        _
    $region12: #{_lambda_.20} parent=5 // pred_fallthru
      _
    %p158 = scmp.lt.s32.totalorder %s9, 2
    // Predicated region
    $region21: #{_lambda_.20} parent=5 // pred_check
      %p159 = pneg %p158
    $region22: #{_lambda_.20} parent=5 // pred_check_branch
      %161 = sbr.rel (%p159) target = $region24
    $region23: #{_lambda_.20} parent=5 // pred_region
      // Predicated region
      $region25: #{_lambda_.20} parent=23 // pred_check
        %p162 = pneg %p43
      $region26: #{_lambda_.20} parent=23 // pred_check_branch
        %164 = sbr.rel (%p162) target = $region28
      $region27: #{_lambda_.20} parent=23 // pred_region
        %p165 = scmp.lt.s32.totalorder %s16, 1
        %s166 = scalar_select %p165, %s16, 1
        %p167 = scmp.lt.s32.totalorder %s17, 0
        %s168 = scalar_select %p167, %s17, 0
        %s169 = smul.addr %s168, 2
        %s170 = smul.addr %s166, 2
        %s171 = sadd.s32 %s169, %s170
        %s172 = smul.addr %s171, 8
        %s173 = scalar_lea.vmem %s0, %s172
      $region28: #{_lambda_.20} parent=23 // pred_fallthru
        _
    $region24: #{_lambda_.20} parent=5 // pred_fallthru
      _
    %p174 = scmp.le.s32.totalorder 1, %s9
    %p175 = scmp.lt.s32.totalorder %s9, 3
    %p176 = pnand %p174, %p175
    %p177 = pneg %p176
    // Predicated region
    $region29: #{_lambda_.20} parent=5 // pred_check
      _
    $region30: #{_lambda_.20} parent=5 // pred_check_branch
      %179 = sbr.rel (%p176) target = $region32
    $region31: #{_lambda_.20} parent=5 // pred_region
      %s180 = ssub.s32 %s9, 1
      %p181 = scmp.lt.s32.totalorder %s18, 1
      %s182 = scalar_select %p181, %s18, 1
      %p183 = scmp.lt.s32.totalorder %s19, 0
      %s184 = scalar_select %p183, %s19, 0
      %s185 = smul.addr %s184, 2
      %s186 = smul.addr %s182, 2
      %s187 = sadd.s32 %s185, %s186
      %s188 = smul.addr %s187, 8
      %s189 = scalar_lea.vmem %s0, %s188
      %p190 = pneg %p49
      %p191 = pneg %p46
      %p192 = scmp.lt.s32.totalorder %s19, 0
      %s193 = scalar_select %p192, %s19, 0
      %s194 = smul.addr %s193, 8
      %s195 = scalar_lea.vmem %s1, %s194
      %p196 = pneg %p75
      %p197 = pneg %p72
      %p198 = scmp.lt.s32.totalorder %s19, 0
      %s199 = scalar_select %p198, %s19, 0
      %s200 = smul.addr %s199, 8
      %s201 = scalar_lea.vmem %s2, %s200
      %p202 = pneg %p101
      %p203 = pneg %p98
      %p204 = pneg %p129
      %p205 = pneg %p126
      %p206 = scmp.lt.s32.totalorder %s18, 1
      %s207 = scalar_select %p206, %s18, 1
      %p208 = scmp.lt.s32.totalorder %s19, 0
      %s209 = scalar_select %p208, %s19, 0
      %s210 = smul.addr %s209, 2
      %s211 = smul.addr %s207, 2
      %s212 = sadd.s32 %s210, %s211
      %s213 = smul.addr %s212, 8
      %s214 = scalar_lea.vmem %s3, %s213
      %p215 = scmp.lt.s32.totalorder %s18, 1
      %s216 = scalar_select %p215, %s18, 1
      %p217 = scmp.lt.s32.totalorder %s19, 0
      %s218 = scalar_select %p217, %s19, 0
      %s219 = smul.addr %s218, 2
      %s220 = smul.addr %s216, 2
      %s221 = sadd.s32 %s219, %s220
      %s222 = smul.addr %s221, 8
      %s223 = scalar_lea.vmem %s0, %s222
      %p224 = scmp.lt.s32.totalorder %s19, 0
      %s225 = scalar_select %p224, %s19, 0
      %s226 = smul.addr %s225, 8
      %s227 = scalar_lea.vmem %s1, %s226
      %p228 = scmp.lt.s32.totalorder %s19, 0
      %s229 = scalar_select %p228, %s19, 0
      %s230 = smul.addr %s229, 8
      %s231 = scalar_lea.vmem %s2, %s230
      %p232 = scmp.lt.s32.totalorder %s18, 1
      %s233 = scalar_select %p232, %s18, 1
      %p234 = scmp.lt.s32.totalorder %s19, 0
      %s235 = scalar_select %p234, %s19, 0
      %s236 = smul.addr %s235, 2
      %s237 = smul.addr %s233, 2
      %s238 = sadd.s32 %s236, %s237
      %s239 = smul.addr %s238, 8
      %s240 = scalar_lea.vmem %s3, %s239
      %v241 = vld [vmem:[%s223] sm:$0xff]
      %v242 = vld [vmem:[%s223 + $0x8] sm:$0xff]
      %v243 = vld [vmem:[%s227] sm:$0xff]
      %v244 = vld [vmem:[%s231] sm:$0xff]
      %v245 = vadd.f32 %v241, %v242
      %246 = vadd.xlane.f32.xlu0 %v245
      %v247 = vpop.xlane.xlu0 %246
      %v248 = vrcp.pop 256.0
      %v249 = vmul.f32 %v247, %v248
      %v250 = vsub.f32 %v241, %v249
      %v251 = vsub.f32 %v242, %v249
      %v252 = vmul.f32 %v250, %v250
      %v253 = vmul.f32 %v251, %v251
      %v254 = vadd.f32 %v252, %v253
      %255 = vadd.xlane.f32.xlu0 %v254
      %v256 = vpop.xlane.xlu0 %255
      %v257 = vmul.f32 %v256, %v248
      %v258 = vadd.f32 %v257, 1e-05
      %v259 = vrsqrt.pop %v258
      %v260 = vmul.f32 %v250, %v259
      %v261 = vmul.f32 %v251, %v259
      %263 = vset.pattern.permute.xlu0 0
      %264 = vperm.xlu0 %263, %v243
      %v265 = vpop.permute.xlu0 %264
      %v267 = vmul.f32 %v260, %v265
      %v268 = vmul.f32 %v261, %v265
      %270 = vset.pattern.permute.xlu0 0
      %271 = vperm.xlu0 %270, %v244
      %v272 = vpop.permute.xlu0 %271
      %v274 = vadd.f32 %v267, %v272
      %v275 = vadd.f32 %v268, %v272
      %v276 = vmax.f32 %v274, 0.0
      %v277 = vmax.f32 %v275, 0.0
      %278 = vst [vmem:[%s240] sm:$0xff] %v276
      %279 = vst [vmem:[%s240 + $0x8] sm:$0xff] %v277
      %p280 = scmp.lt.s32.totalorder %s18, 1
      %s281 = scalar_select %p280, %s18, 1
      %p282 = scmp.lt.s32.totalorder %s19, 0
      %s283 = scalar_select %p282, %s19, 0
      %s284 = smul.addr %s283, 2
      %s285 = smul.addr %s281, 2
      %s286 = sadd.s32 %s284, %s285
      %s287 = smul.addr %s286, 8
      %s288 = scalar_lea.vmem %s3, %s287
      // Predicated region
      $region33: #{_lambda_.20} parent=31 // pred_check
        %p289 = pneg %p126
      $region34: #{_lambda_.20} parent=31 // pred_check_branch
        %291 = sbr.rel (%p289) target = $region36
      $region35: #{_lambda_.20} parent=31 // pred_region
        _
      $region36: #{_lambda_.20} parent=31 // pred_fallthru
        _
    $region32: #{_lambda_.20} parent=5 // pred_fallthru
      _
    %p292 = scmp.le.s32.totalorder 2, %s9
    // Predicated region
    $region37: #{_lambda_.20} parent=5 // pred_check
      %p293 = pneg %p292
    $region38: #{_lambda_.20} parent=5 // pred_check_branch
      %295 = sbr.rel (%p293) target = $region40
    $region39: #{_lambda_.20} parent=5 // pred_region
      %s296 = ssub.s32 %s9, 2
      // Predicated region
      $region41: #{_lambda_.20} parent=39 // pred_check
        %p297 = pneg %p132
      $region42: #{_lambda_.20} parent=39 // pred_check_branch
        %299 = sbr.rel (%p297) target = $region44
      $region43: #{_lambda_.20} parent=39 // pred_region
        %p300 = scmp.lt.s32.totalorder %s20, 1
        %s301 = scalar_select %p300, %s20, 1
        %p302 = scmp.lt.s32.totalorder %s21, 0
        %s303 = scalar_select %p302, %s21, 0
        %s304 = smul.addr %s303, 2
        %s305 = smul.addr %s301, 2
        %s306 = sadd.s32 %s304, %s305
        %s307 = smul.addr %s306, 8
        %s308 = scalar_lea.vmem %s3, %s307
      $region44: #{_lambda_.20} parent=39 // pred_fallthru
        _
    $region40: #{_lambda_.20} parent=5 // pred_fallthru
      _
  $region6: #{_lambda_.20} parent=0 // loop_footer
    %s13 = sadd.s32 1, %s9
  $region7: #{_lambda_.20} parent=0 // loop_footer_branch
    %8 = sbr.rel target = $region3
  $region8: #{_lambda_.20} parent=0 // loop_exit
    _

// kernel: _lambda_.21
$region0: #{_lambda_.21}
  #allocation0 [shape = 'u32[]', space=smem, size = 0x4, offset = 0x4, fixed_abs, tag = 'smem constant byte address 0x4 - core index']
  #allocation1 [shape = 'u32[144,128]{1,0:T(1,128)}', space=vmem, size = 0x12000, scoped, tag = 'internal scratch']
  %s0 = inlined_call_operand.vmem [shape: bf16[16,128], index: 0, kind: input, shape index: {}]
  %s1 = inlined_call_operand.vmem [shape: bf16[2,128,64], index: 1, kind: input, shape index: {}]
  %s2 = inlined_call_operand.vmem [shape: f32[2,16,64], index: 2, kind: output, shape index: {}]
  %s3 = sld [smem:[#allocation0]]
  $region41: #{_lambda_.21} parent=0
    _
  %s5 = ssub.s32 1, %s3
  %s6 = scalar_select 0, %s5, %s3
  loop: start=0, step=1, limit=4
  $region2: #{_lambda_.21} parent=0 // loop_pre_header
    _
  $region3: #{_lambda_.21} parent=0 // loop_header
    %s8 = sphi 0, %s12
    %p9 = scmp.ge.s32.totalorder %s8, 4
    %s15 = sphi 0, %s34
    %s16 = sphi 0, %s30
    %s17 = sphi 0, %s26
    %s18 = sphi 0, %s15
    %s19 = sphi 0, %s16
    %s20 = sphi 0, %s17
    %s21 = sphi 0, %s18
    %s22 = sphi 0, %s19
    %s23 = sphi 0, %s20
    %s37 = sphi 0, %s39
    %s40 = sphi 0, %s37
    %s41 = sphi 0, %s40
    %s57 = sphi 0, %s41
    %s65 = sphi 0, %s67
    %s68 = sphi 0, %s65
    %s69 = sphi 0, %s68
    %s85 = sphi 0, %s69
    %s95 = sphi 0, %s97
    %s98 = sphi 0, %s95
    %s99 = sphi 0, %s98
    %s115 = sphi 0, %s99
  $region4: #{_lambda_.21} parent=0 // loop_header_branch
    %11 = sbr.rel (%p9) target = $region8
  $region5: #{_lambda_.21} parent=0 // loop_body
    %s13 = ssub.s32 %s8, 1
    %s14 = ssub.s32 %s8, 2
    %s24 = sadd.s32 1, %s17
    %p25 = scmp.ge.s32.totalorder %s24, 1
    %s26 = scalar_select %p25, 0, %s24
    %s27 = sadd.s32 1, %s16
    %s28 = scalar_select %p25, %s27, %s16
    %p29 = scmp.ge.s32.totalorder %s28, 1
    %s30 = scalar_select %p29, 0, %s28
    %s31 = sadd.s32 1, %s15
    %s32 = scalar_select %p29, %s31, %s15
    %p33 = scmp.ge.s32.totalorder %s32, 2
    %s34 = scalar_select %p33, 0, %s32
    %s35 = ssub.s32 %s16, %s30
    %p36 = scmp.eq.s32.totalorder %s35, 0
    %s38 = sadd.s32 %s37, 1
    %s39 = scalar_select %p36, %s37, %s38
    %p42 = pneg %p36
    %p43 = scmp.eq.s32.totalorder %s8, 1
    %p44 = por %p42, %p43
    %p45 = scmp.ne.s32.totalorder %s37, %s40
    %p46 = scmp.eq.s32.totalorder %s8, 0
    %p47 = por %p45, %p46
    %p48 = scmp.ne.s32.totalorder %s37, %s40
    %p49 = scmp.eq.s32.totalorder %s13, 1
    %p50 = por %p48, %p49
    %p51 = scmp.ne.s32.totalorder %s40, %s41
    %p52 = scmp.eq.s32.totalorder %s13, 0
    %p53 = por %p51, %p52
    %p54 = scmp.ne.s32.totalorder %s40, %s41
    %p55 = scmp.eq.s32.totalorder %s14, 1
    %p56 = por %p54, %p55
    %p58 = scmp.ne.s32.totalorder %s41, %s57
    %p59 = scmp.eq.s32.totalorder %s14, 0
    %p60 = por %p58, %p59
    %s61 = ssub.s32 %s15, %s34
    %s62 = ssub.s32 %s17, %s26
    %s63 = sor.u32 %s61, %s62
    %p64 = scmp.eq.s32.totalorder %s63, 0
    %s66 = sadd.s32 %s65, 1
    %s67 = scalar_select %p64, %s65, %s66
    %p70 = pneg %p64
    %p71 = scmp.eq.s32.totalorder %s8, 1
    %p72 = por %p70, %p71
    %p73 = scmp.ne.s32.totalorder %s65, %s68
    %p74 = scmp.eq.s32.totalorder %s8, 0
    %p75 = por %p73, %p74
    %p76 = scmp.ne.s32.totalorder %s65, %s68
    %p77 = scmp.eq.s32.totalorder %s13, 1
    %p78 = por %p76, %p77
    %p79 = scmp.ne.s32.totalorder %s68, %s69
    %p80 = scmp.eq.s32.totalorder %s13, 0
    %p81 = por %p79, %p80
    %p82 = scmp.ne.s32.totalorder %s68, %s69
    %p83 = scmp.eq.s32.totalorder %s14, 1
    %p84 = por %p82, %p83
    %p86 = scmp.ne.s32.totalorder %s69, %s85
    %p87 = scmp.eq.s32.totalorder %s14, 0
    %p88 = por %p86, %p87
    %s89 = ssub.s32 %s15, %s34
    %s90 = ssub.s32 %s16, %s30
    %s91 = sor.u32 %s89, %s90
    %s92 = ssub.s32 %s17, %s26
    %s93 = sor.u32 %s91, %s92
    %p94 = scmp.eq.s32.totalorder %s93, 0
    %s96 = sadd.s32 %s95, 1
    %s97 = scalar_select %p94, %s95, %s96
    %p100 = pneg %p94
    %p101 = scmp.eq.s32.totalorder %s8, 1
    %p102 = por %p100, %p101
    %p103 = scmp.ne.s32.totalorder %s95, %s98
    %p104 = scmp.eq.s32.totalorder %s8, 0
    %p105 = por %p103, %p104
    %p106 = scmp.ne.s32.totalorder %s95, %s98
    %p107 = scmp.eq.s32.totalorder %s13, 1
    %p108 = por %p106, %p107
    %p109 = scmp.ne.s32.totalorder %s98, %s99
    %p110 = scmp.eq.s32.totalorder %s13, 0
    %p111 = por %p109, %p110
    %p112 = scmp.ne.s32.totalorder %s98, %s99
    %p113 = scmp.eq.s32.totalorder %s14, 1
    %p114 = por %p112, %p113
    %p116 = scmp.ne.s32.totalorder %s99, %s115
    %p117 = scmp.eq.s32.totalorder %s14, 0
    %p118 = por %p116, %p117
    %p119 = scmp.le.s32.totalorder 1, %s8
    %p120 = scmp.lt.s32.totalorder %s8, 3
    %p121 = pnand %p119, %p120
    %p122 = pneg %p121
    // Predicated region
    $region9: #{_lambda_.21} parent=5 // pred_check
      _
    $region10: #{_lambda_.21} parent=5 // pred_check_branch
      %124 = sbr.rel (%p121) target = $region12
    $region11: #{_lambda_.21} parent=5 // pred_region
      %s125 = ssub.s32 %s8, 1
      // Predicated region
      $region13: #{_lambda_.21} parent=11 // pred_check
        %p126 = pneg %p53
      $region14: #{_lambda_.21} parent=11 // pred_check_branch
        %128 = sbr.rel (%p126) target = $region16
      $region15: #{_lambda_.21} parent=11 // pred_region
        %s129 = smul.u32 2, %s19
        %p130 = scmp.lt.s32.totalorder %s129, 1
        %s131 = scalar_select %p130, %s129, 1
        %s132 = smul.addr %s131, 4
        %s133 = scalar_lea.vmem %s0, %s132
        %s134 = smul.u32 2, %s19
      $region16: #{_lambda_.21} parent=11 // pred_fallthru
        _
    $region12: #{_lambda_.21} parent=5 // pred_fallthru
      _
    %p135 = scmp.lt.s32.totalorder %s8, 2
    // Predicated region
    $region17: #{_lambda_.21} parent=5 // pred_check
      %p136 = pneg %p135
    $region18: #{_lambda_.21} parent=5 // pred_check_branch
      %138 = sbr.rel (%p136) target = $region20
    $region19: #{_lambda_.21} parent=5 // pred_region
      // Predicated region
      $region21: #{_lambda_.21} parent=19 // pred_check
        %p139 = pneg %p75
      $region22: #{_lambda_.21} parent=19 // pred_check_branch
        %141 = sbr.rel (%p139) target = $region24
      $region23: #{_lambda_.21} parent=19 // pred_region
        %p142 = scmp.lt.s32.totalorder %s15, 1
        %s143 = scalar_select %p142, %s15, 1
        %p144 = scmp.lt.s32.totalorder %s17, 0
        %s145 = scalar_select %p144, %s17, 0
        %s146 = smul.addr %s143, 16
        %s147 = sadd.s32 %s145, %s146
        %s148 = smul.addr %s147, 4
        %s149 = scalar_lea.vmem %s1, %s148
      $region24: #{_lambda_.21} parent=19 // pred_fallthru
        _
    $region20: #{_lambda_.21} parent=5 // pred_fallthru
      _
    %p150 = scmp.le.s32.totalorder 1, %s8
    %p151 = scmp.lt.s32.totalorder %s8, 3
    %p152 = pnand %p150, %p151
    %p153 = pneg %p152
    // Predicated region
    $region25: #{_lambda_.21} parent=5 // pred_check
      _
    $region26: #{_lambda_.21} parent=5 // pred_check_branch
      %155 = sbr.rel (%p152) target = $region28
    $region27: #{_lambda_.21} parent=5 // pred_region
      %s156 = ssub.s32 %s8, 1
      %s157 = smul.u32 2, %s19
      %p158 = scmp.lt.s32.totalorder %s157, 1
      %s159 = scalar_select %p158, %s157, 1
      %s160 = smul.addr %s159, 4
      %s161 = scalar_lea.vmem %s0, %s160
      %p162 = pneg %p53
      %p163 = pneg %p50
      %p164 = scmp.lt.s32.totalorder %s18, 1
      %s165 = scalar_select %p164, %s18, 1
      %p166 = scmp.lt.s32.totalorder %s20, 0
      %s167 = scalar_select %p166, %s20, 0
      %s168 = smul.addr %s165, 16
      %s169 = sadd.s32 %s167, %s168
      %s170 = smul.addr %s169, 4
      %s171 = scalar_lea.vmem %s1, %s170
      %p172 = pneg %p81
      %p173 = pneg %p78
      %p174 = pneg %p111
      %p175 = pneg %p108
      %s176 = smul.u32 2, %s19
      %p177 = scmp.lt.s32.totalorder %s18, 1
      %s178 = scalar_select %p177, %s18, 1
      %p179 = scmp.lt.s32.totalorder %s176, 1
      %s180 = scalar_select %p179, %s176, 1
      %p181 = scmp.lt.s32.totalorder %s20, 0
      %s182 = scalar_select %p181, %s20, 0
      %s183 = sadd.s32 %s182, %s180
      %s184 = smul.addr %s178, 2
      %s185 = sadd.s32 %s183, %s184
      %s186 = smul.addr %s185, 8
      %s187 = scalar_lea.vmem %s2, %s186
      %s188 = smul.u32 2, %s19
      %p189 = scmp.lt.s32.totalorder %s188, 1
      %s190 = scalar_select %p189, %s188, 1
      %s191 = smul.addr %s190, 4
      %s192 = scalar_lea.vmem %s0, %s191
      %s193 = smul.u32 2, %s19
      %p194 = scmp.lt.s32.totalorder %s18, 1
      %s195 = scalar_select %p194, %s18, 1
      %p196 = scmp.lt.s32.totalorder %s20, 0
      %s197 = scalar_select %p196, %s20, 0
      %s198 = smul.addr %s195, 16
      %s199 = sadd.s32 %s197, %s198
      %s200 = smul.addr %s199, 4
      %s201 = scalar_lea.vmem %s1, %s200
      %s202 = smul.u32 2, %s19
      %p203 = scmp.lt.s32.totalorder %s18, 1
      %s204 = scalar_select %p203, %s18, 1
      %p205 = scmp.lt.s32.totalorder %s202, 1
      %s206 = scalar_select %p205, %s202, 1
      %p207 = scmp.lt.s32.totalorder %s20, 0
      %s208 = scalar_select %p207, %s20, 0
      %s209 = sadd.s32 %s208, %s206
      %s210 = smul.addr %s204, 2
      %s211 = sadd.s32 %s209, %s210
      %s212 = smul.addr %s211, 8
      %s213 = scalar_lea.vmem %s2, %s212
      %s214 = smul.u32 2, %s19
      %v216 = vld [vmem:[%s192] sm:$0xf]
      %v217 = vld [vmem:[%s192 + $0x4] sm:$0xf]
      %v218 = vld [vmem:[%s201] sm:$0xf]
      %v219 = vld [vmem:[%s201 + $0x4] sm:$0xf]
      %v220 = vld [vmem:[%s201 + $0x8] sm:$0xf]
      %v221 = vld [vmem:[%s201 + $0xc] sm:$0xf]
      %v222 = vld [vmem:[%s201 + $0x10] sm:$0xf]
      %v223 = vld [vmem:[%s201 + $0x14] sm:$0xf]
      %v224 = vld [vmem:[%s201 + $0x18] sm:$0xf]
      %v225 = vld [vmem:[%s201 + $0x1c] sm:$0xf]
      %v226 = vld [vmem:[%s201 + $0x20] sm:$0xf]
      %v227 = vld [vmem:[%s201 + $0x24] sm:$0xf]
      %v228 = vld [vmem:[%s201 + $0x28] sm:$0xf]
      %v229 = vld [vmem:[%s201 + $0x2c] sm:$0xf]
      %v230 = vld [vmem:[%s201 + $0x30] sm:$0xf]
      %v231 = vld [vmem:[%s201 + $0x34] sm:$0xf]
      %v232 = vld [vmem:[%s201 + $0x38] sm:$0xf]
      %v233 = vld [vmem:[%s201 + $0x3c] sm:$0xf]
      %v236 = vunpack.c.l.b16 %v216
      %v237 = vunpack.c.l.b16 %v217
      %v238 = vpack.c.b16 %v237, %v236
      %v256 = vunpack.c.l.b16 %v218
      %v257 = vunpack.c.l.b16 %v219
      %v258 = vunpack.c.l.b16 %v220
      %v259 = vunpack.c.l.b16 %v221
      %v260 = vunpack.c.l.b16 %v222
      %v261 = vunpack.c.l.b16 %v223
      %v262 = vunpack.c.l.b16 %v224
      %v263 = vunpack.c.l.b16 %v225
      %v264 = vunpack.c.l.b16 %v226
      %v265 = vunpack.c.l.b16 %v227
      %v266 = vunpack.c.l.b16 %v228
      %v267 = vunpack.c.l.b16 %v229
      %v268 = vunpack.c.l.b16 %v230
      %v269 = vunpack.c.l.b16 %v231
      %v270 = vunpack.c.l.b16 %v232
      %v271 = vunpack.c.l.b16 %v233
      %v272 = vpack.c.b16 %v257, %v256
      %v273 = vpack.c.b16 %v259, %v258
      %v274 = vpack.c.b16 %v261, %v260
      %v275 = vpack.c.b16 %v263, %v262
      %v276 = vpack.c.b16 %v265, %v264
      %v277 = vpack.c.b16 %v267, %v266
      %v278 = vpack.c.b16 %v269, %v268
      %v279 = vpack.c.b16 %v271, %v270
      %288 = vmatprep.subr.bf16.mxu0 0
      %289 = vmatpush1.bf16.msra.mxu0 %v272
      %290 = vmatprep.subr.bf16.mxu0 0
      %291 = vmatpush1.bf16.msra.mxu0 %v273
      %292 = vmatprep.subr.bf16.mxu0 0
      %293 = vmatpush1.bf16.msra.mxu0 %v274
      %294 = vmatprep.subr.bf16.mxu0 0
      %295 = vmatpush1.bf16.msra.mxu0 %v275
      %296 = vmatprep.subr.bf16.mxu0 0
      %297 = vmatpush1.bf16.msra.mxu0 %v276
      %298 = vmatprep.subr.bf16.mxu0 0
      %299 = vmatpush1.bf16.msra.mxu0 %v277
      %300 = vmatprep.subr.bf16.mxu0 0
      %301 = vmatpush1.bf16.msra.mxu0 %v278
      %302 = vmatprep.subr.bf16.mxu0 0
      %303 = vmatpush1.bf16.msra.mxu0 %v279
      %304 = vmatprep.subr.bf16.mxu0 0
      %305 = vmatpush1.bf16.msra.mxu0 0
      %306 = vmatprep.subr.bf16.mxu0 0
      %307 = vmatpush1.bf16.msra.mxu0 0
      %308 = vmatprep.subr.bf16.mxu0 0
      %309 = vmatpush1.bf16.msra.mxu0 0
      %310 = vmatprep.subr.bf16.mxu0 0
      %311 = vmatpush1.bf16.msra.mxu0 0
      %312 = vmatprep.subr.bf16.mxu0 0
      %313 = vmatpush1.bf16.msra.mxu0 0
      %314 = vmatprep.subr.bf16.mxu0 0
      %315 = vmatpush1.bf16.msra.mxu0 0
      %316 = vmatprep.subr.bf16.mxu0 0
      %317 = vmatpush1.bf16.msra.mxu0 0
      %318 = vmatprep.subr.bf16.mxu0 0
      %319 = vmatpush1.bf16.msra.mxu0 0
      %320 = vmatprep.mubr.bf16.mxu0 0
      %321 = vmatmul.mubr.bf16.gmra.mrb[0].mxu0 %v238
      %v322 = vpop.f32.mrb[0].mxu0
      %v323 = vadd.f32 0.0, %v322
      %v324 = vpop.f32.mrb[0].mxu0
      %v325 = vpop.f32.mrb[0].mxu0
      %v326 = vadd.f32 0.0, %v325
      %v327 = vpop.f32.mrb[0].mxu0
      %328 = vdwg.mxu0
      %vm329 = vcmask 523264
      %330 = vst.msk [vmem:[%s213] sm:$0xff] %vm329, %v323
      %331 = vst.msk [vmem:[%s213 + $0x8] sm:$0xff] %vm329, %v326
      %s332 = smul.u32 2, %s19
      %p333 = scmp.lt.s32.totalorder %s18, 1
      %s334 = scalar_select %p333, %s18, 1
      %p335 = scmp.lt.s32.totalorder %s332, 1
      %s336 = scalar_select %p335, %s332, 1
      %p337 = scmp.lt.s32.totalorder %s20, 0
      %s338 = scalar_select %p337, %s20, 0
      %s339 = sadd.s32 %s338, %s336
      %s340 = smul.addr %s334, 2
      %s341 = sadd.s32 %s339, %s340
      %s342 = smul.addr %s341, 8
      %s343 = scalar_lea.vmem %s2, %s342
      // Predicated region
      $region29: #{_lambda_.21} parent=27 // pred_check
        %p344 = pneg %p108
      $region30: #{_lambda_.21} parent=27 // pred_check_branch
        %346 = sbr.rel (%p344) target = $region32
      $region31: #{_lambda_.21} parent=27 // pred_region
        %s347 = smul.u32 2, %s19
      $region32: #{_lambda_.21} parent=27 // pred_fallthru
        _
    $region28: #{_lambda_.21} parent=5 // pred_fallthru
      _
    %p348 = scmp.le.s32.totalorder 2, %s8
    // Predicated region
    $region33: #{_lambda_.21} parent=5 // pred_check
      %p349 = pneg %p348
    $region34: #{_lambda_.21} parent=5 // pred_check_branch
      %351 = sbr.rel (%p349) target = $region36
    $region35: #{_lambda_.21} parent=5 // pred_region
      %s352 = ssub.s32 %s8, 2
      // Predicated region
      $region37: #{_lambda_.21} parent=35 // pred_check
        %p353 = pneg %p114
      $region38: #{_lambda_.21} parent=35 // pred_check_branch
        %355 = sbr.rel (%p353) target = $region40
      $region39: #{_lambda_.21} parent=35 // pred_region
        %s356 = smul.u32 2, %s22
        %p357 = scmp.lt.s32.totalorder %s21, 1
        %s358 = scalar_select %p357, %s21, 1
        %p359 = scmp.lt.s32.totalorder %s356, 1
        %s360 = scalar_select %p359, %s356, 1
        %p361 = scmp.lt.s32.totalorder %s23, 0
        %s362 = scalar_select %p361, %s23, 0
        %s363 = sadd.s32 %s362, %s360
        %s364 = smul.addr %s358, 2
        %s365 = sadd.s32 %s363, %s364
        %s366 = smul.addr %s365, 8
        %s367 = scalar_lea.vmem %s2, %s366
      $region40: #{_lambda_.21} parent=35 // pred_fallthru
        _
    $region36: #{_lambda_.21} parent=5 // pred_fallthru
      _
  $region6: #{_lambda_.21} parent=0 // loop_footer
    %s12 = sadd.s32 1, %s8
  $region7: #{_lambda_.21} parent=0 // loop_footer_branch
    %7 = sbr.rel target = $region3
  $region8: #{_lambda_.21} parent=0 // loop_exit
    _

// kernel: _lambda_.22
$region0: #{_lambda_.22}
  #allocation0 [shape = 'u32[]', space=smem, size = 0x4, offset = 0x4, fixed_abs, tag = 'smem constant byte address 0x4 - core index']
  #allocation1 [shape = 'u32[144,128]{1,0:T(1,128)}', space=vmem, size = 0x12000, scoped, tag = 'internal scratch']
  %s0 = inlined_call_operand.vmem [shape: f32[2,16,64], index: 0, kind: input, shape index: {}]
  %s1 = inlined_call_operand.vmem [shape: f32[16,1], index: 1, kind: input, shape index: {}]
  %s2 = inlined_call_operand.vmem [shape: f32[16,1], index: 2, kind: input, shape index: {}]
  %s3 = inlined_call_operand.vmem [shape: f32[2,16,64], index: 3, kind: output, shape index: {}]
  %s4 = sld [smem:[#allocation0]]
  $region45: #{_lambda_.22} parent=0
    _
  %s6 = ssub.s32 1, %s4
  %s7 = scalar_select 0, %s6, %s4
  loop: start=0, step=1, limit=6
  $region2: #{_lambda_.22} parent=0 // loop_pre_header
    _
  $region3: #{_lambda_.22} parent=0 // loop_header
    %s9 = sphi 0, %s13
    %p10 = scmp.ge.s32.totalorder %s9, 6
    %s16 = sphi 0, %s28
    %s17 = sphi 0, %s24
    %s18 = sphi 0, %s16
    %s19 = sphi 0, %s17
    %s20 = sphi 0, %s18
    %s21 = sphi 0, %s19
    %s33 = sphi 0, %s35
    %s36 = sphi 0, %s33
    %s37 = sphi 0, %s36
    %s53 = sphi 0, %s37
    %s59 = sphi 0, %s61
    %s62 = sphi 0, %s59
    %s63 = sphi 0, %s62
    %s79 = sphi 0, %s63
    %s85 = sphi 0, %s87
    %s88 = sphi 0, %s85
    %s89 = sphi 0, %s88
    %s105 = sphi 0, %s89
    %s113 = sphi 0, %s115
    %s116 = sphi 0, %s113
    %s117 = sphi 0, %s116
    %s133 = sphi 0, %s117
  $region4: #{_lambda_.22} parent=0 // loop_header_branch
    %12 = sbr.rel (%p10) target = $region8
  $region5: #{_lambda_.22} parent=0 // loop_body
    %s14 = ssub.s32 %s9, 1
    %s15 = ssub.s32 %s9, 2
    %s22 = sadd.s32 1, %s17
    %p23 = scmp.ge.s32.totalorder %s22, 2
    %s24 = scalar_select %p23, 0, %s22
    %s25 = sadd.s32 1, %s16
    %s26 = scalar_select %p23, %s25, %s16
    %p27 = scmp.ge.s32.totalorder %s26, 2
    %s28 = scalar_select %p27, 0, %s26
    %s29 = ssub.s32 %s16, %s28
    %s30 = ssub.s32 %s17, %s24
    %s31 = sor.u32 %s29, %s30
    %p32 = scmp.eq.s32.totalorder %s31, 0
    %s34 = sadd.s32 %s33, 1
    %s35 = scalar_select %p32, %s33, %s34
    %p38 = pneg %p32
    %p39 = scmp.eq.s32.totalorder %s9, 3
    %p40 = por %p38, %p39
    %p41 = scmp.ne.s32.totalorder %s33, %s36
    %p42 = scmp.eq.s32.totalorder %s9, 0
    %p43 = por %p41, %p42
    %p44 = scmp.ne.s32.totalorder %s33, %s36
    %p45 = scmp.eq.s32.totalorder %s14, 3
    %p46 = por %p44, %p45
    %p47 = scmp.ne.s32.totalorder %s36, %s37
    %p48 = scmp.eq.s32.totalorder %s14, 0
    %p49 = por %p47, %p48
    %p50 = scmp.ne.s32.totalorder %s36, %s37
    %p51 = scmp.eq.s32.totalorder %s15, 3
    %p52 = por %p50, %p51
    %p54 = scmp.ne.s32.totalorder %s37, %s53
    %p55 = scmp.eq.s32.totalorder %s15, 0
    %p56 = por %p54, %p55
    %s57 = ssub.s32 %s17, %s24
    %p58 = scmp.eq.s32.totalorder %s57, 0
    %s60 = sadd.s32 %s59, 1
    %s61 = scalar_select %p58, %s59, %s60
    %p64 = pneg %p58
    %p65 = scmp.eq.s32.totalorder %s9, 3
    %p66 = por %p64, %p65
    %p67 = scmp.ne.s32.totalorder %s59, %s62
    %p68 = scmp.eq.s32.totalorder %s9, 0
    %p69 = por %p67, %p68
    %p70 = scmp.ne.s32.totalorder %s59, %s62
    %p71 = scmp.eq.s32.totalorder %s14, 3
    %p72 = por %p70, %p71
    %p73 = scmp.ne.s32.totalorder %s62, %s63
    %p74 = scmp.eq.s32.totalorder %s14, 0
    %p75 = por %p73, %p74
    %p76 = scmp.ne.s32.totalorder %s62, %s63
    %p77 = scmp.eq.s32.totalorder %s15, 3
    %p78 = por %p76, %p77
    %p80 = scmp.ne.s32.totalorder %s63, %s79
    %p81 = scmp.eq.s32.totalorder %s15, 0
    %p82 = por %p80, %p81
    %s83 = ssub.s32 %s17, %s24
    %p84 = scmp.eq.s32.totalorder %s83, 0
    %s86 = sadd.s32 %s85, 1
    %s87 = scalar_select %p84, %s85, %s86
    %p90 = pneg %p84
    %p91 = scmp.eq.s32.totalorder %s9, 3
    %p92 = por %p90, %p91
    %p93 = scmp.ne.s32.totalorder %s85, %s88
    %p94 = scmp.eq.s32.totalorder %s9, 0
    %p95 = por %p93, %p94
    %p96 = scmp.ne.s32.totalorder %s85, %s88
    %p97 = scmp.eq.s32.totalorder %s14, 3
    %p98 = por %p96, %p97
    %p99 = scmp.ne.s32.totalorder %s88, %s89
    %p100 = scmp.eq.s32.totalorder %s14, 0
    %p101 = por %p99, %p100
    %p102 = scmp.ne.s32.totalorder %s88, %s89
    %p103 = scmp.eq.s32.totalorder %s15, 3
    %p104 = por %p102, %p103
    %p106 = scmp.ne.s32.totalorder %s89, %s105
    %p107 = scmp.eq.s32.totalorder %s15, 0
    %p108 = por %p106, %p107
    %s109 = ssub.s32 %s16, %s28
    %s110 = ssub.s32 %s17, %s24
    %s111 = sor.u32 %s109, %s110
    %p112 = scmp.eq.s32.totalorder %s111, 0
    %s114 = sadd.s32 %s113, 1
    %s115 = scalar_select %p112, %s113, %s114
    %p118 = pneg %p112
    %p119 = scmp.eq.s32.totalorder %s9, 3
    %p120 = por %p118, %p119
    %p121 = scmp.ne.s32.totalorder %s113, %s116
    %p122 = scmp.eq.s32.totalorder %s9, 0
    %p123 = por %p121, %p122
    %p124 = scmp.ne.s32.totalorder %s113, %s116
    %p125 = scmp.eq.s32.totalorder %s14, 3
    %p126 = por %p124, %p125
    %p127 = scmp.ne.s32.totalorder %s116, %s117
    %p128 = scmp.eq.s32.totalorder %s14, 0
    %p129 = por %p127, %p128
    %p130 = scmp.ne.s32.totalorder %s116, %s117
    %p131 = scmp.eq.s32.totalorder %s15, 3
    %p132 = por %p130, %p131
    %p134 = scmp.ne.s32.totalorder %s117, %s133
    %p135 = scmp.eq.s32.totalorder %s15, 0
    %p136 = por %p134, %p135
    %p137 = scmp.le.s32.totalorder 1, %s9
    %p138 = scmp.lt.s32.totalorder %s9, 5
    %p139 = pnand %p137, %p138
    %p140 = pneg %p139
    // Predicated region
    $region9: #{_lambda_.22} parent=5 // pred_check
      _
    $region10: #{_lambda_.22} parent=5 // pred_check_branch
      %142 = sbr.rel (%p139) target = $region12
    $region11: #{_lambda_.22} parent=5 // pred_region
      %s143 = ssub.s32 %s9, 1
    $region12: #{_lambda_.22} parent=5 // pred_fallthru
      _
    %p144 = scmp.lt.s32.totalorder %s9, 4
    // Predicated region
    $region13: #{_lambda_.22} parent=5 // pred_check
      %p145 = pneg %p144
    $region14: #{_lambda_.22} parent=5 // pred_check_branch
      %147 = sbr.rel (%p145) target = $region16
    $region15: #{_lambda_.22} parent=5 // pred_region
      // Predicated region
      $region17: #{_lambda_.22} parent=15 // pred_check
        %p148 = pneg %p43
      $region18: #{_lambda_.22} parent=15 // pred_check_branch
        %150 = sbr.rel (%p148) target = $region20
      $region19: #{_lambda_.22} parent=15 // pred_region
        %p151 = scmp.lt.s32.totalorder %s16, 1
        %s152 = scalar_select %p151, %s16, 1
        %p153 = scmp.lt.s32.totalorder %s17, 1
        %s154 = scalar_select %p153, %s17, 1
        %s155 = smul.addr %s152, 2
        %s156 = sadd.s32 %s154, %s155
        %s157 = smul.addr %s156, 8
        %s158 = scalar_lea.vmem %s0, %s157
      $region20: #{_lambda_.22} parent=15 // pred_fallthru
        _
      // Predicated region
      $region21: #{_lambda_.22} parent=15 // pred_check
        %p159 = pneg %p69
      $region22: #{_lambda_.22} parent=15 // pred_check_branch
        %161 = sbr.rel (%p159) target = $region24
      $region23: #{_lambda_.22} parent=15 // pred_region
        %p162 = scmp.lt.s32.totalorder %s17, 1
        %s163 = scalar_select %p162, %s17, 1
        %s164 = smul.addr %s163, 8
        %s165 = scalar_lea.vmem %s1, %s164
      $region24: #{_lambda_.22} parent=15 // pred_fallthru
        _
      // Predicated region
      $region25: #{_lambda_.22} parent=15 // pred_check
        %p166 = pneg %p95
      $region26: #{_lambda_.22} parent=15 // pred_check_branch
        %168 = sbr.rel (%p166) target = $region28
      $region27: #{_lambda_.22} parent=15 // pred_region
        %p169 = scmp.lt.s32.totalorder %s17, 1
        %s170 = scalar_select %p169, %s17, 1
        %s171 = smul.addr %s170, 8
        %s172 = scalar_lea.vmem %s2, %s171
      $region28: #{_lambda_.22} parent=15 // pred_fallthru
        _
    $region16: #{_lambda_.22} parent=5 // pred_fallthru
      _
    %p173 = scmp.le.s32.totalorder 1, %s9
    %p174 = scmp.lt.s32.totalorder %s9, 5
    %p175 = pnand %p173, %p174
    %p176 = pneg %p175
    // Predicated region
    $region29: #{_lambda_.22} parent=5 // pred_check
      _
    $region30: #{_lambda_.22} parent=5 // pred_check_branch
      %178 = sbr.rel (%p175) target = $region32
    $region31: #{_lambda_.22} parent=5 // pred_region
      %s179 = ssub.s32 %s9, 1
      %p180 = scmp.lt.s32.totalorder %s18, 1
      %s181 = scalar_select %p180, %s18, 1
      %p182 = scmp.lt.s32.totalorder %s19, 1
      %s183 = scalar_select %p182, %s19, 1
      %s184 = smul.addr %s181, 2
      %s185 = sadd.s32 %s183, %s184
      %s186 = smul.addr %s185, 8
      %s187 = scalar_lea.vmem %s0, %s186
      %p188 = pneg %p49
      %p189 = pneg %p46
      %p190 = scmp.lt.s32.totalorder %s19, 1
      %s191 = scalar_select %p190, %s19, 1
      %s192 = smul.addr %s191, 8
      %s193 = scalar_lea.vmem %s1, %s192
      %p194 = pneg %p75
      %p195 = pneg %p72
      %p196 = scmp.lt.s32.totalorder %s19, 1
      %s197 = scalar_select %p196, %s19, 1
      %s198 = smul.addr %s197, 8
      %s199 = scalar_lea.vmem %s2, %s198
      %p200 = pneg %p101
      %p201 = pneg %p98
      %p202 = pneg %p129
      %p203 = pneg %p126
      %p204 = scmp.lt.s32.totalorder %s18, 1
      %s205 = scalar_select %p204, %s18, 1
      %p206 = scmp.lt.s32.totalorder %s19, 1
      %s207 = scalar_select %p206, %s19, 1
      %s208 = smul.addr %s205, 2
      %s209 = sadd.s32 %s207, %s208
      %s210 = smul.addr %s209, 8
      %s211 = scalar_lea.vmem %s3, %s210
      %p212 = scmp.lt.s32.totalorder %s18, 1
      %s213 = scalar_select %p212, %s18, 1
      %p214 = scmp.lt.s32.totalorder %s19, 1
      %s215 = scalar_select %p214, %s19, 1
      %s216 = smul.addr %s213, 2
      %s217 = sadd.s32 %s215, %s216
      %s218 = smul.addr %s217, 8
      %s219 = scalar_lea.vmem %s0, %s218
      %p220 = scmp.lt.s32.totalorder %s19, 1
      %s221 = scalar_select %p220, %s19, 1
      %s222 = smul.addr %s221, 8
      %s223 = scalar_lea.vmem %s1, %s222
      %p224 = scmp.lt.s32.totalorder %s19, 1
      %s225 = scalar_select %p224, %s19, 1
      %s226 = smul.addr %s225, 8
      %s227 = scalar_lea.vmem %s2, %s226
      %p228 = scmp.lt.s32.totalorder %s18, 1
      %s229 = scalar_select %p228, %s18, 1
      %p230 = scmp.lt.s32.totalorder %s19, 1
      %s231 = scalar_select %p230, %s19, 1
      %s232 = smul.addr %s229, 2
      %s233 = sadd.s32 %s231, %s232
      %s234 = smul.addr %s233, 8
      %s235 = scalar_lea.vmem %s3, %s234
      %v236 = vld [vmem:[%s219] sm:$0xff]
      %v237 = vld [vmem:[%s223] sm:$0xff]
      %v238 = vld [vmem:[%s227] sm:$0xff]
      %vm239 = vcmask 523264
      %v240 = vsel %vm239, %v236, 0.0
      %241 = vadd.xlane.f32.xlu0 %v240
      %v242 = vpop.xlane.xlu0 %241
      %v243 = vrcp.pop 64.0
      %v244 = vmul.f32 %v242, %v243
      %v245 = vsub.f32 %v236, %v244
      %v246 = vmul.f32 %v245, %v245
      %v247 = vsel %vm239, %v246, 0.0
      %248 = vadd.xlane.f32.xlu0 %v247
      %v249 = vpop.xlane.xlu0 %248
      %v250 = vmul.f32 %v249, %v243
      %v251 = vadd.f32 %v250, 1e-05
      %v252 = vrsqrt.pop %v251
      %v253 = vmul.f32 %v245, %v252
      %255 = vset.pattern.permute.xlu0 0
      %256 = vperm.xlu0 %255, %v237
      %v257 = vpop.permute.xlu0 %256
      %v259 = vmul.f32 %v253, %v257
      %261 = vset.pattern.permute.xlu0 0
      %262 = vperm.xlu0 %261, %v238
      %v263 = vpop.permute.xlu0 %262
      %v265 = vadd.f32 %v259, %v263
      %v266 = vmax.f32 %v265, 0.0
      %267 = vst.msk [vmem:[%s235] sm:$0xff] %vm239, %v266
      %p268 = scmp.lt.s32.totalorder %s18, 1
      %s269 = scalar_select %p268, %s18, 1
      %p270 = scmp.lt.s32.totalorder %s19, 1
      %s271 = scalar_select %p270, %s19, 1
      %s272 = smul.addr %s269, 2
      %s273 = sadd.s32 %s271, %s272
      %s274 = smul.addr %s273, 8
      %s275 = scalar_lea.vmem %s3, %s274
      // Predicated region
      $region33: #{_lambda_.22} parent=31 // pred_check
        %p276 = pneg %p126
      $region34: #{_lambda_.22} parent=31 // pred_check_branch
        %278 = sbr.rel (%p276) target = $region36
      $region35: #{_lambda_.22} parent=31 // pred_region
        _
      $region36: #{_lambda_.22} parent=31 // pred_fallthru
        _
    $region32: #{_lambda_.22} parent=5 // pred_fallthru
      _
    %p279 = scmp.le.s32.totalorder 2, %s9
    // Predicated region
    $region37: #{_lambda_.22} parent=5 // pred_check
      %p280 = pneg %p279
    $region38: #{_lambda_.22} parent=5 // pred_check_branch
      %282 = sbr.rel (%p280) target = $region40
    $region39: #{_lambda_.22} parent=5 // pred_region
      %s283 = ssub.s32 %s9, 2
      // Predicated region
      $region41: #{_lambda_.22} parent=39 // pred_check
        %p284 = pneg %p132
      $region42: #{_lambda_.22} parent=39 // pred_check_branch
        %286 = sbr.rel (%p284) target = $region44
      $region43: #{_lambda_.22} parent=39 // pred_region
        %p287 = scmp.lt.s32.totalorder %s20, 1
        %s288 = scalar_select %p287, %s20, 1
        %p289 = scmp.lt.s32.totalorder %s21, 1
        %s290 = scalar_select %p289, %s21, 1
        %s291 = smul.addr %s288, 2
        %s292 = sadd.s32 %s290, %s291
        %s293 = smul.addr %s292, 8
        %s294 = scalar_lea.vmem %s3, %s293
      $region44: #{_lambda_.22} parent=39 // pred_fallthru
        _
    $region40: #{_lambda_.22} parent=5 // pred_fallthru
      _
  $region6: #{_lambda_.22} parent=0 // loop_footer
    %s13 = sadd.s32 1, %s9
  $region7: #{_lambda_.22} parent=0 // loop_footer_branch
    %8 = sbr.rel target = $region3
  $region8: #{_lambda_.22} parent=0 // loop_exit
    _

// kernel: _lambda_.24
$region0: #{_lambda_.24}
  #allocation0 [shape = 'u32[]', space=smem, size = 0x4, offset = 0x4, fixed_abs, tag = 'smem constant byte address 0x4 - core index']
  #allocation1 [shape = 'u32[144,128]{1,0:T(1,128)}', space=vmem, size = 0x12000, scoped, tag = 'internal scratch']
  %s0 = inlined_call_operand.vmem [shape: f32[2,32,16], index: 0, kind: input, shape index: {}]
  %s1 = inlined_call_operand.vmem [shape: f32[32,1], index: 1, kind: input, shape index: {}]
  %s2 = inlined_call_operand.vmem [shape: f32[32,1], index: 2, kind: input, shape index: {}]
  %s3 = inlined_call_operand.vmem [shape: f32[2,32,16], index: 3, kind: output, shape index: {}]
  %s4 = sld [smem:[#allocation0]]
  $region45: #{_lambda_.24} parent=0
    _
  %s6 = ssub.s32 1, %s4
  %s7 = scalar_select 0, %s6, %s4
  loop: start=0, step=1, limit=10
  $region2: #{_lambda_.24} parent=0 // loop_pre_header
    _
  $region3: #{_lambda_.24} parent=0 // loop_header
    %s9 = sphi 0, %s13
    %p10 = scmp.ge.s32.totalorder %s9, 10
    %s16 = sphi 0, %s28
    %s17 = sphi 0, %s24
    %s18 = sphi 0, %s16
    %s19 = sphi 0, %s17
    %s20 = sphi 0, %s18
    %s21 = sphi 0, %s19
    %s33 = sphi 0, %s35
    %s36 = sphi 0, %s33
    %s37 = sphi 0, %s36
    %s53 = sphi 0, %s37
    %s59 = sphi 0, %s61
    %s62 = sphi 0, %s59
    %s63 = sphi 0, %s62
    %s79 = sphi 0, %s63
    %s85 = sphi 0, %s87
    %s88 = sphi 0, %s85
    %s89 = sphi 0, %s88
    %s105 = sphi 0, %s89
    %s113 = sphi 0, %s115
    %s116 = sphi 0, %s113
    %s117 = sphi 0, %s116
    %s133 = sphi 0, %s117
  $region4: #{_lambda_.24} parent=0 // loop_header_branch
    %12 = sbr.rel (%p10) target = $region8
  $region5: #{_lambda_.24} parent=0 // loop_body
    %s14 = ssub.s32 %s9, 1
    %s15 = ssub.s32 %s9, 2
    %s22 = sadd.s32 1, %s17
    %p23 = scmp.ge.s32.totalorder %s22, 4
    %s24 = scalar_select %p23, 0, %s22
    %s25 = sadd.s32 1, %s16
    %s26 = scalar_select %p23, %s25, %s16
    %p27 = scmp.ge.s32.totalorder %s26, 2
    %s28 = scalar_select %p27, 0, %s26
    %s29 = ssub.s32 %s16, %s28
    %s30 = ssub.s32 %s17, %s24
    %s31 = sor.u32 %s29, %s30
    %p32 = scmp.eq.s32.totalorder %s31, 0
    %s34 = sadd.s32 %s33, 1
    %s35 = scalar_select %p32, %s33, %s34
    %p38 = pneg %p32
    %p39 = scmp.eq.s32.totalorder %s9, 7
    %p40 = por %p38, %p39
    %p41 = scmp.ne.s32.totalorder %s33, %s36
    %p42 = scmp.eq.s32.totalorder %s9, 0
    %p43 = por %p41, %p42
    %p44 = scmp.ne.s32.totalorder %s33, %s36
    %p45 = scmp.eq.s32.totalorder %s14, 7
    %p46 = por %p44, %p45
    %p47 = scmp.ne.s32.totalorder %s36, %s37
    %p48 = scmp.eq.s32.totalorder %s14, 0
    %p49 = por %p47, %p48
    %p50 = scmp.ne.s32.totalorder %s36, %s37
    %p51 = scmp.eq.s32.totalorder %s15, 7
    %p52 = por %p50, %p51
    %p54 = scmp.ne.s32.totalorder %s37, %s53
    %p55 = scmp.eq.s32.totalorder %s15, 0
    %p56 = por %p54, %p55
    %s57 = ssub.s32 %s17, %s24
    %p58 = scmp.eq.s32.totalorder %s57, 0
    %s60 = sadd.s32 %s59, 1
    %s61 = scalar_select %p58, %s59, %s60
    %p64 = pneg %p58
    %p65 = scmp.eq.s32.totalorder %s9, 7
    %p66 = por %p64, %p65
    %p67 = scmp.ne.s32.totalorder %s59, %s62
    %p68 = scmp.eq.s32.totalorder %s9, 0
    %p69 = por %p67, %p68
    %p70 = scmp.ne.s32.totalorder %s59, %s62
    %p71 = scmp.eq.s32.totalorder %s14, 7
    %p72 = por %p70, %p71
    %p73 = scmp.ne.s32.totalorder %s62, %s63
    %p74 = scmp.eq.s32.totalorder %s14, 0
    %p75 = por %p73, %p74
    %p76 = scmp.ne.s32.totalorder %s62, %s63
    %p77 = scmp.eq.s32.totalorder %s15, 7
    %p78 = por %p76, %p77
    %p80 = scmp.ne.s32.totalorder %s63, %s79
    %p81 = scmp.eq.s32.totalorder %s15, 0
    %p82 = por %p80, %p81
    %s83 = ssub.s32 %s17, %s24
    %p84 = scmp.eq.s32.totalorder %s83, 0
    %s86 = sadd.s32 %s85, 1
    %s87 = scalar_select %p84, %s85, %s86
    %p90 = pneg %p84
    %p91 = scmp.eq.s32.totalorder %s9, 7
    %p92 = por %p90, %p91
    %p93 = scmp.ne.s32.totalorder %s85, %s88
    %p94 = scmp.eq.s32.totalorder %s9, 0
    %p95 = por %p93, %p94
    %p96 = scmp.ne.s32.totalorder %s85, %s88
    %p97 = scmp.eq.s32.totalorder %s14, 7
    %p98 = por %p96, %p97
    %p99 = scmp.ne.s32.totalorder %s88, %s89
    %p100 = scmp.eq.s32.totalorder %s14, 0
    %p101 = por %p99, %p100
    %p102 = scmp.ne.s32.totalorder %s88, %s89
    %p103 = scmp.eq.s32.totalorder %s15, 7
    %p104 = por %p102, %p103
    %p106 = scmp.ne.s32.totalorder %s89, %s105
    %p107 = scmp.eq.s32.totalorder %s15, 0
    %p108 = por %p106, %p107
    %s109 = ssub.s32 %s16, %s28
    %s110 = ssub.s32 %s17, %s24
    %s111 = sor.u32 %s109, %s110
    %p112 = scmp.eq.s32.totalorder %s111, 0
    %s114 = sadd.s32 %s113, 1
    %s115 = scalar_select %p112, %s113, %s114
    %p118 = pneg %p112
    %p119 = scmp.eq.s32.totalorder %s9, 7
    %p120 = por %p118, %p119
    %p121 = scmp.ne.s32.totalorder %s113, %s116
    %p122 = scmp.eq.s32.totalorder %s9, 0
    %p123 = por %p121, %p122
    %p124 = scmp.ne.s32.totalorder %s113, %s116
    %p125 = scmp.eq.s32.totalorder %s14, 7
    %p126 = por %p124, %p125
    %p127 = scmp.ne.s32.totalorder %s116, %s117
    %p128 = scmp.eq.s32.totalorder %s14, 0
    %p129 = por %p127, %p128
    %p130 = scmp.ne.s32.totalorder %s116, %s117
    %p131 = scmp.eq.s32.totalorder %s15, 7
    %p132 = por %p130, %p131
    %p134 = scmp.ne.s32.totalorder %s117, %s133
    %p135 = scmp.eq.s32.totalorder %s15, 0
    %p136 = por %p134, %p135
    %p137 = scmp.le.s32.totalorder 1, %s9
    %p138 = scmp.lt.s32.totalorder %s9, 9
    %p139 = pnand %p137, %p138
    %p140 = pneg %p139
    // Predicated region
    $region9: #{_lambda_.24} parent=5 // pred_check
      _
    $region10: #{_lambda_.24} parent=5 // pred_check_branch
      %142 = sbr.rel (%p139) target = $region12
    $region11: #{_lambda_.24} parent=5 // pred_region
      %s143 = ssub.s32 %s9, 1
    $region12: #{_lambda_.24} parent=5 // pred_fallthru
      _
    %p144 = scmp.lt.s32.totalorder %s9, 8
    // Predicated region
    $region13: #{_lambda_.24} parent=5 // pred_check
      %p145 = pneg %p144
    $region14: #{_lambda_.24} parent=5 // pred_check_branch
      %147 = sbr.rel (%p145) target = $region16
    $region15: #{_lambda_.24} parent=5 // pred_region
      // Predicated region
      $region17: #{_lambda_.24} parent=15 // pred_check
        %p148 = pneg %p43
      $region18: #{_lambda_.24} parent=15 // pred_check_branch
        %150 = sbr.rel (%p148) target = $region20
      $region19: #{_lambda_.24} parent=15 // pred_region
        %p151 = scmp.lt.s32.totalorder %s16, 1
        %s152 = scalar_select %p151, %s16, 1
        %p153 = scmp.lt.s32.totalorder %s17, 3
        %s154 = scalar_select %p153, %s17, 3
        %s155 = smul.addr %s152, 4
        %s156 = sadd.s32 %s154, %s155
        %s157 = smul.addr %s156, 8
        %s158 = scalar_lea.vmem %s0, %s157
      $region20: #{_lambda_.24} parent=15 // pred_fallthru
        _
      // Predicated region
      $region21: #{_lambda_.24} parent=15 // pred_check
        %p159 = pneg %p69
      $region22: #{_lambda_.24} parent=15 // pred_check_branch
        %161 = sbr.rel (%p159) target = $region24
      $region23: #{_lambda_.24} parent=15 // pred_region
        %p162 = scmp.lt.s32.totalorder %s17, 3
        %s163 = scalar_select %p162, %s17, 3
        %s164 = smul.addr %s163, 8
        %s165 = scalar_lea.vmem %s1, %s164
      $region24: #{_lambda_.24} parent=15 // pred_fallthru
        _
      // Predicated region
      $region25: #{_lambda_.24} parent=15 // pred_check
        %p166 = pneg %p95
      $region26: #{_lambda_.24} parent=15 // pred_check_branch
        %168 = sbr.rel (%p166) target = $region28
      $region27: #{_lambda_.24} parent=15 // pred_region
        %p169 = scmp.lt.s32.totalorder %s17, 3
        %s170 = scalar_select %p169, %s17, 3
        %s171 = smul.addr %s170, 8
        %s172 = scalar_lea.vmem %s2, %s171
      $region28: #{_lambda_.24} parent=15 // pred_fallthru
        _
    $region16: #{_lambda_.24} parent=5 // pred_fallthru
      _
    %p173 = scmp.le.s32.totalorder 1, %s9
    %p174 = scmp.lt.s32.totalorder %s9, 9
    %p175 = pnand %p173, %p174
    %p176 = pneg %p175
    // Predicated region
    $region29: #{_lambda_.24} parent=5 // pred_check
      _
    $region30: #{_lambda_.24} parent=5 // pred_check_branch
      %178 = sbr.rel (%p175) target = $region32
    $region31: #{_lambda_.24} parent=5 // pred_region
      %s179 = ssub.s32 %s9, 1
      %p180 = scmp.lt.s32.totalorder %s18, 1
      %s181 = scalar_select %p180, %s18, 1
      %p182 = scmp.lt.s32.totalorder %s19, 3
      %s183 = scalar_select %p182, %s19, 3
      %s184 = smul.addr %s181, 4
      %s185 = sadd.s32 %s183, %s184
      %s186 = smul.addr %s185, 8
      %s187 = scalar_lea.vmem %s0, %s186
      %p188 = pneg %p49
      %p189 = pneg %p46
      %p190 = scmp.lt.s32.totalorder %s19, 3
      %s191 = scalar_select %p190, %s19, 3
      %s192 = smul.addr %s191, 8
      %s193 = scalar_lea.vmem %s1, %s192
      %p194 = pneg %p75
      %p195 = pneg %p72
      %p196 = scmp.lt.s32.totalorder %s19, 3
      %s197 = scalar_select %p196, %s19, 3
      %s198 = smul.addr %s197, 8
      %s199 = scalar_lea.vmem %s2, %s198
      %p200 = pneg %p101
      %p201 = pneg %p98
      %p202 = pneg %p129
      %p203 = pneg %p126
      %p204 = scmp.lt.s32.totalorder %s18, 1
      %s205 = scalar_select %p204, %s18, 1
      %p206 = scmp.lt.s32.totalorder %s19, 3
      %s207 = scalar_select %p206, %s19, 3
      %s208 = smul.addr %s205, 4
      %s209 = sadd.s32 %s207, %s208
      %s210 = smul.addr %s209, 8
      %s211 = scalar_lea.vmem %s3, %s210
      %p212 = scmp.lt.s32.totalorder %s18, 1
      %s213 = scalar_select %p212, %s18, 1
      %p214 = scmp.lt.s32.totalorder %s19, 3
      %s215 = scalar_select %p214, %s19, 3
      %s216 = smul.addr %s213, 4
      %s217 = sadd.s32 %s215, %s216
      %s218 = smul.addr %s217, 8
      %s219 = scalar_lea.vmem %s0, %s218
      %p220 = scmp.lt.s32.totalorder %s19, 3
      %s221 = scalar_select %p220, %s19, 3
      %s222 = smul.addr %s221, 8
      %s223 = scalar_lea.vmem %s1, %s222
      %p224 = scmp.lt.s32.totalorder %s19, 3
      %s225 = scalar_select %p224, %s19, 3
      %s226 = smul.addr %s225, 8
      %s227 = scalar_lea.vmem %s2, %s226
      %p228 = scmp.lt.s32.totalorder %s18, 1
      %s229 = scalar_select %p228, %s18, 1
      %p230 = scmp.lt.s32.totalorder %s19, 3
      %s231 = scalar_select %p230, %s19, 3
      %s232 = smul.addr %s229, 4
      %s233 = sadd.s32 %s231, %s232
      %s234 = smul.addr %s233, 8
      %s235 = scalar_lea.vmem %s3, %s234
      %v236 = vld [vmem:[%s219] sm:$0xff]
      %v237 = vld [vmem:[%s223] sm:$0xff]
      %v238 = vld [vmem:[%s227] sm:$0xff]
      %vm239 = vcmask 130048
      %v240 = vsel %vm239, %v236, 0.0
      %241 = vadd.xlane.f32.xlu0 %v240
      %v242 = vpop.xlane.xlu0 %241
      %v243 = vrcp.pop 16.0
      %v244 = vmul.f32 %v242, %v243
      %v245 = vsub.f32 %v236, %v244
      %v246 = vmul.f32 %v245, %v245
      %v247 = vsel %vm239, %v246, 0.0
      %248 = vadd.xlane.f32.xlu0 %v247
      %v249 = vpop.xlane.xlu0 %248
      %v250 = vmul.f32 %v249, %v243
      %v251 = vadd.f32 %v250, 1e-05
      %v252 = vrsqrt.pop %v251
      %v253 = vmul.f32 %v245, %v252
      %255 = vset.pattern.permute.xlu0 0
      %256 = vperm.xlu0 %255, %v237
      %v257 = vpop.permute.xlu0 %256
      %v259 = vmul.f32 %v253, %v257
      %261 = vset.pattern.permute.xlu0 0
      %262 = vperm.xlu0 %261, %v238
      %v263 = vpop.permute.xlu0 %262
      %v265 = vadd.f32 %v259, %v263
      %v266 = vmax.f32 %v265, 0.0
      %267 = vst.msk [vmem:[%s235] sm:$0xff] %vm239, %v266
      %p268 = scmp.lt.s32.totalorder %s18, 1
      %s269 = scalar_select %p268, %s18, 1
      %p270 = scmp.lt.s32.totalorder %s19, 3
      %s271 = scalar_select %p270, %s19, 3
      %s272 = smul.addr %s269, 4
      %s273 = sadd.s32 %s271, %s272
      %s274 = smul.addr %s273, 8
      %s275 = scalar_lea.vmem %s3, %s274
      // Predicated region
      $region33: #{_lambda_.24} parent=31 // pred_check
        %p276 = pneg %p126
      $region34: #{_lambda_.24} parent=31 // pred_check_branch
        %278 = sbr.rel (%p276) target = $region36
      $region35: #{_lambda_.24} parent=31 // pred_region
        _
      $region36: #{_lambda_.24} parent=31 // pred_fallthru
        _
    $region32: #{_lambda_.24} parent=5 // pred_fallthru
      _
    %p279 = scmp.le.s32.totalorder 2, %s9
    // Predicated region
    $region37: #{_lambda_.24} parent=5 // pred_check
      %p280 = pneg %p279
    $region38: #{_lambda_.24} parent=5 // pred_check_branch
      %282 = sbr.rel (%p280) target = $region40
    $region39: #{_lambda_.24} parent=5 // pred_region
      %s283 = ssub.s32 %s9, 2
      // Predicated region
      $region41: #{_lambda_.24} parent=39 // pred_check
        %p284 = pneg %p132
      $region42: #{_lambda_.24} parent=39 // pred_check_branch
        %286 = sbr.rel (%p284) target = $region44
      $region43: #{_lambda_.24} parent=39 // pred_region
        %p287 = scmp.lt.s32.totalorder %s20, 1
        %s288 = scalar_select %p287, %s20, 1
        %p289 = scmp.lt.s32.totalorder %s21, 3
        %s290 = scalar_select %p289, %s21, 3
        %s291 = smul.addr %s288, 4
        %s292 = sadd.s32 %s290, %s291
        %s293 = smul.addr %s292, 8
        %s294 = scalar_lea.vmem %s3, %s293
      $region44: #{_lambda_.24} parent=39 // pred_fallthru
        _
    $region40: #{_lambda_.24} parent=5 // pred_fallthru
      _
  $region6: #{_lambda_.24} parent=0 // loop_footer
    %s13 = sadd.s32 1, %s9
  $region7: #{_lambda_.24} parent=0 // loop_footer_branch
    %8 = sbr.rel target = $region3
  $region8: #{_lambda_.24} parent=0 // loop_exit
    _

// kernel: _lambda_.23
$region0: #{_lambda_.23}
  #allocation0 [shape = 'u32[]', space=smem, size = 0x4, offset = 0x4, fixed_abs, tag = 'smem constant byte address 0x4 - core index']
  #allocation1 [shape = 'u32[144,128]{1,0:T(1,128)}', space=vmem, size = 0x12000, scoped, tag = 'internal scratch']
  %s0 = inlined_call_operand.vmem [shape: bf16[32,256], index: 0, kind: input, shape index: {}]
  %s1 = inlined_call_operand.vmem [shape: bf16[2,256,16], index: 1, kind: input, shape index: {}]
  %s2 = inlined_call_operand.vmem [shape: f32[2,32,16], index: 2, kind: output, shape index: {}]
  %s3 = sld [smem:[#allocation0]]
  $region41: #{_lambda_.23} parent=0
    _
  %s5 = ssub.s32 1, %s3
  %s6 = scalar_select 0, %s5, %s3
  loop: start=0, step=1, limit=4
  $region2: #{_lambda_.23} parent=0 // loop_pre_header
    _
  $region3: #{_lambda_.23} parent=0 // loop_header
    %s8 = sphi 0, %s12
    %p9 = scmp.ge.s32.totalorder %s8, 4
    %s15 = sphi 0, %s34
    %s16 = sphi 0, %s30
    %s17 = sphi 0, %s26
    %s18 = sphi 0, %s15
    %s19 = sphi 0, %s16
    %s20 = sphi 0, %s17
    %s21 = sphi 0, %s18
    %s22 = sphi 0, %s19
    %s23 = sphi 0, %s20
    %s37 = sphi 0, %s39
    %s40 = sphi 0, %s37
    %s41 = sphi 0, %s40
    %s57 = sphi 0, %s41
    %s65 = sphi 0, %s67
    %s68 = sphi 0, %s65
    %s69 = sphi 0, %s68
    %s85 = sphi 0, %s69
    %s95 = sphi 0, %s97
    %s98 = sphi 0, %s95
    %s99 = sphi 0, %s98
    %s115 = sphi 0, %s99
  $region4: #{_lambda_.23} parent=0 // loop_header_branch
    %11 = sbr.rel (%p9) target = $region8
  $region5: #{_lambda_.23} parent=0 // loop_body
    %s13 = ssub.s32 %s8, 1
    %s14 = ssub.s32 %s8, 2
    %s24 = sadd.s32 1, %s17
    %p25 = scmp.ge.s32.totalorder %s24, 1
    %s26 = scalar_select %p25, 0, %s24
    %s27 = sadd.s32 1, %s16
    %s28 = scalar_select %p25, %s27, %s16
    %p29 = scmp.ge.s32.totalorder %s28, 1
    %s30 = scalar_select %p29, 0, %s28
    %s31 = sadd.s32 1, %s15
    %s32 = scalar_select %p29, %s31, %s15
    %p33 = scmp.ge.s32.totalorder %s32, 2
    %s34 = scalar_select %p33, 0, %s32
    %s35 = ssub.s32 %s16, %s30
    %p36 = scmp.eq.s32.totalorder %s35, 0
    %s38 = sadd.s32 %s37, 1
    %s39 = scalar_select %p36, %s37, %s38
    %p42 = pneg %p36
    %p43 = scmp.eq.s32.totalorder %s8, 1
    %p44 = por %p42, %p43
    %p45 = scmp.ne.s32.totalorder %s37, %s40
    %p46 = scmp.eq.s32.totalorder %s8, 0
    %p47 = por %p45, %p46
    %p48 = scmp.ne.s32.totalorder %s37, %s40
    %p49 = scmp.eq.s32.totalorder %s13, 1
    %p50 = por %p48, %p49
    %p51 = scmp.ne.s32.totalorder %s40, %s41
    %p52 = scmp.eq.s32.totalorder %s13, 0
    %p53 = por %p51, %p52
    %p54 = scmp.ne.s32.totalorder %s40, %s41
    %p55 = scmp.eq.s32.totalorder %s14, 1
    %p56 = por %p54, %p55
    %p58 = scmp.ne.s32.totalorder %s41, %s57
    %p59 = scmp.eq.s32.totalorder %s14, 0
    %p60 = por %p58, %p59
    %s61 = ssub.s32 %s15, %s34
    %s62 = ssub.s32 %s17, %s26
    %s63 = sor.u32 %s61, %s62
    %p64 = scmp.eq.s32.totalorder %s63, 0
    %s66 = sadd.s32 %s65, 1
    %s67 = scalar_select %p64, %s65, %s66
    %p70 = pneg %p64
    %p71 = scmp.eq.s32.totalorder %s8, 1
    %p72 = por %p70, %p71
    %p73 = scmp.ne.s32.totalorder %s65, %s68
    %p74 = scmp.eq.s32.totalorder %s8, 0
    %p75 = por %p73, %p74
    %p76 = scmp.ne.s32.totalorder %s65, %s68
    %p77 = scmp.eq.s32.totalorder %s13, 1
    %p78 = por %p76, %p77
    %p79 = scmp.ne.s32.totalorder %s68, %s69
    %p80 = scmp.eq.s32.totalorder %s13, 0
    %p81 = por %p79, %p80
    %p82 = scmp.ne.s32.totalorder %s68, %s69
    %p83 = scmp.eq.s32.totalorder %s14, 1
    %p84 = por %p82, %p83
    %p86 = scmp.ne.s32.totalorder %s69, %s85
    %p87 = scmp.eq.s32.totalorder %s14, 0
    %p88 = por %p86, %p87
    %s89 = ssub.s32 %s15, %s34
    %s90 = ssub.s32 %s16, %s30
    %s91 = sor.u32 %s89, %s90
    %s92 = ssub.s32 %s17, %s26
    %s93 = sor.u32 %s91, %s92
    %p94 = scmp.eq.s32.totalorder %s93, 0
    %s96 = sadd.s32 %s95, 1
    %s97 = scalar_select %p94, %s95, %s96
    %p100 = pneg %p94
    %p101 = scmp.eq.s32.totalorder %s8, 1
    %p102 = por %p100, %p101
    %p103 = scmp.ne.s32.totalorder %s95, %s98
    %p104 = scmp.eq.s32.totalorder %s8, 0
    %p105 = por %p103, %p104
    %p106 = scmp.ne.s32.totalorder %s95, %s98
    %p107 = scmp.eq.s32.totalorder %s13, 1
    %p108 = por %p106, %p107
    %p109 = scmp.ne.s32.totalorder %s98, %s99
    %p110 = scmp.eq.s32.totalorder %s13, 0
    %p111 = por %p109, %p110
    %p112 = scmp.ne.s32.totalorder %s98, %s99
    %p113 = scmp.eq.s32.totalorder %s14, 1
    %p114 = por %p112, %p113
    %p116 = scmp.ne.s32.totalorder %s99, %s115
    %p117 = scmp.eq.s32.totalorder %s14, 0
    %p118 = por %p116, %p117
    %p119 = scmp.le.s32.totalorder 1, %s8
    %p120 = scmp.lt.s32.totalorder %s8, 3
    %p121 = pnand %p119, %p120
    %p122 = pneg %p121
    // Predicated region
    $region9: #{_lambda_.23} parent=5 // pred_check
      _
    $region10: #{_lambda_.23} parent=5 // pred_check_branch
      %124 = sbr.rel (%p121) target = $region12
    $region11: #{_lambda_.23} parent=5 // pred_region
      %s125 = ssub.s32 %s8, 1
      // Predicated region
      $region13: #{_lambda_.23} parent=11 // pred_check
        %p126 = pneg %p53
      $region14: #{_lambda_.23} parent=11 // pred_check_branch
        %128 = sbr.rel (%p126) target = $region16
      $region15: #{_lambda_.23} parent=11 // pred_region
        %s129 = smul.u32 4, %s19
        %p130 = scmp.lt.s32.totalorder %s129, 3
        %s131 = scalar_select %p130, %s129, 3
        %s132 = smul.addr %s131, 2
        %s133 = smul.addr %s132, 4
        %s134 = scalar_lea.vmem %s0, %s133
        %s135 = smul.u32 4, %s19
      $region16: #{_lambda_.23} parent=11 // pred_fallthru
        _
    $region12: #{_lambda_.23} parent=5 // pred_fallthru
      _
    %p136 = scmp.lt.s32.totalorder %s8, 2
    // Predicated region
    $region17: #{_lambda_.23} parent=5 // pred_check
      %p137 = pneg %p136
    $region18: #{_lambda_.23} parent=5 // pred_check_branch
      %139 = sbr.rel (%p137) target = $region20
    $region19: #{_lambda_.23} parent=5 // pred_region
      // Predicated region
      $region21: #{_lambda_.23} parent=19 // pred_check
        %p140 = pneg %p75
      $region22: #{_lambda_.23} parent=19 // pred_check_branch
        %142 = sbr.rel (%p140) target = $region24
      $region23: #{_lambda_.23} parent=19 // pred_region
        %p143 = scmp.lt.s32.totalorder %s15, 1
        %s144 = scalar_select %p143, %s15, 1
        %p145 = scmp.lt.s32.totalorder %s17, 0
        %s146 = scalar_select %p145, %s17, 0
        %s147 = smul.addr %s144, 32
        %s148 = sadd.s32 %s146, %s147
        %s149 = smul.addr %s148, 4
        %s150 = scalar_lea.vmem %s1, %s149
      $region24: #{_lambda_.23} parent=19 // pred_fallthru
        _
    $region20: #{_lambda_.23} parent=5 // pred_fallthru
      _
    %p151 = scmp.le.s32.totalorder 1, %s8
    %p152 = scmp.lt.s32.totalorder %s8, 3
    %p153 = pnand %p151, %p152
    %p154 = pneg %p153
    // Predicated region
    $region25: #{_lambda_.23} parent=5 // pred_check
      _
    $region26: #{_lambda_.23} parent=5 // pred_check_branch
      %156 = sbr.rel (%p153) target = $region28
    $region27: #{_lambda_.23} parent=5 // pred_region
      %s157 = ssub.s32 %s8, 1
      %s158 = smul.u32 4, %s19
      %p159 = scmp.lt.s32.totalorder %s158, 3
      %s160 = scalar_select %p159, %s158, 3
      %s161 = smul.addr %s160, 2
      %s162 = smul.addr %s161, 4
      %s163 = scalar_lea.vmem %s0, %s162
      %p164 = pneg %p53
      %p165 = pneg %p50
      %p166 = scmp.lt.s32.totalorder %s18, 1
      %s167 = scalar_select %p166, %s18, 1
      %p168 = scmp.lt.s32.totalorder %s20, 0
      %s169 = scalar_select %p168, %s20, 0
      %s170 = smul.addr %s167, 32
      %s171 = sadd.s32 %s169, %s170
      %s172 = smul.addr %s171, 4
      %s173 = scalar_lea.vmem %s1, %s172
      %p174 = pneg %p81
      %p175 = pneg %p78
      %p176 = pneg %p111
      %p177 = pneg %p108
      %s178 = smul.u32 4, %s19
      %p179 = scmp.lt.s32.totalorder %s18, 1
      %s180 = scalar_select %p179, %s18, 1
      %p181 = scmp.lt.s32.totalorder %s178, 3
      %s182 = scalar_select %p181, %s178, 3
      %p183 = scmp.lt.s32.totalorder %s20, 0
      %s184 = scalar_select %p183, %s20, 0
      %s185 = sadd.s32 %s184, %s182
      %s186 = smul.addr %s180, 4
      %s187 = sadd.s32 %s185, %s186
      %s188 = smul.addr %s187, 8
      %s189 = scalar_lea.vmem %s2, %s188
      %s190 = smul.u32 4, %s19
      %p191 = scmp.lt.s32.totalorder %s190, 3
      %s192 = scalar_select %p191, %s190, 3
      %s193 = smul.addr %s192, 2
      %s194 = smul.addr %s193, 4
      %s195 = scalar_lea.vmem %s0, %s194
      %s196 = smul.u32 4, %s19
      %p197 = scmp.lt.s32.totalorder %s18, 1
      %s198 = scalar_select %p197, %s18, 1
      %p199 = scmp.lt.s32.totalorder %s20, 0
      %s200 = scalar_select %p199, %s20, 0
      %s201 = smul.addr %s198, 32
      %s202 = sadd.s32 %s200, %s201
      %s203 = smul.addr %s202, 4
      %s204 = scalar_lea.vmem %s1, %s203
      %s205 = smul.u32 4, %s19
      %p206 = scmp.lt.s32.totalorder %s18, 1
      %s207 = scalar_select %p206, %s18, 1
      %p208 = scmp.lt.s32.totalorder %s205, 3
      %s209 = scalar_select %p208, %s205, 3
      %p210 = scmp.lt.s32.totalorder %s20, 0
      %s211 = scalar_select %p210, %s20, 0
      %s212 = sadd.s32 %s211, %s209
      %s213 = smul.addr %s207, 4
      %s214 = sadd.s32 %s212, %s213
      %s215 = smul.addr %s214, 8
      %s216 = scalar_lea.vmem %s2, %s215
      %s217 = smul.u32 4, %s19
      %v219 = vld [vmem:[%s195] sm:$0xff]
      %v220 = vld [vmem:[%s195 + $0x8] sm:$0xff]
      %v221 = vld [vmem:[%s195 + $0x10] sm:$0xff]
      %v222 = vld [vmem:[%s195 + $0x18] sm:$0xff]
      %v223 = vld [vmem:[%s204] sm:$0xf]
      %v224 = vld [vmem:[%s204 + $0x4] sm:$0xf]
      %v225 = vld [vmem:[%s204 + $0x8] sm:$0xf]
      %v226 = vld [vmem:[%s204 + $0xc] sm:$0xf]
      %v227 = vld [vmem:[%s204 + $0x10] sm:$0xf]
      %v228 = vld [vmem:[%s204 + $0x14] sm:$0xf]
      %v229 = vld [vmem:[%s204 + $0x18] sm:$0xf]
      %v230 = vld [vmem:[%s204 + $0x1c] sm:$0xf]
      %v231 = vld [vmem:[%s204 + $0x20] sm:$0xf]
      %v232 = vld [vmem:[%s204 + $0x24] sm:$0xf]
      %v233 = vld [vmem:[%s204 + $0x28] sm:$0xf]
      %v234 = vld [vmem:[%s204 + $0x2c] sm:$0xf]
      %v235 = vld [vmem:[%s204 + $0x30] sm:$0xf]
      %v236 = vld [vmem:[%s204 + $0x34] sm:$0xf]
      %v237 = vld [vmem:[%s204 + $0x38] sm:$0xf]
      %v238 = vld [vmem:[%s204 + $0x3c] sm:$0xf]
      %v239 = vld [vmem:[%s204 + $0x40] sm:$0xf]
      %v240 = vld [vmem:[%s204 + $0x44] sm:$0xf]
      %v241 = vld [vmem:[%s204 + $0x48] sm:$0xf]
      %v242 = vld [vmem:[%s204 + $0x4c] sm:$0xf]
      %v243 = vld [vmem:[%s204 + $0x50] sm:$0xf]
      %v244 = vld [vmem:[%s204 + $0x54] sm:$0xf]
      %v245 = vld [vmem:[%s204 + $0x58] sm:$0xf]
      %v246 = vld [vmem:[%s204 + $0x5c] sm:$0xf]
      %v247 = vld [vmem:[%s204 + $0x60] sm:$0xf]
      %v248 = vld [vmem:[%s204 + $0x64] sm:$0xf]
      %v249 = vld [vmem:[%s204 + $0x68] sm:$0xf]
      %v250 = vld [vmem:[%s204 + $0x6c] sm:$0xf]
      %v251 = vld [vmem:[%s204 + $0x70] sm:$0xf]
      %v252 = vld [vmem:[%s204 + $0x74] sm:$0xf]
      %v253 = vld [vmem:[%s204 + $0x78] sm:$0xf]
      %v254 = vld [vmem:[%s204 + $0x7c] sm:$0xf]
      %v259 = vunpack.c.l.b16 %v219
      %v260 = vunpack.c.h.b16 %v219
      %v261 = vunpack.c.l.b16 %v220
      %v262 = vunpack.c.h.b16 %v220
      %v263 = vunpack.c.l.b16 %v221
      %v264 = vunpack.c.h.b16 %v221
      %v265 = vunpack.c.l.b16 %v222
      %v266 = vunpack.c.h.b16 %v222
      %v267 = vpack.c.b16 %v261, %v259
      %v268 = vpack.c.b16 %v262, %v260
      %v269 = vpack.c.b16 %v265, %v263
      %v270 = vpack.c.b16 %v266, %v264
      %v307 = vunpack.c.l.b16 %v223
      %v308 = vunpack.c.l.b16 %v224
      %v309 = vunpack.c.l.b16 %v225
      %v310 = vunpack.c.l.b16 %v226
      %v311 = vunpack.c.l.b16 %v227
      %v312 = vunpack.c.l.b16 %v228
      %v313 = vunpack.c.l.b16 %v229
      %v314 = vunpack.c.l.b16 %v230
      %v315 = vunpack.c.l.b16 %v231
      %v316 = vunpack.c.l.b16 %v232
      %v317 = vunpack.c.l.b16 %v233
      %v318 = vunpack.c.l.b16 %v234
      %v319 = vunpack.c.l.b16 %v235
      %v320 = vunpack.c.l.b16 %v236
      %v321 = vunpack.c.l.b16 %v237
      %v322 = vunpack.c.l.b16 %v238
      %v323 = vunpack.c.l.b16 %v239
      %v324 = vunpack.c.l.b16 %v240
      %v325 = vunpack.c.l.b16 %v241
      %v326 = vunpack.c.l.b16 %v242
      %v327 = vunpack.c.l.b16 %v243
      %v328 = vunpack.c.l.b16 %v244
      %v329 = vunpack.c.l.b16 %v245
      %v330 = vunpack.c.l.b16 %v246
      %v331 = vunpack.c.l.b16 %v247
      %v332 = vunpack.c.l.b16 %v248
      %v333 = vunpack.c.l.b16 %v249
      %v334 = vunpack.c.l.b16 %v250
      %v335 = vunpack.c.l.b16 %v251
      %v336 = vunpack.c.l.b16 %v252
      %v337 = vunpack.c.l.b16 %v253
      %v338 = vunpack.c.l.b16 %v254
      %v339 = vpack.c.b16 %v308, %v307
      %v340 = vpack.c.b16 %v310, %v309
      %v341 = vpack.c.b16 %v312, %v311
      %v342 = vpack.c.b16 %v314, %v313
      %v343 = vpack.c.b16 %v316, %v315
      %v344 = vpack.c.b16 %v318, %v317
      %v345 = vpack.c.b16 %v320, %v319
      %v346 = vpack.c.b16 %v322, %v321
      %v347 = vpack.c.b16 %v324, %v323
      %v348 = vpack.c.b16 %v326, %v325
      %v349 = vpack.c.b16 %v328, %v327
      %v350 = vpack.c.b16 %v330, %v329
      %v351 = vpack.c.b16 %v332, %v331
      %v352 = vpack.c.b16 %v334, %v333
      %v353 = vpack.c.b16 %v336, %v335
      %v354 = vpack.c.b16 %v338, %v337
      %371 = vmatprep.subr.bf16.mxu0 0
      %372 = vmatpush1.bf16.msra.mxu0 %v339
      %373 = vmatprep.subr.bf16.mxu0 0
      %374 = vmatpush1.bf16.msra.mxu0 %v340
      %375 = vmatprep.subr.bf16.mxu0 0
      %376 = vmatpush1.bf16.msra.mxu0 %v341
      %377 = vmatprep.subr.bf16.mxu0 0
      %378 = vmatpush1.bf16.msra.mxu0 %v342
      %379 = vmatprep.subr.bf16.mxu0 0
      %380 = vmatpush1.bf16.msra.mxu0 %v343
      %381 = vmatprep.subr.bf16.mxu0 0
      %382 = vmatpush1.bf16.msra.mxu0 %v344
      %383 = vmatprep.subr.bf16.mxu0 0
      %384 = vmatpush1.bf16.msra.mxu0 %v345
      %385 = vmatprep.subr.bf16.mxu0 0
      %386 = vmatpush1.bf16.msra.mxu0 %v346
      %387 = vmatprep.subr.bf16.mxu0 0
      %388 = vmatpush1.bf16.msra.mxu0 %v347
      %389 = vmatprep.subr.bf16.mxu0 0
      %390 = vmatpush1.bf16.msra.mxu0 %v348
      %391 = vmatprep.subr.bf16.mxu0 0
      %392 = vmatpush1.bf16.msra.mxu0 %v349
      %393 = vmatprep.subr.bf16.mxu0 0
      %394 = vmatpush1.bf16.msra.mxu0 %v350
      %395 = vmatprep.subr.bf16.mxu0 0
      %396 = vmatpush1.bf16.msra.mxu0 %v351
      %397 = vmatprep.subr.bf16.mxu0 0
      %398 = vmatpush1.bf16.msra.mxu0 %v352
      %399 = vmatprep.subr.bf16.mxu0 0
      %400 = vmatpush1.bf16.msra.mxu0 %v353
      %401 = vmatprep.subr.bf16.mxu0 0
      %402 = vmatpush1.bf16.msra.mxu0 %v354
      %403 = vmatprep.mubr.bf16.mxu0 %v268
      %404 = vmatmul.mubr.bf16.gmra.mrb[0].mxu0 %v267
      %v405 = vpop.f32.mrb[0].mxu0
      %v406 = vadd.f32 0.0, %v405
      %v407 = vpop.f32.mrb[0].mxu0
      %v408 = vpop.f32.mrb[0].mxu0
      %v409 = vadd.f32 0.0, %v408
      %v410 = vpop.f32.mrb[0].mxu0
      %411 = vmatprep.mubr.bf16.mxu0 %v270
      %412 = vmatmul.mubr.bf16.gmra.mrb[0].mxu0 %v269
      %v413 = vpop.f32.mrb[0].mxu0
      %v414 = vadd.f32 0.0, %v413
      %v415 = vpop.f32.mrb[0].mxu0
      %v416 = vpop.f32.mrb[0].mxu0
      %v417 = vadd.f32 0.0, %v416
      %v418 = vpop.f32.mrb[0].mxu0
      %419 = vdwg.mxu0
      %vm420 = vcmask 130048
      %421 = vst.msk [vmem:[%s216] sm:$0xff] %vm420, %v406
      %422 = vst.msk [vmem:[%s216 + $0x8] sm:$0xff] %vm420, %v409
      %423 = vst.msk [vmem:[%s216 + $0x10] sm:$0xff] %vm420, %v414
      %424 = vst.msk [vmem:[%s216 + $0x18] sm:$0xff] %vm420, %v417
      %s425 = smul.u32 4, %s19
      %p426 = scmp.lt.s32.totalorder %s18, 1
      %s427 = scalar_select %p426, %s18, 1
      %p428 = scmp.lt.s32.totalorder %s425, 3
      %s429 = scalar_select %p428, %s425, 3
      %p430 = scmp.lt.s32.totalorder %s20, 0
      %s431 = scalar_select %p430, %s20, 0
      %s432 = sadd.s32 %s431, %s429
      %s433 = smul.addr %s427, 4
      %s434 = sadd.s32 %s432, %s433
      %s435 = smul.addr %s434, 8
      %s436 = scalar_lea.vmem %s2, %s435
      // Predicated region
      $region29: #{_lambda_.23} parent=27 // pred_check
        %p437 = pneg %p108
      $region30: #{_lambda_.23} parent=27 // pred_check_branch
        %439 = sbr.rel (%p437) target = $region32
      $region31: #{_lambda_.23} parent=27 // pred_region
        %s440 = smul.u32 4, %s19
      $region32: #{_lambda_.23} parent=27 // pred_fallthru
        _
    $region28: #{_lambda_.23} parent=5 // pred_fallthru
      _
    %p441 = scmp.le.s32.totalorder 2, %s8
    // Predicated region
    $region33: #{_lambda_.23} parent=5 // pred_check
      %p442 = pneg %p441
    $region34: #{_lambda_.23} parent=5 // pred_check_branch
      %444 = sbr.rel (%p442) target = $region36
    $region35: #{_lambda_.23} parent=5 // pred_region
      %s445 = ssub.s32 %s8, 2
      // Predicated region
      $region37: #{_lambda_.23} parent=35 // pred_check
        %p446 = pneg %p114
      $region38: #{_lambda_.23} parent=35 // pred_check_branch
        %448 = sbr.rel (%p446) target = $region40
      $region39: #{_lambda_.23} parent=35 // pred_region
        %s449 = smul.u32 4, %s22
        %p450 = scmp.lt.s32.totalorder %s21, 1
        %s451 = scalar_select %p450, %s21, 1
        %p452 = scmp.lt.s32.totalorder %s449, 3
        %s453 = scalar_select %p452, %s449, 3
        %p454 = scmp.lt.s32.totalorder %s23, 0
        %s455 = scalar_select %p454, %s23, 0
        %s456 = sadd.s32 %s455, %s453
        %s457 = smul.addr %s451, 4
        %s458 = sadd.s32 %s456, %s457
        %s459 = smul.addr %s458, 8
        %s460 = scalar_lea.vmem %s2, %s459
      $region40: #{_lambda_.23} parent=35 // pred_fallthru
        _
    $region36: #{_lambda_.23} parent=5 // pred_fallthru
      _
  $region6: #{_lambda_.23} parent=0 // loop_footer
    %s12 = sadd.s32 1, %s8
  $region7: #{_lambda_.23} parent=0 // loop_footer_branch
    %7 = sbr.rel target = $region3
  $region8: #{_lambda_.23} parent=0 // loop_exit
    _

// kernel: _lambda_.25
$region0: #{_lambda_.25}
  #allocation0 [shape = 'u32[]', space=smem, size = 0x4, offset = 0x4, fixed_abs, tag = 'smem constant byte address 0x4 - core index']
  #allocation1 [shape = 'u32[144,128]{1,0:T(1,128)}', space=vmem, size = 0x12000, scoped, tag = 'internal scratch']
  %s0 = inlined_call_operand.vmem [shape: bf16[32,288], index: 0, kind: input, shape index: {}]
  %s1 = inlined_call_operand.vmem [shape: bf16[2,288,16], index: 1, kind: input, shape index: {}]
  %s2 = inlined_call_operand.vmem [shape: f32[2,32,16], index: 2, kind: output, shape index: {}]
  %s3 = sld [smem:[#allocation0]]
  $region41: #{_lambda_.25} parent=0
    _
  %s5 = ssub.s32 1, %s3
  %s6 = scalar_select 0, %s5, %s3
  loop: start=0, step=1, limit=4
  $region2: #{_lambda_.25} parent=0 // loop_pre_header
    _
  $region3: #{_lambda_.25} parent=0 // loop_header
    %s8 = sphi 0, %s12
    %p9 = scmp.ge.s32.totalorder %s8, 4
    %s15 = sphi 0, %s34
    %s16 = sphi 0, %s30
    %s17 = sphi 0, %s26
    %s18 = sphi 0, %s15
    %s19 = sphi 0, %s16
    %s20 = sphi 0, %s17
    %s21 = sphi 0, %s18
    %s22 = sphi 0, %s19
    %s23 = sphi 0, %s20
    %s37 = sphi 0, %s39
    %s40 = sphi 0, %s37
    %s41 = sphi 0, %s40
    %s57 = sphi 0, %s41
    %s65 = sphi 0, %s67
    %s68 = sphi 0, %s65
    %s69 = sphi 0, %s68
    %s85 = sphi 0, %s69
    %s95 = sphi 0, %s97
    %s98 = sphi 0, %s95
    %s99 = sphi 0, %s98
    %s115 = sphi 0, %s99
  $region4: #{_lambda_.25} parent=0 // loop_header_branch
    %11 = sbr.rel (%p9) target = $region8
  $region5: #{_lambda_.25} parent=0 // loop_body
    %s13 = ssub.s32 %s8, 1
    %s14 = ssub.s32 %s8, 2
    %s24 = sadd.s32 1, %s17
    %p25 = scmp.ge.s32.totalorder %s24, 1
    %s26 = scalar_select %p25, 0, %s24
    %s27 = sadd.s32 1, %s16
    %s28 = scalar_select %p25, %s27, %s16
    %p29 = scmp.ge.s32.totalorder %s28, 1
    %s30 = scalar_select %p29, 0, %s28
    %s31 = sadd.s32 1, %s15
    %s32 = scalar_select %p29, %s31, %s15
    %p33 = scmp.ge.s32.totalorder %s32, 2
    %s34 = scalar_select %p33, 0, %s32
    %s35 = ssub.s32 %s16, %s30
    %p36 = scmp.eq.s32.totalorder %s35, 0
    %s38 = sadd.s32 %s37, 1
    %s39 = scalar_select %p36, %s37, %s38
    %p42 = pneg %p36
    %p43 = scmp.eq.s32.totalorder %s8, 1
    %p44 = por %p42, %p43
    %p45 = scmp.ne.s32.totalorder %s37, %s40
    %p46 = scmp.eq.s32.totalorder %s8, 0
    %p47 = por %p45, %p46
    %p48 = scmp.ne.s32.totalorder %s37, %s40
    %p49 = scmp.eq.s32.totalorder %s13, 1
    %p50 = por %p48, %p49
    %p51 = scmp.ne.s32.totalorder %s40, %s41
    %p52 = scmp.eq.s32.totalorder %s13, 0
    %p53 = por %p51, %p52
    %p54 = scmp.ne.s32.totalorder %s40, %s41
    %p55 = scmp.eq.s32.totalorder %s14, 1
    %p56 = por %p54, %p55
    %p58 = scmp.ne.s32.totalorder %s41, %s57
    %p59 = scmp.eq.s32.totalorder %s14, 0
    %p60 = por %p58, %p59
    %s61 = ssub.s32 %s15, %s34
    %s62 = ssub.s32 %s17, %s26
    %s63 = sor.u32 %s61, %s62
    %p64 = scmp.eq.s32.totalorder %s63, 0
    %s66 = sadd.s32 %s65, 1
    %s67 = scalar_select %p64, %s65, %s66
    %p70 = pneg %p64
    %p71 = scmp.eq.s32.totalorder %s8, 1
    %p72 = por %p70, %p71
    %p73 = scmp.ne.s32.totalorder %s65, %s68
    %p74 = scmp.eq.s32.totalorder %s8, 0
    %p75 = por %p73, %p74
    %p76 = scmp.ne.s32.totalorder %s65, %s68
    %p77 = scmp.eq.s32.totalorder %s13, 1
    %p78 = por %p76, %p77
    %p79 = scmp.ne.s32.totalorder %s68, %s69
    %p80 = scmp.eq.s32.totalorder %s13, 0
    %p81 = por %p79, %p80
    %p82 = scmp.ne.s32.totalorder %s68, %s69
    %p83 = scmp.eq.s32.totalorder %s14, 1
    %p84 = por %p82, %p83
    %p86 = scmp.ne.s32.totalorder %s69, %s85
    %p87 = scmp.eq.s32.totalorder %s14, 0
    %p88 = por %p86, %p87
    %s89 = ssub.s32 %s15, %s34
    %s90 = ssub.s32 %s16, %s30
    %s91 = sor.u32 %s89, %s90
    %s92 = ssub.s32 %s17, %s26
    %s93 = sor.u32 %s91, %s92
    %p94 = scmp.eq.s32.totalorder %s93, 0
    %s96 = sadd.s32 %s95, 1
    %s97 = scalar_select %p94, %s95, %s96
    %p100 = pneg %p94
    %p101 = scmp.eq.s32.totalorder %s8, 1
    %p102 = por %p100, %p101
    %p103 = scmp.ne.s32.totalorder %s95, %s98
    %p104 = scmp.eq.s32.totalorder %s8, 0
    %p105 = por %p103, %p104
    %p106 = scmp.ne.s32.totalorder %s95, %s98
    %p107 = scmp.eq.s32.totalorder %s13, 1
    %p108 = por %p106, %p107
    %p109 = scmp.ne.s32.totalorder %s98, %s99
    %p110 = scmp.eq.s32.totalorder %s13, 0
    %p111 = por %p109, %p110
    %p112 = scmp.ne.s32.totalorder %s98, %s99
    %p113 = scmp.eq.s32.totalorder %s14, 1
    %p114 = por %p112, %p113
    %p116 = scmp.ne.s32.totalorder %s99, %s115
    %p117 = scmp.eq.s32.totalorder %s14, 0
    %p118 = por %p116, %p117
    %p119 = scmp.le.s32.totalorder 1, %s8
    %p120 = scmp.lt.s32.totalorder %s8, 3
    %p121 = pnand %p119, %p120
    %p122 = pneg %p121
    // Predicated region
    $region9: #{_lambda_.25} parent=5 // pred_check
      _
    $region10: #{_lambda_.25} parent=5 // pred_check_branch
      %124 = sbr.rel (%p121) target = $region12
    $region11: #{_lambda_.25} parent=5 // pred_region
      %s125 = ssub.s32 %s8, 1
      // Predicated region
      $region13: #{_lambda_.25} parent=11 // pred_check
        %p126 = pneg %p53
      $region14: #{_lambda_.25} parent=11 // pred_check_branch
        %128 = sbr.rel (%p126) target = $region16
      $region15: #{_lambda_.25} parent=11 // pred_region
        %s129 = smul.u32 4, %s19
        %p130 = scmp.lt.s32.totalorder %s129, 3
        %s131 = scalar_select %p130, %s129, 3
        %s132 = smul.addr %s131, 3
        %s133 = smul.addr %s132, 4
        %s134 = scalar_lea.vmem %s0, %s133
        %s135 = smul.u32 4, %s19
      $region16: #{_lambda_.25} parent=11 // pred_fallthru
        _
    $region12: #{_lambda_.25} parent=5 // pred_fallthru
      _
    %p136 = scmp.lt.s32.totalorder %s8, 2
    // Predicated region
    $region17: #{_lambda_.25} parent=5 // pred_check
      %p137 = pneg %p136
    $region18: #{_lambda_.25} parent=5 // pred_check_branch
      %139 = sbr.rel (%p137) target = $region20
    $region19: #{_lambda_.25} parent=5 // pred_region
      // Predicated region
      $region21: #{_lambda_.25} parent=19 // pred_check
        %p140 = pneg %p75
      $region22: #{_lambda_.25} parent=19 // pred_check_branch
        %142 = sbr.rel (%p140) target = $region24
      $region23: #{_lambda_.25} parent=19 // pred_region
        %p143 = scmp.lt.s32.totalorder %s15, 1
        %s144 = scalar_select %p143, %s15, 1
        %p145 = scmp.lt.s32.totalorder %s17, 0
        %s146 = scalar_select %p145, %s17, 0
        %s147 = smul.addr %s144, 36
        %s148 = sadd.s32 %s146, %s147
        %s149 = smul.addr %s148, 4
        %s150 = scalar_lea.vmem %s1, %s149
      $region24: #{_lambda_.25} parent=19 // pred_fallthru
        _
    $region20: #{_lambda_.25} parent=5 // pred_fallthru
      _
    %p151 = scmp.le.s32.totalorder 1, %s8
    %p152 = scmp.lt.s32.totalorder %s8, 3
    %p153 = pnand %p151, %p152
    %p154 = pneg %p153
    // Predicated region
    $region25: #{_lambda_.25} parent=5 // pred_check
      _
    $region26: #{_lambda_.25} parent=5 // pred_check_branch
      %156 = sbr.rel (%p153) target = $region28
    $region27: #{_lambda_.25} parent=5 // pred_region
      %s157 = ssub.s32 %s8, 1
      %s158 = smul.u32 4, %s19
      %p159 = scmp.lt.s32.totalorder %s158, 3
      %s160 = scalar_select %p159, %s158, 3
      %s161 = smul.addr %s160, 3
      %s162 = smul.addr %s161, 4
      %s163 = scalar_lea.vmem %s0, %s162
      %p164 = pneg %p53
      %p165 = pneg %p50
      %p166 = scmp.lt.s32.totalorder %s18, 1
      %s167 = scalar_select %p166, %s18, 1
      %p168 = scmp.lt.s32.totalorder %s20, 0
      %s169 = scalar_select %p168, %s20, 0
      %s170 = smul.addr %s167, 36
      %s171 = sadd.s32 %s169, %s170
      %s172 = smul.addr %s171, 4
      %s173 = scalar_lea.vmem %s1, %s172
      %p174 = pneg %p81
      %p175 = pneg %p78
      %p176 = pneg %p111
      %p177 = pneg %p108
      %s178 = smul.u32 4, %s19
      %p179 = scmp.lt.s32.totalorder %s18, 1
      %s180 = scalar_select %p179, %s18, 1
      %p181 = scmp.lt.s32.totalorder %s178, 3
      %s182 = scalar_select %p181, %s178, 3
      %p183 = scmp.lt.s32.totalorder %s20, 0
      %s184 = scalar_select %p183, %s20, 0
      %s185 = sadd.s32 %s184, %s182
      %s186 = smul.addr %s180, 4
      %s187 = sadd.s32 %s185, %s186
      %s188 = smul.addr %s187, 8
      %s189 = scalar_lea.vmem %s2, %s188
      %s190 = smul.u32 4, %s19
      %p191 = scmp.lt.s32.totalorder %s190, 3
      %s192 = scalar_select %p191, %s190, 3
      %s193 = smul.addr %s192, 3
      %s194 = smul.addr %s193, 4
      %s195 = scalar_lea.vmem %s0, %s194
      %s196 = smul.u32 4, %s19
      %p197 = scmp.lt.s32.totalorder %s18, 1
      %s198 = scalar_select %p197, %s18, 1
      %p199 = scmp.lt.s32.totalorder %s20, 0
      %s200 = scalar_select %p199, %s20, 0
      %s201 = smul.addr %s198, 36
      %s202 = sadd.s32 %s200, %s201
      %s203 = smul.addr %s202, 4
      %s204 = scalar_lea.vmem %s1, %s203
      %s205 = smul.u32 4, %s19
      %p206 = scmp.lt.s32.totalorder %s18, 1
      %s207 = scalar_select %p206, %s18, 1
      %p208 = scmp.lt.s32.totalorder %s205, 3
      %s209 = scalar_select %p208, %s205, 3
      %p210 = scmp.lt.s32.totalorder %s20, 0
      %s211 = scalar_select %p210, %s20, 0
      %s212 = sadd.s32 %s211, %s209
      %s213 = smul.addr %s207, 4
      %s214 = sadd.s32 %s212, %s213
      %s215 = smul.addr %s214, 8
      %s216 = scalar_lea.vmem %s2, %s215
      %s217 = smul.u32 4, %s19
      %v219 = vld [vmem:[%s195] sm:$0xff]
      %v220 = vld [vmem:[%s195 + $0x8] sm:$0xf]
      %v221 = vld [vmem:[%s195 + $0xc] sm:$0xff]
      %v222 = vld [vmem:[%s195 + $0x14] sm:$0xf]
      %v223 = vld [vmem:[%s195 + $0x18] sm:$0xff]
      %v224 = vld [vmem:[%s195 + $0x20] sm:$0xf]
      %v225 = vld [vmem:[%s195 + $0x24] sm:$0xff]
      %v226 = vld [vmem:[%s195 + $0x2c] sm:$0xf]
      %v227 = vld [vmem:[%s204] sm:$0xf]
      %v228 = vld [vmem:[%s204 + $0x4] sm:$0xf]
      %v229 = vld [vmem:[%s204 + $0x8] sm:$0xf]
      %v230 = vld [vmem:[%s204 + $0xc] sm:$0xf]
      %v231 = vld [vmem:[%s204 + $0x10] sm:$0xf]
      %v232 = vld [vmem:[%s204 + $0x14] sm:$0xf]
      %v233 = vld [vmem:[%s204 + $0x18] sm:$0xf]
      %v234 = vld [vmem:[%s204 + $0x1c] sm:$0xf]
      %v235 = vld [vmem:[%s204 + $0x20] sm:$0xf]
      %v236 = vld [vmem:[%s204 + $0x24] sm:$0xf]
      %v237 = vld [vmem:[%s204 + $0x28] sm:$0xf]
      %v238 = vld [vmem:[%s204 + $0x2c] sm:$0xf]
      %v239 = vld [vmem:[%s204 + $0x30] sm:$0xf]
      %v240 = vld [vmem:[%s204 + $0x34] sm:$0xf]
      %v241 = vld [vmem:[%s204 + $0x38] sm:$0xf]
      %v242 = vld [vmem:[%s204 + $0x3c] sm:$0xf]
      %v243 = vld [vmem:[%s204 + $0x40] sm:$0xf]
      %v244 = vld [vmem:[%s204 + $0x44] sm:$0xf]
      %v245 = vld [vmem:[%s204 + $0x48] sm:$0xf]
      %v246 = vld [vmem:[%s204 + $0x4c] sm:$0xf]
      %v247 = vld [vmem:[%s204 + $0x50] sm:$0xf]
      %v248 = vld [vmem:[%s204 + $0x54] sm:$0xf]
      %v249 = vld [vmem:[%s204 + $0x58] sm:$0xf]
      %v250 = vld [vmem:[%s204 + $0x5c] sm:$0xf]
      %v251 = vld [vmem:[%s204 + $0x60] sm:$0xf]
      %v252 = vld [vmem:[%s204 + $0x64] sm:$0xf]
      %v253 = vld [vmem:[%s204 + $0x68] sm:$0xf]
      %v254 = vld [vmem:[%s204 + $0x6c] sm:$0xf]
      %v255 = vld [vmem:[%s204 + $0x70] sm:$0xf]
      %v256 = vld [vmem:[%s204 + $0x74] sm:$0xf]
      %v257 = vld [vmem:[%s204 + $0x78] sm:$0xf]
      %v258 = vld [vmem:[%s204 + $0x7c] sm:$0xf]
      %v259 = vld [vmem:[%s204 + $0x80] sm:$0xf]
      %v260 = vld [vmem:[%s204 + $0x84] sm:$0xf]
      %v261 = vld [vmem:[%s204 + $0x88] sm:$0xf]
      %v262 = vld [vmem:[%s204 + $0x8c] sm:$0xf]
      %v271 = vunpack.c.l.b16 %v219
      %v272 = vunpack.c.h.b16 %v219
      %v273 = vunpack.c.l.b16 %v220
      %v274 = vunpack.c.l.b16 %v221
      %v275 = vunpack.c.h.b16 %v221
      %v276 = vunpack.c.l.b16 %v222
      %v277 = vunpack.c.l.b16 %v223
      %v278 = vunpack.c.h.b16 %v223
      %v279 = vunpack.c.l.b16 %v224
      %v280 = vunpack.c.l.b16 %v225
      %v281 = vunpack.c.h.b16 %v225
      %v282 = vunpack.c.l.b16 %v226
      %v283 = vpack.c.b16 %v274, %v271
      %v284 = vpack.c.b16 %v275, %v272
      %v285 = vpack.c.b16 %v276, %v273
      %v286 = vpack.c.b16 %v280, %v277
      %v287 = vpack.c.b16 %v281, %v278
      %v288 = vpack.c.b16 %v282, %v279
      %v329 = vunpack.c.l.b16 %v227
      %v330 = vunpack.c.l.b16 %v228
      %v331 = vunpack.c.l.b16 %v229
      %v332 = vunpack.c.l.b16 %v230
      %v333 = vunpack.c.l.b16 %v231
      %v334 = vunpack.c.l.b16 %v232
      %v335 = vunpack.c.l.b16 %v233
      %v336 = vunpack.c.l.b16 %v234
      %v337 = vunpack.c.l.b16 %v235
      %v338 = vunpack.c.l.b16 %v236
      %v339 = vunpack.c.l.b16 %v237
      %v340 = vunpack.c.l.b16 %v238
      %v341 = vunpack.c.l.b16 %v239
      %v342 = vunpack.c.l.b16 %v240
      %v343 = vunpack.c.l.b16 %v241
      %v344 = vunpack.c.l.b16 %v242
      %v345 = vunpack.c.l.b16 %v243
      %v346 = vunpack.c.l.b16 %v244
      %v347 = vunpack.c.l.b16 %v245
      %v348 = vunpack.c.l.b16 %v246
      %v349 = vunpack.c.l.b16 %v247
      %v350 = vunpack.c.l.b16 %v248
      %v351 = vunpack.c.l.b16 %v249
      %v352 = vunpack.c.l.b16 %v250
      %v353 = vunpack.c.l.b16 %v251
      %v354 = vunpack.c.l.b16 %v252
      %v355 = vunpack.c.l.b16 %v253
      %v356 = vunpack.c.l.b16 %v254
      %v357 = vunpack.c.l.b16 %v255
      %v358 = vunpack.c.l.b16 %v256
      %v359 = vunpack.c.l.b16 %v257
      %v360 = vunpack.c.l.b16 %v258
      %v361 = vunpack.c.l.b16 %v259
      %v362 = vunpack.c.l.b16 %v260
      %v363 = vunpack.c.l.b16 %v261
      %v364 = vunpack.c.l.b16 %v262
      %v365 = vpack.c.b16 %v330, %v329
      %v366 = vpack.c.b16 %v332, %v331
      %v367 = vpack.c.b16 %v334, %v333
      %v368 = vpack.c.b16 %v336, %v335
      %v369 = vpack.c.b16 %v338, %v337
      %v370 = vpack.c.b16 %v340, %v339
      %v371 = vpack.c.b16 %v342, %v341
      %v372 = vpack.c.b16 %v344, %v343
      %v373 = vpack.c.b16 %v346, %v345
      %v374 = vpack.c.b16 %v348, %v347
      %v375 = vpack.c.b16 %v350, %v349
      %v376 = vpack.c.b16 %v352, %v351
      %v377 = vpack.c.b16 %v354, %v353
      %v378 = vpack.c.b16 %v356, %v355
      %v379 = vpack.c.b16 %v358, %v357
      %v380 = vpack.c.b16 %v360, %v359
      %v381 = vpack.c.b16 %v362, %v361
      %v382 = vpack.c.b16 %v364, %v363
      %vm401 = vcmask 261120
      %v403 = vsel %vm401, %v285, 0
      %v406 = vsel %vm401, %v288, 0
      %408 = vmatprep.subr.bf16.mxu0 0
      %409 = vmatpush1.bf16.msra.mxu0 %v365
      %410 = vmatprep.subr.bf16.mxu0 0
      %411 = vmatpush1.bf16.msra.mxu0 %v366
      %412 = vmatprep.subr.bf16.mxu0 0
      %413 = vmatpush1.bf16.msra.mxu0 %v367
      %414 = vmatprep.subr.bf16.mxu0 0
      %415 = vmatpush1.bf16.msra.mxu0 %v368
      %416 = vmatprep.subr.bf16.mxu0 0
      %417 = vmatpush1.bf16.msra.mxu0 %v369
      %418 = vmatprep.subr.bf16.mxu0 0
      %419 = vmatpush1.bf16.msra.mxu0 %v370
      %420 = vmatprep.subr.bf16.mxu0 0
      %421 = vmatpush1.bf16.msra.mxu0 %v371
      %422 = vmatprep.subr.bf16.mxu0 0
      %423 = vmatpush1.bf16.msra.mxu0 %v372
      %424 = vmatprep.subr.bf16.mxu0 0
      %425 = vmatpush1.bf16.msra.mxu0 %v373
      %426 = vmatprep.subr.bf16.mxu0 0
      %427 = vmatpush1.bf16.msra.mxu0 %v374
      %428 = vmatprep.subr.bf16.mxu0 0
      %429 = vmatpush1.bf16.msra.mxu0 %v375
      %430 = vmatprep.subr.bf16.mxu0 0
      %431 = vmatpush1.bf16.msra.mxu0 %v376
      %432 = vmatprep.subr.bf16.mxu0 0
      %433 = vmatpush1.bf16.msra.mxu0 %v377
      %434 = vmatprep.subr.bf16.mxu0 0
      %435 = vmatpush1.bf16.msra.mxu0 %v378
      %436 = vmatprep.subr.bf16.mxu0 0
      %437 = vmatpush1.bf16.msra.mxu0 %v379
      %438 = vmatprep.subr.bf16.mxu0 0
      %439 = vmatpush1.bf16.msra.mxu0 %v380
      %440 = vmatprep.mubr.bf16.mxu0 %v284
      %441 = vmatmul.mubr.bf16.gmra.mrb[0].mxu0 %v283
      %v442 = vpop.f32.mrb[0].mxu0
      %v443 = vadd.f32 0.0, %v442
      %v444 = vpop.f32.mrb[0].mxu0
      %v445 = vpop.f32.mrb[0].mxu0
      %v446 = vadd.f32 0.0, %v445
      %v447 = vpop.f32.mrb[0].mxu0
      %448 = vmatprep.mubr.bf16.mxu0 %v287
      %449 = vmatmul.mubr.bf16.gmra.mrb[0].mxu0 %v286
      %v450 = vpop.f32.mrb[0].mxu0
      %v451 = vadd.f32 0.0, %v450
      %v452 = vpop.f32.mrb[0].mxu0
      %v453 = vpop.f32.mrb[0].mxu0
      %v454 = vadd.f32 0.0, %v453
      %v455 = vpop.f32.mrb[0].mxu0
      %456 = vdwg.mxu0
      %457 = vmatprep.subr.bf16.mxu0 0
      %458 = vmatpush1.bf16.msra.mxu0 %v381
      %459 = vmatprep.subr.bf16.mxu0 0
      %460 = vmatpush1.bf16.msra.mxu0 %v382
      %461 = vmatprep.subr.bf16.mxu0 0
      %462 = vmatpush1.bf16.msra.mxu0 0
      %463 = vmatprep.subr.bf16.mxu0 0
      %464 = vmatpush1.bf16.msra.mxu0 0
      %465 = vmatprep.subr.bf16.mxu0 0
      %466 = vmatpush1.bf16.msra.mxu0 0
      %467 = vmatprep.subr.bf16.mxu0 0
      %468 = vmatpush1.bf16.msra.mxu0 0
      %469 = vmatprep.subr.bf16.mxu0 0
      %470 = vmatpush1.bf16.msra.mxu0 0
      %471 = vmatprep.subr.bf16.mxu0 0
      %472 = vmatpush1.bf16.msra.mxu0 0
      %473 = vmatprep.subr.bf16.mxu0 0
      %474 = vmatpush1.bf16.msra.mxu0 0
      %475 = vmatprep.subr.bf16.mxu0 0
      %476 = vmatpush1.bf16.msra.mxu0 0
      %477 = vmatprep.subr.bf16.mxu0 0
      %478 = vmatpush1.bf16.msra.mxu0 0
      %479 = vmatprep.subr.bf16.mxu0 0
      %480 = vmatpush1.bf16.msra.mxu0 0
      %481 = vmatprep.subr.bf16.mxu0 0
      %482 = vmatpush1.bf16.msra.mxu0 0
      %483 = vmatprep.subr.bf16.mxu0 0
      %484 = vmatpush1.bf16.msra.mxu0 0
      %485 = vmatprep.subr.bf16.mxu0 0
      %486 = vmatpush1.bf16.msra.mxu0 0
      %487 = vmatprep.subr.bf16.mxu0 0
      %488 = vmatpush1.bf16.msra.mxu0 0
      %489 = vmatprep.mubr.bf16.mxu0 0
      %490 = vmatmul.mubr.bf16.gmra.mrb[0].mxu0 %v403
      %v491 = vpop.f32.mrb[0].mxu0
      %v492 = vadd.f32 %v443, %v491
      %v493 = vpop.f32.mrb[0].mxu0
      %v494 = vpop.f32.mrb[0].mxu0
      %v495 = vadd.f32 %v446, %v494
      %v496 = vpop.f32.mrb[0].mxu0
      %497 = vmatprep.mubr.bf16.mxu0 0
      %498 = vmatmul.mubr.bf16.gmra.mrb[0].mxu0 %v406
      %v499 = vpop.f32.mrb[0].mxu0
      %v500 = vadd.f32 %v451, %v499
      %v501 = vpop.f32.mrb[0].mxu0
      %v502 = vpop.f32.mrb[0].mxu0
      %v503 = vadd.f32 %v454, %v502
      %v504 = vpop.f32.mrb[0].mxu0
      %505 = vdwg.mxu0
      %vm506 = vcmask 130048
      %507 = vst.msk [vmem:[%s216] sm:$0xff] %vm506, %v492
      %508 = vst.msk [vmem:[%s216 + $0x8] sm:$0xff] %vm506, %v495
      %509 = vst.msk [vmem:[%s216 + $0x10] sm:$0xff] %vm506, %v500
      %510 = vst.msk [vmem:[%s216 + $0x18] sm:$0xff] %vm506, %v503
      %s511 = smul.u32 4, %s19
      %p512 = scmp.lt.s32.totalorder %s18, 1
      %s513 = scalar_select %p512, %s18, 1
      %p514 = scmp.lt.s32.totalorder %s511, 3
      %s515 = scalar_select %p514, %s511, 3
      %p516 = scmp.lt.s32.totalorder %s20, 0
      %s517 = scalar_select %p516, %s20, 0
      %s518 = sadd.s32 %s517, %s515
      %s519 = smul.addr %s513, 4
      %s520 = sadd.s32 %s518, %s519
      %s521 = smul.addr %s520, 8
      %s522 = scalar_lea.vmem %s2, %s521
      // Predicated region
      $region29: #{_lambda_.25} parent=27 // pred_check
        %p523 = pneg %p108
      $region30: #{_lambda_.25} parent=27 // pred_check_branch
        %525 = sbr.rel (%p523) target = $region32
      $region31: #{_lambda_.25} parent=27 // pred_region
        %s526 = smul.u32 4, %s19
      $region32: #{_lambda_.25} parent=27 // pred_fallthru
        _
    $region28: #{_lambda_.25} parent=5 // pred_fallthru
      _
    %p527 = scmp.le.s32.totalorder 2, %s8
    // Predicated region
    $region33: #{_lambda_.25} parent=5 // pred_check
      %p528 = pneg %p527
    $region34: #{_lambda_.25} parent=5 // pred_check_branch
      %530 = sbr.rel (%p528) target = $region36
    $region35: #{_lambda_.25} parent=5 // pred_region
      %s531 = ssub.s32 %s8, 2
      // Predicated region
      $region37: #{_lambda_.25} parent=35 // pred_check
        %p532 = pneg %p114
      $region38: #{_lambda_.25} parent=35 // pred_check_branch
        %534 = sbr.rel (%p532) target = $region40
      $region39: #{_lambda_.25} parent=35 // pred_region
        %s535 = smul.u32 4, %s22
        %p536 = scmp.lt.s32.totalorder %s21, 1
        %s537 = scalar_select %p536, %s21, 1
        %p538 = scmp.lt.s32.totalorder %s535, 3
        %s539 = scalar_select %p538, %s535, 3
        %p540 = scmp.lt.s32.totalorder %s23, 0
        %s541 = scalar_select %p540, %s23, 0
        %s542 = sadd.s32 %s541, %s539
        %s543 = smul.addr %s537, 4
        %s544 = sadd.s32 %s542, %s543
        %s545 = smul.addr %s544, 8
        %s546 = scalar_lea.vmem %s2, %s545
      $region40: #{_lambda_.25} parent=35 // pred_fallthru
        _
    $region36: #{_lambda_.25} parent=5 // pred_fallthru
      _
  $region6: #{_lambda_.25} parent=0 // loop_footer
    %s12 = sadd.s32 1, %s8
  $region7: #{_lambda_.25} parent=0 // loop_footer_branch
    %7 = sbr.rel target = $region3
  $region8: #{_lambda_.25} parent=0 // loop_exit
    _

// kernel: _lambda_.28
$region0: #{_lambda_.28}
  #allocation0 [shape = 'u32[]', space=smem, size = 0x4, offset = 0x4, fixed_abs, tag = 'smem constant byte address 0x4 - core index']
  #allocation1 [shape = 'u32[144,128]{1,0:T(1,128)}', space=vmem, size = 0x12000, scoped, tag = 'internal scratch']
  %s0 = inlined_call_operand.vmem [shape: f32[2,32,16], index: 0, kind: input, shape index: {}]
  %s1 = inlined_call_operand.vmem [shape: f32[32,1], index: 1, kind: input, shape index: {}]
  %s2 = inlined_call_operand.vmem [shape: f32[32,1], index: 2, kind: input, shape index: {}]
  %s3 = inlined_call_operand.vmem [shape: f32[2,32,16], index: 3, kind: input, shape index: {}]
  %s4 = inlined_call_operand.vmem [shape: f32[2,32,16], index: 4, kind: output, shape index: {}]
  %s5 = sld [smem:[#allocation0]]
  $region49: #{_lambda_.28} parent=0
    _
  %s7 = ssub.s32 1, %s5
  %s8 = scalar_select 0, %s7, %s5
  loop: start=0, step=1, limit=10
  $region2: #{_lambda_.28} parent=0 // loop_pre_header
    _
  $region3: #{_lambda_.28} parent=0 // loop_header
    %s10 = sphi 0, %s14
    %p11 = scmp.ge.s32.totalorder %s10, 10
    %s17 = sphi 0, %s29
    %s18 = sphi 0, %s25
    %s19 = sphi 0, %s17
    %s20 = sphi 0, %s18
    %s21 = sphi 0, %s19
    %s22 = sphi 0, %s20
    %s34 = sphi 0, %s36
    %s37 = sphi 0, %s34
    %s38 = sphi 0, %s37
    %s54 = sphi 0, %s38
    %s60 = sphi 0, %s62
    %s63 = sphi 0, %s60
    %s64 = sphi 0, %s63
    %s80 = sphi 0, %s64
    %s86 = sphi 0, %s88
    %s89 = sphi 0, %s86
    %s90 = sphi 0, %s89
    %s106 = sphi 0, %s90
    %s114 = sphi 0, %s116
    %s117 = sphi 0, %s114
    %s118 = sphi 0, %s117
    %s134 = sphi 0, %s118
    %s142 = sphi 0, %s144
    %s145 = sphi 0, %s142
    %s146 = sphi 0, %s145
    %s162 = sphi 0, %s146
  $region4: #{_lambda_.28} parent=0 // loop_header_branch
    %13 = sbr.rel (%p11) target = $region8
  $region5: #{_lambda_.28} parent=0 // loop_body
    %s15 = ssub.s32 %s10, 1
    %s16 = ssub.s32 %s10, 2
    %s23 = sadd.s32 1, %s18
    %p24 = scmp.ge.s32.totalorder %s23, 4
    %s25 = scalar_select %p24, 0, %s23
    %s26 = sadd.s32 1, %s17
    %s27 = scalar_select %p24, %s26, %s17
    %p28 = scmp.ge.s32.totalorder %s27, 2
    %s29 = scalar_select %p28, 0, %s27
    %s30 = ssub.s32 %s17, %s29
    %s31 = ssub.s32 %s18, %s25
    %s32 = sor.u32 %s30, %s31
    %p33 = scmp.eq.s32.totalorder %s32, 0
    %s35 = sadd.s32 %s34, 1
    %s36 = scalar_select %p33, %s34, %s35
    %p39 = pneg %p33
    %p40 = scmp.eq.s32.totalorder %s10, 7
    %p41 = por %p39, %p40
    %p42 = scmp.ne.s32.totalorder %s34, %s37
    %p43 = scmp.eq.s32.totalorder %s10, 0
    %p44 = por %p42, %p43
    %p45 = scmp.ne.s32.totalorder %s34, %s37
    %p46 = scmp.eq.s32.totalorder %s15, 7
    %p47 = por %p45, %p46
    %p48 = scmp.ne.s32.totalorder %s37, %s38
    %p49 = scmp.eq.s32.totalorder %s15, 0
    %p50 = por %p48, %p49
    %p51 = scmp.ne.s32.totalorder %s37, %s38
    %p52 = scmp.eq.s32.totalorder %s16, 7
    %p53 = por %p51, %p52
    %p55 = scmp.ne.s32.totalorder %s38, %s54
    %p56 = scmp.eq.s32.totalorder %s16, 0
    %p57 = por %p55, %p56
    %s58 = ssub.s32 %s18, %s25
    %p59 = scmp.eq.s32.totalorder %s58, 0
    %s61 = sadd.s32 %s60, 1
    %s62 = scalar_select %p59, %s60, %s61
    %p65 = pneg %p59
    %p66 = scmp.eq.s32.totalorder %s10, 7
    %p67 = por %p65, %p66
    %p68 = scmp.ne.s32.totalorder %s60, %s63
    %p69 = scmp.eq.s32.totalorder %s10, 0
    %p70 = por %p68, %p69
    %p71 = scmp.ne.s32.totalorder %s60, %s63
    %p72 = scmp.eq.s32.totalorder %s15, 7
    %p73 = por %p71, %p72
    %p74 = scmp.ne.s32.totalorder %s63, %s64
    %p75 = scmp.eq.s32.totalorder %s15, 0
    %p76 = por %p74, %p75
    %p77 = scmp.ne.s32.totalorder %s63, %s64
    %p78 = scmp.eq.s32.totalorder %s16, 7
    %p79 = por %p77, %p78
    %p81 = scmp.ne.s32.totalorder %s64, %s80
    %p82 = scmp.eq.s32.totalorder %s16, 0
    %p83 = por %p81, %p82
    %s84 = ssub.s32 %s18, %s25
    %p85 = scmp.eq.s32.totalorder %s84, 0
    %s87 = sadd.s32 %s86, 1
    %s88 = scalar_select %p85, %s86, %s87
    %p91 = pneg %p85
    %p92 = scmp.eq.s32.totalorder %s10, 7
    %p93 = por %p91, %p92
    %p94 = scmp.ne.s32.totalorder %s86, %s89
    %p95 = scmp.eq.s32.totalorder %s10, 0
    %p96 = por %p94, %p95
    %p97 = scmp.ne.s32.totalorder %s86, %s89
    %p98 = scmp.eq.s32.totalorder %s15, 7
    %p99 = por %p97, %p98
    %p100 = scmp.ne.s32.totalorder %s89, %s90
    %p101 = scmp.eq.s32.totalorder %s15, 0
    %p102 = por %p100, %p101
    %p103 = scmp.ne.s32.totalorder %s89, %s90
    %p104 = scmp.eq.s32.totalorder %s16, 7
    %p105 = por %p103, %p104
    %p107 = scmp.ne.s32.totalorder %s90, %s106
    %p108 = scmp.eq.s32.totalorder %s16, 0
    %p109 = por %p107, %p108
    %s110 = ssub.s32 %s17, %s29
    %s111 = ssub.s32 %s18, %s25
    %s112 = sor.u32 %s110, %s111
    %p113 = scmp.eq.s32.totalorder %s112, 0
    %s115 = sadd.s32 %s114, 1
    %s116 = scalar_select %p113, %s114, %s115
    %p119 = pneg %p113
    %p120 = scmp.eq.s32.totalorder %s10, 7
    %p121 = por %p119, %p120
    %p122 = scmp.ne.s32.totalorder %s114, %s117
    %p123 = scmp.eq.s32.totalorder %s10, 0
    %p124 = por %p122, %p123
    %p125 = scmp.ne.s32.totalorder %s114, %s117
    %p126 = scmp.eq.s32.totalorder %s15, 7
    %p127 = por %p125, %p126
    %p128 = scmp.ne.s32.totalorder %s117, %s118
    %p129 = scmp.eq.s32.totalorder %s15, 0
    %p130 = por %p128, %p129
    %p131 = scmp.ne.s32.totalorder %s117, %s118
    %p132 = scmp.eq.s32.totalorder %s16, 7
    %p133 = por %p131, %p132
    %p135 = scmp.ne.s32.totalorder %s118, %s134
    %p136 = scmp.eq.s32.totalorder %s16, 0
    %p137 = por %p135, %p136
    %s138 = ssub.s32 %s17, %s29
    %s139 = ssub.s32 %s18, %s25
    %s140 = sor.u32 %s138, %s139
    %p141 = scmp.eq.s32.totalorder %s140, 0
    %s143 = sadd.s32 %s142, 1
    %s144 = scalar_select %p141, %s142, %s143
    %p147 = pneg %p141
    %p148 = scmp.eq.s32.totalorder %s10, 7
    %p149 = por %p147, %p148
    %p150 = scmp.ne.s32.totalorder %s142, %s145
    %p151 = scmp.eq.s32.totalorder %s10, 0
    %p152 = por %p150, %p151
    %p153 = scmp.ne.s32.totalorder %s142, %s145
    %p154 = scmp.eq.s32.totalorder %s15, 7
    %p155 = por %p153, %p154
    %p156 = scmp.ne.s32.totalorder %s145, %s146
    %p157 = scmp.eq.s32.totalorder %s15, 0
    %p158 = por %p156, %p157
    %p159 = scmp.ne.s32.totalorder %s145, %s146
    %p160 = scmp.eq.s32.totalorder %s16, 7
    %p161 = por %p159, %p160
    %p163 = scmp.ne.s32.totalorder %s146, %s162
    %p164 = scmp.eq.s32.totalorder %s16, 0
    %p165 = por %p163, %p164
    %p166 = scmp.le.s32.totalorder 1, %s10
    %p167 = scmp.lt.s32.totalorder %s10, 9
    %p168 = pnand %p166, %p167
    %p169 = pneg %p168
    // Predicated region
    $region9: #{_lambda_.28} parent=5 // pred_check
      _
    $region10: #{_lambda_.28} parent=5 // pred_check_branch
      %171 = sbr.rel (%p168) target = $region12
    $region11: #{_lambda_.28} parent=5 // pred_region
      %s172 = ssub.s32 %s10, 1
    $region12: #{_lambda_.28} parent=5 // pred_fallthru
      _
    %p173 = scmp.lt.s32.totalorder %s10, 8
    // Predicated region
    $region13: #{_lambda_.28} parent=5 // pred_check
      %p174 = pneg %p173
    $region14: #{_lambda_.28} parent=5 // pred_check_branch
      %176 = sbr.rel (%p174) target = $region16
    $region15: #{_lambda_.28} parent=5 // pred_region
      // Predicated region
      $region17: #{_lambda_.28} parent=15 // pred_check
        %p177 = pneg %p44
      $region18: #{_lambda_.28} parent=15 // pred_check_branch
        %179 = sbr.rel (%p177) target = $region20
      $region19: #{_lambda_.28} parent=15 // pred_region
        %p180 = scmp.lt.s32.totalorder %s17, 1
        %s181 = scalar_select %p180, %s17, 1
        %p182 = scmp.lt.s32.totalorder %s18, 3
        %s183 = scalar_select %p182, %s18, 3
        %s184 = smul.addr %s181, 4
        %s185 = sadd.s32 %s183, %s184
        %s186 = smul.addr %s185, 8
        %s187 = scalar_lea.vmem %s0, %s186
      $region20: #{_lambda_.28} parent=15 // pred_fallthru
        _
      // Predicated region
      $region21: #{_lambda_.28} parent=15 // pred_check
        %p188 = pneg %p70
      $region22: #{_lambda_.28} parent=15 // pred_check_branch
        %190 = sbr.rel (%p188) target = $region24
      $region23: #{_lambda_.28} parent=15 // pred_region
        %p191 = scmp.lt.s32.totalorder %s18, 3
        %s192 = scalar_select %p191, %s18, 3
        %s193 = smul.addr %s192, 8
        %s194 = scalar_lea.vmem %s1, %s193
      $region24: #{_lambda_.28} parent=15 // pred_fallthru
        _
      // Predicated region
      $region25: #{_lambda_.28} parent=15 // pred_check
        %p195 = pneg %p96
      $region26: #{_lambda_.28} parent=15 // pred_check_branch
        %197 = sbr.rel (%p195) target = $region28
      $region27: #{_lambda_.28} parent=15 // pred_region
        %p198 = scmp.lt.s32.totalorder %s18, 3
        %s199 = scalar_select %p198, %s18, 3
        %s200 = smul.addr %s199, 8
        %s201 = scalar_lea.vmem %s2, %s200
      $region28: #{_lambda_.28} parent=15 // pred_fallthru
        _
      // Predicated region
      $region29: #{_lambda_.28} parent=15 // pred_check
        %p202 = pneg %p124
      $region30: #{_lambda_.28} parent=15 // pred_check_branch
        %204 = sbr.rel (%p202) target = $region32
      $region31: #{_lambda_.28} parent=15 // pred_region
        %p205 = scmp.lt.s32.totalorder %s17, 1
        %s206 = scalar_select %p205, %s17, 1
        %p207 = scmp.lt.s32.totalorder %s18, 3
        %s208 = scalar_select %p207, %s18, 3
        %s209 = smul.addr %s206, 4
        %s210 = sadd.s32 %s208, %s209
        %s211 = smul.addr %s210, 8
        %s212 = scalar_lea.vmem %s3, %s211
      $region32: #{_lambda_.28} parent=15 // pred_fallthru
        _
    $region16: #{_lambda_.28} parent=5 // pred_fallthru
      _
    %p213 = scmp.le.s32.totalorder 1, %s10
    %p214 = scmp.lt.s32.totalorder %s10, 9
    %p215 = pnand %p213, %p214
    %p216 = pneg %p215
    // Predicated region
    $region33: #{_lambda_.28} parent=5 // pred_check
      _
    $region34: #{_lambda_.28} parent=5 // pred_check_branch
      %218 = sbr.rel (%p215) target = $region36
    $region35: #{_lambda_.28} parent=5 // pred_region
      %s219 = ssub.s32 %s10, 1
      %p220 = scmp.lt.s32.totalorder %s19, 1
      %s221 = scalar_select %p220, %s19, 1
      %p222 = scmp.lt.s32.totalorder %s20, 3
      %s223 = scalar_select %p222, %s20, 3
      %s224 = smul.addr %s221, 4
      %s225 = sadd.s32 %s223, %s224
      %s226 = smul.addr %s225, 8
      %s227 = scalar_lea.vmem %s0, %s226
      %p228 = pneg %p50
      %p229 = pneg %p47
      %p230 = scmp.lt.s32.totalorder %s20, 3
      %s231 = scalar_select %p230, %s20, 3
      %s232 = smul.addr %s231, 8
      %s233 = scalar_lea.vmem %s1, %s232
      %p234 = pneg %p76
      %p235 = pneg %p73
      %p236 = scmp.lt.s32.totalorder %s20, 3
      %s237 = scalar_select %p236, %s20, 3
      %s238 = smul.addr %s237, 8
      %s239 = scalar_lea.vmem %s2, %s238
      %p240 = pneg %p102
      %p241 = pneg %p99
      %p242 = scmp.lt.s32.totalorder %s19, 1
      %s243 = scalar_select %p242, %s19, 1
      %p244 = scmp.lt.s32.totalorder %s20, 3
      %s245 = scalar_select %p244, %s20, 3
      %s246 = smul.addr %s243, 4
      %s247 = sadd.s32 %s245, %s246
      %s248 = smul.addr %s247, 8
      %s249 = scalar_lea.vmem %s3, %s248
      %p250 = pneg %p130
      %p251 = pneg %p127
      %p252 = pneg %p158
      %p253 = pneg %p155
      %p254 = scmp.lt.s32.totalorder %s19, 1
      %s255 = scalar_select %p254, %s19, 1
      %p256 = scmp.lt.s32.totalorder %s20, 3
      %s257 = scalar_select %p256, %s20, 3
      %s258 = smul.addr %s255, 4
      %s259 = sadd.s32 %s257, %s258
      %s260 = smul.addr %s259, 8
      %s261 = scalar_lea.vmem %s4, %s260
      %p262 = scmp.lt.s32.totalorder %s19, 1
      %s263 = scalar_select %p262, %s19, 1
      %p264 = scmp.lt.s32.totalorder %s20, 3
      %s265 = scalar_select %p264, %s20, 3
      %s266 = smul.addr %s263, 4
      %s267 = sadd.s32 %s265, %s266
      %s268 = smul.addr %s267, 8
      %s269 = scalar_lea.vmem %s0, %s268
      %p270 = scmp.lt.s32.totalorder %s20, 3
      %s271 = scalar_select %p270, %s20, 3
      %s272 = smul.addr %s271, 8
      %s273 = scalar_lea.vmem %s1, %s272
      %p274 = scmp.lt.s32.totalorder %s20, 3
      %s275 = scalar_select %p274, %s20, 3
      %s276 = smul.addr %s275, 8
      %s277 = scalar_lea.vmem %s2, %s276
      %p278 = scmp.lt.s32.totalorder %s19, 1
      %s279 = scalar_select %p278, %s19, 1
      %p280 = scmp.lt.s32.totalorder %s20, 3
      %s281 = scalar_select %p280, %s20, 3
      %s282 = smul.addr %s279, 4
      %s283 = sadd.s32 %s281, %s282
      %s284 = smul.addr %s283, 8
      %s285 = scalar_lea.vmem %s3, %s284
      %p286 = scmp.lt.s32.totalorder %s19, 1
      %s287 = scalar_select %p286, %s19, 1
      %p288 = scmp.lt.s32.totalorder %s20, 3
      %s289 = scalar_select %p288, %s20, 3
      %s290 = smul.addr %s287, 4
      %s291 = sadd.s32 %s289, %s290
      %s292 = smul.addr %s291, 8
      %s293 = scalar_lea.vmem %s4, %s292
      %v294 = vld [vmem:[%s269] sm:$0xff]
      %v295 = vld [vmem:[%s273] sm:$0xff]
      %v296 = vld [vmem:[%s277] sm:$0xff]
      %vm297 = vcmask 130048
      %v298 = vsel %vm297, %v294, 0.0
      %299 = vadd.xlane.f32.xlu0 %v298
      %v300 = vpop.xlane.xlu0 %299
      %v301 = vrcp.pop 16.0
      %v302 = vmul.f32 %v300, %v301
      %v303 = vsub.f32 %v294, %v302
      %v304 = vmul.f32 %v303, %v303
      %v305 = vsel %vm297, %v304, 0.0
      %306 = vadd.xlane.f32.xlu0 %v305
      %v307 = vpop.xlane.xlu0 %306
      %v308 = vmul.f32 %v307, %v301
      %v309 = vadd.f32 %v308, 1e-05
      %v310 = vrsqrt.pop %v309
      %v311 = vmul.f32 %v303, %v310
      %313 = vset.pattern.permute.xlu0 0
      %314 = vperm.xlu0 %313, %v295
      %v315 = vpop.permute.xlu0 %314
      %v317 = vmul.f32 %v311, %v315
      %319 = vset.pattern.permute.xlu0 0
      %320 = vperm.xlu0 %319, %v296
      %v321 = vpop.permute.xlu0 %320
      %v323 = vadd.f32 %v317, %v321
      %v324 = vld [vmem:[%s285] sm:$0xff]
      %v325 = vadd.f32 %v323, %v324
      %326 = vst.msk [vmem:[%s293] sm:$0xff] %vm297, %v325
      %p327 = scmp.lt.s32.totalorder %s19, 1
      %s328 = scalar_select %p327, %s19, 1
      %p329 = scmp.lt.s32.totalorder %s20, 3
      %s330 = scalar_select %p329, %s20, 3
      %s331 = smul.addr %s328, 4
      %s332 = sadd.s32 %s330, %s331
      %s333 = smul.addr %s332, 8
      %s334 = scalar_lea.vmem %s4, %s333
      // Predicated region
      $region37: #{_lambda_.28} parent=35 // pred_check
        %p335 = pneg %p155
      $region38: #{_lambda_.28} parent=35 // pred_check_branch
        %337 = sbr.rel (%p335) target = $region40
      $region39: #{_lambda_.28} parent=35 // pred_region
        _
      $region40: #{_lambda_.28} parent=35 // pred_fallthru
        _
    $region36: #{_lambda_.28} parent=5 // pred_fallthru
      _
    %p338 = scmp.le.s32.totalorder 2, %s10
    // Predicated region
    $region41: #{_lambda_.28} parent=5 // pred_check
      %p339 = pneg %p338
    $region42: #{_lambda_.28} parent=5 // pred_check_branch
      %341 = sbr.rel (%p339) target = $region44
    $region43: #{_lambda_.28} parent=5 // pred_region
      %s342 = ssub.s32 %s10, 2
      // Predicated region
      $region45: #{_lambda_.28} parent=43 // pred_check
        %p343 = pneg %p161
      $region46: #{_lambda_.28} parent=43 // pred_check_branch
        %345 = sbr.rel (%p343) target = $region48
      $region47: #{_lambda_.28} parent=43 // pred_region
        %p346 = scmp.lt.s32.totalorder %s21, 1
        %s347 = scalar_select %p346, %s21, 1
        %p348 = scmp.lt.s32.totalorder %s22, 3
        %s349 = scalar_select %p348, %s22, 3
        %s350 = smul.addr %s347, 4
        %s351 = sadd.s32 %s349, %s350
        %s352 = smul.addr %s351, 8
        %s353 = scalar_lea.vmem %s4, %s352
      $region48: #{_lambda_.28} parent=43 // pred_fallthru
        _
    $region44: #{_lambda_.28} parent=5 // pred_fallthru
      _
  $region6: #{_lambda_.28} parent=0 // loop_footer
    %s14 = sadd.s32 1, %s10
  $region7: #{_lambda_.28} parent=0 // loop_footer_branch
    %9 = sbr.rel target = $region3
  $region8: #{_lambda_.28} parent=0 // loop_exit
    _

// kernel: _lambda_.33
$region0: #{_lambda_.33}
  #allocation0 [shape = 'u32[]', space=smem, size = 0x4, offset = 0x4, fixed_abs, tag = 'smem constant byte address 0x4 - core index']
  #allocation1 [shape = 'u32[144,128]{1,0:T(1,128)}', space=vmem, size = 0x12000, scoped, tag = 'internal scratch']
  %s0 = inlined_call_operand.vmem [shape: bf16[64,128], index: 0, kind: input, shape index: {}]
  %s1 = inlined_call_operand.vmem [shape: bf16[2,128,25], index: 1, kind: input, shape index: {}]
  %s2 = inlined_call_operand.vmem [shape: f32[2,64,25], index: 2, kind: output, shape index: {}]
  %s3 = sld [smem:[#allocation0]]
  $region41: #{_lambda_.33} parent=0
    _
  %s5 = ssub.s32 1, %s3
  %s6 = scalar_select 0, %s5, %s3
  loop: start=0, step=1, limit=4
  $region2: #{_lambda_.33} parent=0 // loop_pre_header
    _
  $region3: #{_lambda_.33} parent=0 // loop_header
    %s8 = sphi 0, %s12
    %p9 = scmp.ge.s32.totalorder %s8, 4
    %s15 = sphi 0, %s34
    %s16 = sphi 0, %s30
    %s17 = sphi 0, %s26
    %s18 = sphi 0, %s15
    %s19 = sphi 0, %s16
    %s20 = sphi 0, %s17
    %s21 = sphi 0, %s18
    %s22 = sphi 0, %s19
    %s23 = sphi 0, %s20
    %s37 = sphi 0, %s39
    %s40 = sphi 0, %s37
    %s41 = sphi 0, %s40
    %s57 = sphi 0, %s41
    %s65 = sphi 0, %s67
    %s68 = sphi 0, %s65
    %s69 = sphi 0, %s68
    %s85 = sphi 0, %s69
    %s95 = sphi 0, %s97
    %s98 = sphi 0, %s95
    %s99 = sphi 0, %s98
    %s115 = sphi 0, %s99
  $region4: #{_lambda_.33} parent=0 // loop_header_branch
    %11 = sbr.rel (%p9) target = $region8
  $region5: #{_lambda_.33} parent=0 // loop_body
    %s13 = ssub.s32 %s8, 1
    %s14 = ssub.s32 %s8, 2
    %s24 = sadd.s32 1, %s17
    %p25 = scmp.ge.s32.totalorder %s24, 1
    %s26 = scalar_select %p25, 0, %s24
    %s27 = sadd.s32 1, %s16
    %s28 = scalar_select %p25, %s27, %s16
    %p29 = scmp.ge.s32.totalorder %s28, 1
    %s30 = scalar_select %p29, 0, %s28
    %s31 = sadd.s32 1, %s15
    %s32 = scalar_select %p29, %s31, %s15
    %p33 = scmp.ge.s32.totalorder %s32, 2
    %s34 = scalar_select %p33, 0, %s32
    %s35 = ssub.s32 %s16, %s30
    %p36 = scmp.eq.s32.totalorder %s35, 0
    %s38 = sadd.s32 %s37, 1
    %s39 = scalar_select %p36, %s37, %s38
    %p42 = pneg %p36
    %p43 = scmp.eq.s32.totalorder %s8, 1
    %p44 = por %p42, %p43
    %p45 = scmp.ne.s32.totalorder %s37, %s40
    %p46 = scmp.eq.s32.totalorder %s8, 0
    %p47 = por %p45, %p46
    %p48 = scmp.ne.s32.totalorder %s37, %s40
    %p49 = scmp.eq.s32.totalorder %s13, 1
    %p50 = por %p48, %p49
    %p51 = scmp.ne.s32.totalorder %s40, %s41
    %p52 = scmp.eq.s32.totalorder %s13, 0
    %p53 = por %p51, %p52
    %p54 = scmp.ne.s32.totalorder %s40, %s41
    %p55 = scmp.eq.s32.totalorder %s14, 1
    %p56 = por %p54, %p55
    %p58 = scmp.ne.s32.totalorder %s41, %s57
    %p59 = scmp.eq.s32.totalorder %s14, 0
    %p60 = por %p58, %p59
    %s61 = ssub.s32 %s15, %s34
    %s62 = ssub.s32 %s17, %s26
    %s63 = sor.u32 %s61, %s62
    %p64 = scmp.eq.s32.totalorder %s63, 0
    %s66 = sadd.s32 %s65, 1
    %s67 = scalar_select %p64, %s65, %s66
    %p70 = pneg %p64
    %p71 = scmp.eq.s32.totalorder %s8, 1
    %p72 = por %p70, %p71
    %p73 = scmp.ne.s32.totalorder %s65, %s68
    %p74 = scmp.eq.s32.totalorder %s8, 0
    %p75 = por %p73, %p74
    %p76 = scmp.ne.s32.totalorder %s65, %s68
    %p77 = scmp.eq.s32.totalorder %s13, 1
    %p78 = por %p76, %p77
    %p79 = scmp.ne.s32.totalorder %s68, %s69
    %p80 = scmp.eq.s32.totalorder %s13, 0
    %p81 = por %p79, %p80
    %p82 = scmp.ne.s32.totalorder %s68, %s69
    %p83 = scmp.eq.s32.totalorder %s14, 1
    %p84 = por %p82, %p83
    %p86 = scmp.ne.s32.totalorder %s69, %s85
    %p87 = scmp.eq.s32.totalorder %s14, 0
    %p88 = por %p86, %p87
    %s89 = ssub.s32 %s15, %s34
    %s90 = ssub.s32 %s16, %s30
    %s91 = sor.u32 %s89, %s90
    %s92 = ssub.s32 %s17, %s26
    %s93 = sor.u32 %s91, %s92
    %p94 = scmp.eq.s32.totalorder %s93, 0
    %s96 = sadd.s32 %s95, 1
    %s97 = scalar_select %p94, %s95, %s96
    %p100 = pneg %p94
    %p101 = scmp.eq.s32.totalorder %s8, 1
    %p102 = por %p100, %p101
    %p103 = scmp.ne.s32.totalorder %s95, %s98
    %p104 = scmp.eq.s32.totalorder %s8, 0
    %p105 = por %p103, %p104
    %p106 = scmp.ne.s32.totalorder %s95, %s98
    %p107 = scmp.eq.s32.totalorder %s13, 1
    %p108 = por %p106, %p107
    %p109 = scmp.ne.s32.totalorder %s98, %s99
    %p110 = scmp.eq.s32.totalorder %s13, 0
    %p111 = por %p109, %p110
    %p112 = scmp.ne.s32.totalorder %s98, %s99
    %p113 = scmp.eq.s32.totalorder %s14, 1
    %p114 = por %p112, %p113
    %p116 = scmp.ne.s32.totalorder %s99, %s115
    %p117 = scmp.eq.s32.totalorder %s14, 0
    %p118 = por %p116, %p117
    %p119 = scmp.le.s32.totalorder 1, %s8
    %p120 = scmp.lt.s32.totalorder %s8, 3
    %p121 = pnand %p119, %p120
    %p122 = pneg %p121
    // Predicated region
    $region9: #{_lambda_.33} parent=5 // pred_check
      _
    $region10: #{_lambda_.33} parent=5 // pred_check_branch
      %124 = sbr.rel (%p121) target = $region12
    $region11: #{_lambda_.33} parent=5 // pred_region
      %s125 = ssub.s32 %s8, 1
      // Predicated region
      $region13: #{_lambda_.33} parent=11 // pred_check
        %p126 = pneg %p53
      $region14: #{_lambda_.33} parent=11 // pred_check_branch
        %128 = sbr.rel (%p126) target = $region16
      $region15: #{_lambda_.33} parent=11 // pred_region
        %s129 = smul.u32 8, %s19
        %p130 = scmp.lt.s32.totalorder %s129, 7
        %s131 = scalar_select %p130, %s129, 7
        %s132 = smul.addr %s131, 4
        %s133 = scalar_lea.vmem %s0, %s132
        %s134 = smul.u32 8, %s19
      $region16: #{_lambda_.33} parent=11 // pred_fallthru
        _
    $region12: #{_lambda_.33} parent=5 // pred_fallthru
      _
    %p135 = scmp.lt.s32.totalorder %s8, 2
    // Predicated region
    $region17: #{_lambda_.33} parent=5 // pred_check
      %p136 = pneg %p135
    $region18: #{_lambda_.33} parent=5 // pred_check_branch
      %138 = sbr.rel (%p136) target = $region20
    $region19: #{_lambda_.33} parent=5 // pred_region
      // Predicated region
      $region21: #{_lambda_.33} parent=19 // pred_check
        %p139 = pneg %p75
      $region22: #{_lambda_.33} parent=19 // pred_check_branch
        %141 = sbr.rel (%p139) target = $region24
      $region23: #{_lambda_.33} parent=19 // pred_region
        %p142 = scmp.lt.s32.totalorder %s15, 1
        %s143 = scalar_select %p142, %s15, 1
        %p144 = scmp.lt.s32.totalorder %s17, 0
        %s145 = scalar_select %p144, %s17, 0
        %s146 = smul.addr %s143, 16
        %s147 = sadd.s32 %s145, %s146
        %s148 = smul.addr %s147, 4
        %s149 = scalar_lea.vmem %s1, %s148
      $region24: #{_lambda_.33} parent=19 // pred_fallthru
        _
    $region20: #{_lambda_.33} parent=5 // pred_fallthru
      _
    %p150 = scmp.le.s32.totalorder 1, %s8
    %p151 = scmp.lt.s32.totalorder %s8, 3
    %p152 = pnand %p150, %p151
    %p153 = pneg %p152
    // Predicated region
    $region25: #{_lambda_.33} parent=5 // pred_check
      _
    $region26: #{_lambda_.33} parent=5 // pred_check_branch
      %155 = sbr.rel (%p152) target = $region28
    $region27: #{_lambda_.33} parent=5 // pred_region
      %s156 = ssub.s32 %s8, 1
      %s157 = smul.u32 8, %s19
      %p158 = scmp.lt.s32.totalorder %s157, 7
      %s159 = scalar_select %p158, %s157, 7
      %s160 = smul.addr %s159, 4
      %s161 = scalar_lea.vmem %s0, %s160
      %p162 = pneg %p53
      %p163 = pneg %p50
      %p164 = scmp.lt.s32.totalorder %s18, 1
      %s165 = scalar_select %p164, %s18, 1
      %p166 = scmp.lt.s32.totalorder %s20, 0
      %s167 = scalar_select %p166, %s20, 0
      %s168 = smul.addr %s165, 16
      %s169 = sadd.s32 %s167, %s168
      %s170 = smul.addr %s169, 4
      %s171 = scalar_lea.vmem %s1, %s170
      %p172 = pneg %p81
      %p173 = pneg %p78
      %p174 = pneg %p111
      %p175 = pneg %p108
      %s176 = smul.u32 8, %s19
      %p177 = scmp.lt.s32.totalorder %s18, 1
      %s178 = scalar_select %p177, %s18, 1
      %p179 = scmp.lt.s32.totalorder %s176, 7
      %s180 = scalar_select %p179, %s176, 7
      %p181 = scmp.lt.s32.totalorder %s20, 0
      %s182 = scalar_select %p181, %s20, 0
      %s183 = sadd.s32 %s182, %s180
      %s184 = smul.addr %s178, 8
      %s185 = sadd.s32 %s183, %s184
      %s186 = smul.addr %s185, 8
      %s187 = scalar_lea.vmem %s2, %s186
      %s188 = smul.u32 8, %s19
      %p189 = scmp.lt.s32.totalorder %s188, 7
      %s190 = scalar_select %p189, %s188, 7
      %s191 = smul.addr %s190, 4
      %s192 = scalar_lea.vmem %s0, %s191
      %s193 = smul.u32 8, %s19
      %p194 = scmp.lt.s32.totalorder %s18, 1
      %s195 = scalar_select %p194, %s18, 1
      %p196 = scmp.lt.s32.totalorder %s20, 0
      %s197 = scalar_select %p196, %s20, 0
      %s198 = smul.addr %s195, 16
      %s199 = sadd.s32 %s197, %s198
      %s200 = smul.addr %s199, 4
      %s201 = scalar_lea.vmem %s1, %s200
      %s202 = smul.u32 8, %s19
      %p203 = scmp.lt.s32.totalorder %s18, 1
      %s204 = scalar_select %p203, %s18, 1
      %p205 = scmp.lt.s32.totalorder %s202, 7
      %s206 = scalar_select %p205, %s202, 7
      %p207 = scmp.lt.s32.totalorder %s20, 0
      %s208 = scalar_select %p207, %s20, 0
      %s209 = sadd.s32 %s208, %s206
      %s210 = smul.addr %s204, 8
      %s211 = sadd.s32 %s209, %s210
      %s212 = smul.addr %s211, 8
      %s213 = scalar_lea.vmem %s2, %s212
      %s214 = smul.u32 8, %s19
      %v216 = vld [vmem:[%s192] sm:$0xf]
      %v217 = vld [vmem:[%s192 + $0x4] sm:$0xf]
      %v218 = vld [vmem:[%s192 + $0x8] sm:$0xf]
      %v219 = vld [vmem:[%s192 + $0xc] sm:$0xf]
      %v220 = vld [vmem:[%s192 + $0x10] sm:$0xf]
      %v221 = vld [vmem:[%s192 + $0x14] sm:$0xf]
      %v222 = vld [vmem:[%s192 + $0x18] sm:$0xf]
      %v223 = vld [vmem:[%s192 + $0x1c] sm:$0xf]
      %v224 = vld [vmem:[%s201] sm:$0xf]
      %v225 = vld [vmem:[%s201 + $0x4] sm:$0xf]
      %v226 = vld [vmem:[%s201 + $0x8] sm:$0xf]
      %v227 = vld [vmem:[%s201 + $0xc] sm:$0xf]
      %v228 = vld [vmem:[%s201 + $0x10] sm:$0xf]
      %v229 = vld [vmem:[%s201 + $0x14] sm:$0xf]
      %v230 = vld [vmem:[%s201 + $0x18] sm:$0xf]
      %v231 = vld [vmem:[%s201 + $0x1c] sm:$0xf]
      %v232 = vld [vmem:[%s201 + $0x20] sm:$0xf]
      %v233 = vld [vmem:[%s201 + $0x24] sm:$0xf]
      %v234 = vld [vmem:[%s201 + $0x28] sm:$0xf]
      %v235 = vld [vmem:[%s201 + $0x2c] sm:$0xf]
      %v236 = vld [vmem:[%s201 + $0x30] sm:$0xf]
      %v237 = vld [vmem:[%s201 + $0x34] sm:$0xf]
      %v238 = vld [vmem:[%s201 + $0x38] sm:$0xf]
      %v239 = vld [vmem:[%s201 + $0x3c] sm:$0xf]
      %v248 = vunpack.c.l.b16 %v216
      %v249 = vunpack.c.l.b16 %v217
      %v250 = vunpack.c.l.b16 %v218
      %v251 = vunpack.c.l.b16 %v219
      %v252 = vunpack.c.l.b16 %v220
      %v253 = vunpack.c.l.b16 %v221
      %v254 = vunpack.c.l.b16 %v222
      %v255 = vunpack.c.l.b16 %v223
      %v256 = vpack.c.b16 %v249, %v248
      %v257 = vpack.c.b16 %v251, %v250
      %v258 = vpack.c.b16 %v253, %v252
      %v259 = vpack.c.b16 %v255, %v254
      %v280 = vunpack.c.l.b16 %v224
      %v281 = vunpack.c.l.b16 %v225
      %v282 = vunpack.c.l.b16 %v226
      %v283 = vunpack.c.l.b16 %v227
      %v284 = vunpack.c.l.b16 %v228
      %v285 = vunpack.c.l.b16 %v229
      %v286 = vunpack.c.l.b16 %v230
      %v287 = vunpack.c.l.b16 %v231
      %v288 = vunpack.c.l.b16 %v232
      %v289 = vunpack.c.l.b16 %v233
      %v290 = vunpack.c.l.b16 %v234
      %v291 = vunpack.c.l.b16 %v235
      %v292 = vunpack.c.l.b16 %v236
      %v293 = vunpack.c.l.b16 %v237
      %v294 = vunpack.c.l.b16 %v238
      %v295 = vunpack.c.l.b16 %v239
      %v296 = vpack.c.b16 %v281, %v280
      %v297 = vpack.c.b16 %v283, %v282
      %v298 = vpack.c.b16 %v285, %v284
      %v299 = vpack.c.b16 %v287, %v286
      %v300 = vpack.c.b16 %v289, %v288
      %v301 = vpack.c.b16 %v291, %v290
      %v302 = vpack.c.b16 %v293, %v292
      %v303 = vpack.c.b16 %v295, %v294
      %312 = vmatprep.subr.bf16.mxu0 0
      %313 = vmatpush1.bf16.msra.mxu0 %v296
      %314 = vmatprep.subr.bf16.mxu0 0
      %315 = vmatpush1.bf16.msra.mxu0 %v297
      %316 = vmatprep.subr.bf16.mxu0 0
      %317 = vmatpush1.bf16.msra.mxu0 %v298
      %318 = vmatprep.subr.bf16.mxu0 0
      %319 = vmatpush1.bf16.msra.mxu0 %v299
      %320 = vmatprep.subr.bf16.mxu0 0
      %321 = vmatpush1.bf16.msra.mxu0 %v300
      %322 = vmatprep.subr.bf16.mxu0 0
      %323 = vmatpush1.bf16.msra.mxu0 %v301
      %324 = vmatprep.subr.bf16.mxu0 0
      %325 = vmatpush1.bf16.msra.mxu0 %v302
      %326 = vmatprep.subr.bf16.mxu0 0
      %327 = vmatpush1.bf16.msra.mxu0 %v303
      %328 = vmatprep.subr.bf16.mxu0 0
      %329 = vmatpush1.bf16.msra.mxu0 0
      %330 = vmatprep.subr.bf16.mxu0 0
      %331 = vmatpush1.bf16.msra.mxu0 0
      %332 = vmatprep.subr.bf16.mxu0 0
      %333 = vmatpush1.bf16.msra.mxu0 0
      %334 = vmatprep.subr.bf16.mxu0 0
      %335 = vmatpush1.bf16.msra.mxu0 0
      %336 = vmatprep.subr.bf16.mxu0 0
      %337 = vmatpush1.bf16.msra.mxu0 0
      %338 = vmatprep.subr.bf16.mxu0 0
      %339 = vmatpush1.bf16.msra.mxu0 0
      %340 = vmatprep.subr.bf16.mxu0 0
      %341 = vmatpush1.bf16.msra.mxu0 0
      %342 = vmatprep.subr.bf16.mxu0 0
      %343 = vmatpush1.bf16.msra.mxu0 0
      %344 = vmatprep.mubr.bf16.mxu0 0
      %345 = vmatmul.mubr.bf16.gmra.mrb[0].mxu0 %v256
      %v346 = vpop.f32.mrb[0].mxu0
      %v347 = vadd.f32 0.0, %v346
      %v348 = vpop.f32.mrb[0].mxu0
      %v349 = vpop.f32.mrb[0].mxu0
      %v350 = vadd.f32 0.0, %v349
      %v351 = vpop.f32.mrb[0].mxu0
      %352 = vmatprep.mubr.bf16.mxu0 0
      %353 = vmatmul.mubr.bf16.gmra.mrb[0].mxu0 %v257
      %v354 = vpop.f32.mrb[0].mxu0
      %v355 = vadd.f32 0.0, %v354
      %v356 = vpop.f32.mrb[0].mxu0
      %v357 = vpop.f32.mrb[0].mxu0
      %v358 = vadd.f32 0.0, %v357
      %v359 = vpop.f32.mrb[0].mxu0
      %360 = vmatprep.mubr.bf16.mxu0 0
      %361 = vmatmul.mubr.bf16.gmra.mrb[0].mxu0 %v258
      %v362 = vpop.f32.mrb[0].mxu0
      %v363 = vadd.f32 0.0, %v362
      %v364 = vpop.f32.mrb[0].mxu0
      %v365 = vpop.f32.mrb[0].mxu0
      %v366 = vadd.f32 0.0, %v365
      %v367 = vpop.f32.mrb[0].mxu0
      %368 = vmatprep.mubr.bf16.mxu0 0
      %369 = vmatmul.mubr.bf16.gmra.mrb[0].mxu0 %v259
      %v370 = vpop.f32.mrb[0].mxu0
      %v371 = vadd.f32 0.0, %v370
      %v372 = vpop.f32.mrb[0].mxu0
      %v373 = vpop.f32.mrb[0].mxu0
      %v374 = vadd.f32 0.0, %v373
      %v375 = vpop.f32.mrb[0].mxu0
      %376 = vdwg.mxu0
      %vm377 = vcmask 203776
      %378 = vst.msk [vmem:[%s213] sm:$0xff] %vm377, %v347
      %379 = vst.msk [vmem:[%s213 + $0x8] sm:$0xff] %vm377, %v350
      %380 = vst.msk [vmem:[%s213 + $0x10] sm:$0xff] %vm377, %v355
      %381 = vst.msk [vmem:[%s213 + $0x18] sm:$0xff] %vm377, %v358
      %382 = vst.msk [vmem:[%s213 + $0x20] sm:$0xff] %vm377, %v363
      %383 = vst.msk [vmem:[%s213 + $0x28] sm:$0xff] %vm377, %v366
      %384 = vst.msk [vmem:[%s213 + $0x30] sm:$0xff] %vm377, %v371
      %385 = vst.msk [vmem:[%s213 + $0x38] sm:$0xff] %vm377, %v374
      %s386 = smul.u32 8, %s19
      %p387 = scmp.lt.s32.totalorder %s18, 1
      %s388 = scalar_select %p387, %s18, 1
      %p389 = scmp.lt.s32.totalorder %s386, 7
      %s390 = scalar_select %p389, %s386, 7
      %p391 = scmp.lt.s32.totalorder %s20, 0
      %s392 = scalar_select %p391, %s20, 0
      %s393 = sadd.s32 %s392, %s390
      %s394 = smul.addr %s388, 8
      %s395 = sadd.s32 %s393, %s394
      %s396 = smul.addr %s395, 8
      %s397 = scalar_lea.vmem %s2, %s396
      // Predicated region
      $region29: #{_lambda_.33} parent=27 // pred_check
        %p398 = pneg %p108
      $region30: #{_lambda_.33} parent=27 // pred_check_branch
        %400 = sbr.rel (%p398) target = $region32
      $region31: #{_lambda_.33} parent=27 // pred_region
        %s401 = smul.u32 8, %s19
      $region32: #{_lambda_.33} parent=27 // pred_fallthru
        _
    $region28: #{_lambda_.33} parent=5 // pred_fallthru
      _
    %p402 = scmp.le.s32.totalorder 2, %s8
    // Predicated region
    $region33: #{_lambda_.33} parent=5 // pred_check
      %p403 = pneg %p402
    $region34: #{_lambda_.33} parent=5 // pred_check_branch
      %405 = sbr.rel (%p403) target = $region36
    $region35: #{_lambda_.33} parent=5 // pred_region
      %s406 = ssub.s32 %s8, 2
      // Predicated region
      $region37: #{_lambda_.33} parent=35 // pred_check
        %p407 = pneg %p114
      $region38: #{_lambda_.33} parent=35 // pred_check_branch
        %409 = sbr.rel (%p407) target = $region40
      $region39: #{_lambda_.33} parent=35 // pred_region
        %s410 = smul.u32 8, %s22
        %p411 = scmp.lt.s32.totalorder %s21, 1
        %s412 = scalar_select %p411, %s21, 1
        %p413 = scmp.lt.s32.totalorder %s410, 7
        %s414 = scalar_select %p413, %s410, 7
        %p415 = scmp.lt.s32.totalorder %s23, 0
        %s416 = scalar_select %p415, %s23, 0
        %s417 = sadd.s32 %s416, %s414
        %s418 = smul.addr %s412, 8
        %s419 = sadd.s32 %s417, %s418
        %s420 = smul.addr %s419, 8
        %s421 = scalar_lea.vmem %s2, %s420
      $region40: #{_lambda_.33} parent=35 // pred_fallthru
        _
    $region36: #{_lambda_.33} parent=5 // pred_fallthru
      _
  $region6: #{_lambda_.33} parent=0 // loop_footer
    %s12 = sadd.s32 1, %s8
  $region7: #{_lambda_.33} parent=0 // loop_footer_branch
    %7 = sbr.rel target = $region3
  $region8: #{_lambda_.33} parent=0 // loop_exit
    _

// kernel: _lambda_.35
$region0: #{_lambda_.35}
  #allocation0 [shape = 'u32[]', space=smem, size = 0x4, offset = 0x4, fixed_abs, tag = 'smem constant byte address 0x4 - core index']
  #allocation1 [shape = 'u32[144,128]{1,0:T(1,128)}', space=vmem, size = 0x12000, scoped, tag = 'internal scratch']
  %s0 = inlined_call_operand.vmem [shape: bf16[32,64], index: 0, kind: input, shape index: {}]
  %s1 = inlined_call_operand.vmem [shape: bf16[2,64,81], index: 1, kind: input, shape index: {}]
  %s2 = inlined_call_operand.vmem [shape: f32[2,32,81], index: 2, kind: output, shape index: {}]
  %s3 = sld [smem:[#allocation0]]
  $region41: #{_lambda_.35} parent=0
    _
  %s5 = ssub.s32 1, %s3
  %s6 = scalar_select 0, %s5, %s3
  loop: start=0, step=1, limit=4
  $region2: #{_lambda_.35} parent=0 // loop_pre_header
    _
  $region3: #{_lambda_.35} parent=0 // loop_header
    %s8 = sphi 0, %s12
    %p9 = scmp.ge.s32.totalorder %s8, 4
    %s15 = sphi 0, %s34
    %s16 = sphi 0, %s30
    %s17 = sphi 0, %s26
    %s18 = sphi 0, %s15
    %s19 = sphi 0, %s16
    %s20 = sphi 0, %s17
    %s21 = sphi 0, %s18
    %s22 = sphi 0, %s19
    %s23 = sphi 0, %s20
    %s37 = sphi 0, %s39
    %s40 = sphi 0, %s37
    %s41 = sphi 0, %s40
    %s57 = sphi 0, %s41
    %s65 = sphi 0, %s67
    %s68 = sphi 0, %s65
    %s69 = sphi 0, %s68
    %s85 = sphi 0, %s69
    %s95 = sphi 0, %s97
    %s98 = sphi 0, %s95
    %s99 = sphi 0, %s98
    %s115 = sphi 0, %s99
  $region4: #{_lambda_.35} parent=0 // loop_header_branch
    %11 = sbr.rel (%p9) target = $region8
  $region5: #{_lambda_.35} parent=0 // loop_body
    %s13 = ssub.s32 %s8, 1
    %s14 = ssub.s32 %s8, 2
    %s24 = sadd.s32 1, %s17
    %p25 = scmp.ge.s32.totalorder %s24, 1
    %s26 = scalar_select %p25, 0, %s24
    %s27 = sadd.s32 1, %s16
    %s28 = scalar_select %p25, %s27, %s16
    %p29 = scmp.ge.s32.totalorder %s28, 1
    %s30 = scalar_select %p29, 0, %s28
    %s31 = sadd.s32 1, %s15
    %s32 = scalar_select %p29, %s31, %s15
    %p33 = scmp.ge.s32.totalorder %s32, 2
    %s34 = scalar_select %p33, 0, %s32
    %s35 = ssub.s32 %s16, %s30
    %p36 = scmp.eq.s32.totalorder %s35, 0
    %s38 = sadd.s32 %s37, 1
    %s39 = scalar_select %p36, %s37, %s38
    %p42 = pneg %p36
    %p43 = scmp.eq.s32.totalorder %s8, 1
    %p44 = por %p42, %p43
    %p45 = scmp.ne.s32.totalorder %s37, %s40
    %p46 = scmp.eq.s32.totalorder %s8, 0
    %p47 = por %p45, %p46
    %p48 = scmp.ne.s32.totalorder %s37, %s40
    %p49 = scmp.eq.s32.totalorder %s13, 1
    %p50 = por %p48, %p49
    %p51 = scmp.ne.s32.totalorder %s40, %s41
    %p52 = scmp.eq.s32.totalorder %s13, 0
    %p53 = por %p51, %p52
    %p54 = scmp.ne.s32.totalorder %s40, %s41
    %p55 = scmp.eq.s32.totalorder %s14, 1
    %p56 = por %p54, %p55
    %p58 = scmp.ne.s32.totalorder %s41, %s57
    %p59 = scmp.eq.s32.totalorder %s14, 0
    %p60 = por %p58, %p59
    %s61 = ssub.s32 %s15, %s34
    %s62 = ssub.s32 %s17, %s26
    %s63 = sor.u32 %s61, %s62
    %p64 = scmp.eq.s32.totalorder %s63, 0
    %s66 = sadd.s32 %s65, 1
    %s67 = scalar_select %p64, %s65, %s66
    %p70 = pneg %p64
    %p71 = scmp.eq.s32.totalorder %s8, 1
    %p72 = por %p70, %p71
    %p73 = scmp.ne.s32.totalorder %s65, %s68
    %p74 = scmp.eq.s32.totalorder %s8, 0
    %p75 = por %p73, %p74
    %p76 = scmp.ne.s32.totalorder %s65, %s68
    %p77 = scmp.eq.s32.totalorder %s13, 1
    %p78 = por %p76, %p77
    %p79 = scmp.ne.s32.totalorder %s68, %s69
    %p80 = scmp.eq.s32.totalorder %s13, 0
    %p81 = por %p79, %p80
    %p82 = scmp.ne.s32.totalorder %s68, %s69
    %p83 = scmp.eq.s32.totalorder %s14, 1
    %p84 = por %p82, %p83
    %p86 = scmp.ne.s32.totalorder %s69, %s85
    %p87 = scmp.eq.s32.totalorder %s14, 0
    %p88 = por %p86, %p87
    %s89 = ssub.s32 %s15, %s34
    %s90 = ssub.s32 %s16, %s30
    %s91 = sor.u32 %s89, %s90
    %s92 = ssub.s32 %s17, %s26
    %s93 = sor.u32 %s91, %s92
    %p94 = scmp.eq.s32.totalorder %s93, 0
    %s96 = sadd.s32 %s95, 1
    %s97 = scalar_select %p94, %s95, %s96
    %p100 = pneg %p94
    %p101 = scmp.eq.s32.totalorder %s8, 1
    %p102 = por %p100, %p101
    %p103 = scmp.ne.s32.totalorder %s95, %s98
    %p104 = scmp.eq.s32.totalorder %s8, 0
    %p105 = por %p103, %p104
    %p106 = scmp.ne.s32.totalorder %s95, %s98
    %p107 = scmp.eq.s32.totalorder %s13, 1
    %p108 = por %p106, %p107
    %p109 = scmp.ne.s32.totalorder %s98, %s99
    %p110 = scmp.eq.s32.totalorder %s13, 0
    %p111 = por %p109, %p110
    %p112 = scmp.ne.s32.totalorder %s98, %s99
    %p113 = scmp.eq.s32.totalorder %s14, 1
    %p114 = por %p112, %p113
    %p116 = scmp.ne.s32.totalorder %s99, %s115
    %p117 = scmp.eq.s32.totalorder %s14, 0
    %p118 = por %p116, %p117
    %p119 = scmp.le.s32.totalorder 1, %s8
    %p120 = scmp.lt.s32.totalorder %s8, 3
    %p121 = pnand %p119, %p120
    %p122 = pneg %p121
    // Predicated region
    $region9: #{_lambda_.35} parent=5 // pred_check
      _
    $region10: #{_lambda_.35} parent=5 // pred_check_branch
      %124 = sbr.rel (%p121) target = $region12
    $region11: #{_lambda_.35} parent=5 // pred_region
      %s125 = ssub.s32 %s8, 1
      // Predicated region
      $region13: #{_lambda_.35} parent=11 // pred_check
        %p126 = pneg %p53
      $region14: #{_lambda_.35} parent=11 // pred_check_branch
        %128 = sbr.rel (%p126) target = $region16
      $region15: #{_lambda_.35} parent=11 // pred_region
        %s129 = smul.u32 4, %s19
        %p130 = scmp.lt.s32.totalorder %s129, 3
        %s131 = scalar_select %p130, %s129, 3
        %s132 = smul.addr %s131, 4
        %s133 = scalar_lea.vmem %s0, %s132
        %s134 = smul.u32 4, %s19
      $region16: #{_lambda_.35} parent=11 // pred_fallthru
        _
    $region12: #{_lambda_.35} parent=5 // pred_fallthru
      _
    %p135 = scmp.lt.s32.totalorder %s8, 2
    // Predicated region
    $region17: #{_lambda_.35} parent=5 // pred_check
      %p136 = pneg %p135
    $region18: #{_lambda_.35} parent=5 // pred_check_branch
      %138 = sbr.rel (%p136) target = $region20
    $region19: #{_lambda_.35} parent=5 // pred_region
      // Predicated region
      $region21: #{_lambda_.35} parent=19 // pred_check
        %p139 = pneg %p75
      $region22: #{_lambda_.35} parent=19 // pred_check_branch
        %141 = sbr.rel (%p139) target = $region24
      $region23: #{_lambda_.35} parent=19 // pred_region
        %p142 = scmp.lt.s32.totalorder %s15, 1
        %s143 = scalar_select %p142, %s15, 1
        %p144 = scmp.lt.s32.totalorder %s17, 0
        %s145 = scalar_select %p144, %s17, 0
        %s146 = smul.addr %s143, 8
        %s147 = sadd.s32 %s145, %s146
        %s148 = smul.addr %s147, 4
        %s149 = scalar_lea.vmem %s1, %s148
      $region24: #{_lambda_.35} parent=19 // pred_fallthru
        _
    $region20: #{_lambda_.35} parent=5 // pred_fallthru
      _
    %p150 = scmp.le.s32.totalorder 1, %s8
    %p151 = scmp.lt.s32.totalorder %s8, 3
    %p152 = pnand %p150, %p151
    %p153 = pneg %p152
    // Predicated region
    $region25: #{_lambda_.35} parent=5 // pred_check
      _
    $region26: #{_lambda_.35} parent=5 // pred_check_branch
      %155 = sbr.rel (%p152) target = $region28
    $region27: #{_lambda_.35} parent=5 // pred_region
      %s156 = ssub.s32 %s8, 1
      %s157 = smul.u32 4, %s19
      %p158 = scmp.lt.s32.totalorder %s157, 3
      %s159 = scalar_select %p158, %s157, 3
      %s160 = smul.addr %s159, 4
      %s161 = scalar_lea.vmem %s0, %s160
      %p162 = pneg %p53
      %p163 = pneg %p50
      %p164 = scmp.lt.s32.totalorder %s18, 1
      %s165 = scalar_select %p164, %s18, 1
      %p166 = scmp.lt.s32.totalorder %s20, 0
      %s167 = scalar_select %p166, %s20, 0
      %s168 = smul.addr %s165, 8
      %s169 = sadd.s32 %s167, %s168
      %s170 = smul.addr %s169, 4
      %s171 = scalar_lea.vmem %s1, %s170
      %p172 = pneg %p81
      %p173 = pneg %p78
      %p174 = pneg %p111
      %p175 = pneg %p108
      %s176 = smul.u32 4, %s19
      %p177 = scmp.lt.s32.totalorder %s18, 1
      %s178 = scalar_select %p177, %s18, 1
      %p179 = scmp.lt.s32.totalorder %s176, 3
      %s180 = scalar_select %p179, %s176, 3
      %p181 = scmp.lt.s32.totalorder %s20, 0
      %s182 = scalar_select %p181, %s20, 0
      %s183 = sadd.s32 %s182, %s180
      %s184 = smul.addr %s178, 4
      %s185 = sadd.s32 %s183, %s184
      %s186 = smul.addr %s185, 8
      %s187 = scalar_lea.vmem %s2, %s186
      %s188 = smul.u32 4, %s19
      %p189 = scmp.lt.s32.totalorder %s188, 3
      %s190 = scalar_select %p189, %s188, 3
      %s191 = smul.addr %s190, 4
      %s192 = scalar_lea.vmem %s0, %s191
      %s193 = smul.u32 4, %s19
      %p194 = scmp.lt.s32.totalorder %s18, 1
      %s195 = scalar_select %p194, %s18, 1
      %p196 = scmp.lt.s32.totalorder %s20, 0
      %s197 = scalar_select %p196, %s20, 0
      %s198 = smul.addr %s195, 8
      %s199 = sadd.s32 %s197, %s198
      %s200 = smul.addr %s199, 4
      %s201 = scalar_lea.vmem %s1, %s200
      %s202 = smul.u32 4, %s19
      %p203 = scmp.lt.s32.totalorder %s18, 1
      %s204 = scalar_select %p203, %s18, 1
      %p205 = scmp.lt.s32.totalorder %s202, 3
      %s206 = scalar_select %p205, %s202, 3
      %p207 = scmp.lt.s32.totalorder %s20, 0
      %s208 = scalar_select %p207, %s20, 0
      %s209 = sadd.s32 %s208, %s206
      %s210 = smul.addr %s204, 4
      %s211 = sadd.s32 %s209, %s210
      %s212 = smul.addr %s211, 8
      %s213 = scalar_lea.vmem %s2, %s212
      %s214 = smul.u32 4, %s19
      %v216 = vld [vmem:[%s192] sm:$0xf]
      %v217 = vld [vmem:[%s192 + $0x4] sm:$0xf]
      %v218 = vld [vmem:[%s192 + $0x8] sm:$0xf]
      %v219 = vld [vmem:[%s192 + $0xc] sm:$0xf]
      %v220 = vld [vmem:[%s201] sm:$0xf]
      %v221 = vld [vmem:[%s201 + $0x4] sm:$0xf]
      %v222 = vld [vmem:[%s201 + $0x8] sm:$0xf]
      %v223 = vld [vmem:[%s201 + $0xc] sm:$0xf]
      %v224 = vld [vmem:[%s201 + $0x10] sm:$0xf]
      %v225 = vld [vmem:[%s201 + $0x14] sm:$0xf]
      %v226 = vld [vmem:[%s201 + $0x18] sm:$0xf]
      %v227 = vld [vmem:[%s201 + $0x1c] sm:$0xf]
      %v232 = vunpack.c.l.b16 %v216
      %v233 = vunpack.c.l.b16 %v217
      %v234 = vunpack.c.l.b16 %v218
      %v235 = vunpack.c.l.b16 %v219
      %v236 = vpack.c.b16 %v233, %v232
      %v237 = vpack.c.b16 %v235, %v234
      %v246 = vunpack.c.l.b16 %v220
      %v247 = vunpack.c.l.b16 %v221
      %v248 = vunpack.c.l.b16 %v222
      %v249 = vunpack.c.l.b16 %v223
      %v250 = vunpack.c.l.b16 %v224
      %v251 = vunpack.c.l.b16 %v225
      %v252 = vunpack.c.l.b16 %v226
      %v253 = vunpack.c.l.b16 %v227
      %v254 = vpack.c.b16 %v247, %v246
      %v255 = vpack.c.b16 %v249, %v248
      %v256 = vpack.c.b16 %v251, %v250
      %v257 = vpack.c.b16 %v253, %v252
      %vm262 = vcmask 523264
      %v264 = vsel %vm262, %v236, 0
      %v267 = vsel %vm262, %v237, 0
      %269 = vmatprep.subr.bf16.mxu0 0
      %270 = vmatpush1.bf16.msra.mxu0 %v254
      %271 = vmatprep.subr.bf16.mxu0 0
      %272 = vmatpush1.bf16.msra.mxu0 %v255
      %273 = vmatprep.subr.bf16.mxu0 0
      %274 = vmatpush1.bf16.msra.mxu0 %v256
      %275 = vmatprep.subr.bf16.mxu0 0
      %276 = vmatpush1.bf16.msra.mxu0 %v257
      %277 = vmatprep.subr.bf16.mxu0 0
      %278 = vmatpush1.bf16.msra.mxu0 0
      %279 = vmatprep.subr.bf16.mxu0 0
      %280 = vmatpush1.bf16.msra.mxu0 0
      %281 = vmatprep.subr.bf16.mxu0 0
      %282 = vmatpush1.bf16.msra.mxu0 0
      %283 = vmatprep.subr.bf16.mxu0 0
      %284 = vmatpush1.bf16.msra.mxu0 0
      %285 = vmatprep.subr.bf16.mxu0 0
      %286 = vmatpush1.bf16.msra.mxu0 0
      %287 = vmatprep.subr.bf16.mxu0 0
      %288 = vmatpush1.bf16.msra.mxu0 0
      %289 = vmatprep.subr.bf16.mxu0 0
      %290 = vmatpush1.bf16.msra.mxu0 0
      %291 = vmatprep.subr.bf16.mxu0 0
      %292 = vmatpush1.bf16.msra.mxu0 0
      %293 = vmatprep.subr.bf16.mxu0 0
      %294 = vmatpush1.bf16.msra.mxu0 0
      %295 = vmatprep.subr.bf16.mxu0 0
      %296 = vmatpush1.bf16.msra.mxu0 0
      %297 = vmatprep.subr.bf16.mxu0 0
      %298 = vmatpush1.bf16.msra.mxu0 0
      %299 = vmatprep.subr.bf16.mxu0 0
      %300 = vmatpush1.bf16.msra.mxu0 0
      %301 = vmatprep.mubr.bf16.mxu0 0
      %302 = vmatmul.mubr.bf16.gmra.mrb[0].mxu0 %v264
      %v303 = vpop.f32.mrb[0].mxu0
      %v304 = vadd.f32 0.0, %v303
      %v305 = vpop.f32.mrb[0].mxu0
      %v306 = vpop.f32.mrb[0].mxu0
      %v307 = vadd.f32 0.0, %v306
      %v308 = vpop.f32.mrb[0].mxu0
      %309 = vmatprep.mubr.bf16.mxu0 0
      %310 = vmatmul.mubr.bf16.gmra.mrb[0].mxu0 %v267
      %v311 = vpop.f32.mrb[0].mxu0
      %v312 = vadd.f32 0.0, %v311
      %v313 = vpop.f32.mrb[0].mxu0
      %v314 = vpop.f32.mrb[0].mxu0
      %v315 = vadd.f32 0.0, %v314
      %v316 = vpop.f32.mrb[0].mxu0
      %317 = vdwg.mxu0
      %vm318 = vcmask 662528
      %319 = vst.msk [vmem:[%s213] sm:$0xff] %vm318, %v304
      %320 = vst.msk [vmem:[%s213 + $0x8] sm:$0xff] %vm318, %v307
      %321 = vst.msk [vmem:[%s213 + $0x10] sm:$0xff] %vm318, %v312
      %322 = vst.msk [vmem:[%s213 + $0x18] sm:$0xff] %vm318, %v315
      %s323 = smul.u32 4, %s19
      %p324 = scmp.lt.s32.totalorder %s18, 1
      %s325 = scalar_select %p324, %s18, 1
      %p326 = scmp.lt.s32.totalorder %s323, 3
      %s327 = scalar_select %p326, %s323, 3
      %p328 = scmp.lt.s32.totalorder %s20, 0
      %s329 = scalar_select %p328, %s20, 0
      %s330 = sadd.s32 %s329, %s327
      %s331 = smul.addr %s325, 4
      %s332 = sadd.s32 %s330, %s331
      %s333 = smul.addr %s332, 8
      %s334 = scalar_lea.vmem %s2, %s333
      // Predicated region
      $region29: #{_lambda_.35} parent=27 // pred_check
        %p335 = pneg %p108
      $region30: #{_lambda_.35} parent=27 // pred_check_branch
        %337 = sbr.rel (%p335) target = $region32
      $region31: #{_lambda_.35} parent=27 // pred_region
        %s338 = smul.u32 4, %s19
      $region32: #{_lambda_.35} parent=27 // pred_fallthru
        _
    $region28: #{_lambda_.35} parent=5 // pred_fallthru
      _
    %p339 = scmp.le.s32.totalorder 2, %s8
    // Predicated region
    $region33: #{_lambda_.35} parent=5 // pred_check
      %p340 = pneg %p339
    $region34: #{_lambda_.35} parent=5 // pred_check_branch
      %342 = sbr.rel (%p340) target = $region36
    $region35: #{_lambda_.35} parent=5 // pred_region
      %s343 = ssub.s32 %s8, 2
      // Predicated region
      $region37: #{_lambda_.35} parent=35 // pred_check
        %p344 = pneg %p114
      $region38: #{_lambda_.35} parent=35 // pred_check_branch
        %346 = sbr.rel (%p344) target = $region40
      $region39: #{_lambda_.35} parent=35 // pred_region
        %s347 = smul.u32 4, %s22
        %p348 = scmp.lt.s32.totalorder %s21, 1
        %s349 = scalar_select %p348, %s21, 1
        %p350 = scmp.lt.s32.totalorder %s347, 3
        %s351 = scalar_select %p350, %s347, 3
        %p352 = scmp.lt.s32.totalorder %s23, 0
        %s353 = scalar_select %p352, %s23, 0
        %s354 = sadd.s32 %s353, %s351
        %s355 = smul.addr %s349, 4
        %s356 = sadd.s32 %s354, %s355
        %s357 = smul.addr %s356, 8
        %s358 = scalar_lea.vmem %s2, %s357
      $region40: #{_lambda_.35} parent=35 // pred_fallthru
        _
    $region36: #{_lambda_.35} parent=5 // pred_fallthru
      _
  $region6: #{_lambda_.35} parent=0 // loop_footer
    %s12 = sadd.s32 1, %s8
  $region7: #{_lambda_.35} parent=0 // loop_footer_branch
    %7 = sbr.rel target = $region3
  $region8: #{_lambda_.35} parent=0 // loop_exit
    _

// kernel: _lambda_.37
$region0: #{_lambda_.37}
  #allocation0 [shape = 'u32[]', space=smem, size = 0x4, offset = 0x4, fixed_abs, tag = 'smem constant byte address 0x4 - core index']
  #allocation1 [shape = 'u32[144,128]{1,0:T(1,128)}', space=vmem, size = 0x12000, scoped, tag = 'internal scratch']
  %s0 = inlined_call_operand.vmem [shape: bf16[3,392], index: 0, kind: input, shape index: {}]
  %s1 = inlined_call_operand.vmem [shape: bf16[2,392,256], index: 1, kind: input, shape index: {}]
  %s2 = inlined_call_operand.vmem [shape: f32[2,3,256], index: 2, kind: output, shape index: {}]
  %s3 = sld [smem:[#allocation0]]
  $region41: #{_lambda_.37} parent=0
    _
  %s5 = ssub.s32 1, %s3
  %s6 = scalar_select 0, %s5, %s3
  loop: start=0, step=1, limit=4
  $region2: #{_lambda_.37} parent=0 // loop_pre_header
    _
  $region3: #{_lambda_.37} parent=0 // loop_header
    %s8 = sphi 0, %s12
    %p9 = scmp.ge.s32.totalorder %s8, 4
    %s15 = sphi 0, %s34
    %s16 = sphi 0, %s30
    %s17 = sphi 0, %s26
    %s18 = sphi 0, %s15
    %s19 = sphi 0, %s16
    %s20 = sphi 0, %s17
    %s21 = sphi 0, %s18
    %s22 = sphi 0, %s19
    %s23 = sphi 0, %s20
    %s37 = sphi 0, %s39
    %s40 = sphi 0, %s37
    %s41 = sphi 0, %s40
    %s57 = sphi 0, %s41
    %s65 = sphi 0, %s67
    %s68 = sphi 0, %s65
    %s69 = sphi 0, %s68
    %s85 = sphi 0, %s69
    %s95 = sphi 0, %s97
    %s98 = sphi 0, %s95
    %s99 = sphi 0, %s98
    %s115 = sphi 0, %s99
  $region4: #{_lambda_.37} parent=0 // loop_header_branch
    %11 = sbr.rel (%p9) target = $region8
  $region5: #{_lambda_.37} parent=0 // loop_body
    %s13 = ssub.s32 %s8, 1
    %s14 = ssub.s32 %s8, 2
    %s24 = sadd.s32 1, %s17
    %p25 = scmp.ge.s32.totalorder %s24, 1
    %s26 = scalar_select %p25, 0, %s24
    %s27 = sadd.s32 1, %s16
    %s28 = scalar_select %p25, %s27, %s16
    %p29 = scmp.ge.s32.totalorder %s28, 1
    %s30 = scalar_select %p29, 0, %s28
    %s31 = sadd.s32 1, %s15
    %s32 = scalar_select %p29, %s31, %s15
    %p33 = scmp.ge.s32.totalorder %s32, 2
    %s34 = scalar_select %p33, 0, %s32
    %s35 = ssub.s32 %s16, %s30
    %p36 = scmp.eq.s32.totalorder %s35, 0
    %s38 = sadd.s32 %s37, 1
    %s39 = scalar_select %p36, %s37, %s38
    %p42 = pneg %p36
    %p43 = scmp.eq.s32.totalorder %s8, 1
    %p44 = por %p42, %p43
    %p45 = scmp.ne.s32.totalorder %s37, %s40
    %p46 = scmp.eq.s32.totalorder %s8, 0
    %p47 = por %p45, %p46
    %p48 = scmp.ne.s32.totalorder %s37, %s40
    %p49 = scmp.eq.s32.totalorder %s13, 1
    %p50 = por %p48, %p49
    %p51 = scmp.ne.s32.totalorder %s40, %s41
    %p52 = scmp.eq.s32.totalorder %s13, 0
    %p53 = por %p51, %p52
    %p54 = scmp.ne.s32.totalorder %s40, %s41
    %p55 = scmp.eq.s32.totalorder %s14, 1
    %p56 = por %p54, %p55
    %p58 = scmp.ne.s32.totalorder %s41, %s57
    %p59 = scmp.eq.s32.totalorder %s14, 0
    %p60 = por %p58, %p59
    %s61 = ssub.s32 %s15, %s34
    %s62 = ssub.s32 %s17, %s26
    %s63 = sor.u32 %s61, %s62
    %p64 = scmp.eq.s32.totalorder %s63, 0
    %s66 = sadd.s32 %s65, 1
    %s67 = scalar_select %p64, %s65, %s66
    %p70 = pneg %p64
    %p71 = scmp.eq.s32.totalorder %s8, 1
    %p72 = por %p70, %p71
    %p73 = scmp.ne.s32.totalorder %s65, %s68
    %p74 = scmp.eq.s32.totalorder %s8, 0
    %p75 = por %p73, %p74
    %p76 = scmp.ne.s32.totalorder %s65, %s68
    %p77 = scmp.eq.s32.totalorder %s13, 1
    %p78 = por %p76, %p77
    %p79 = scmp.ne.s32.totalorder %s68, %s69
    %p80 = scmp.eq.s32.totalorder %s13, 0
    %p81 = por %p79, %p80
    %p82 = scmp.ne.s32.totalorder %s68, %s69
    %p83 = scmp.eq.s32.totalorder %s14, 1
    %p84 = por %p82, %p83
    %p86 = scmp.ne.s32.totalorder %s69, %s85
    %p87 = scmp.eq.s32.totalorder %s14, 0
    %p88 = por %p86, %p87
    %s89 = ssub.s32 %s15, %s34
    %s90 = ssub.s32 %s16, %s30
    %s91 = sor.u32 %s89, %s90
    %s92 = ssub.s32 %s17, %s26
    %s93 = sor.u32 %s91, %s92
    %p94 = scmp.eq.s32.totalorder %s93, 0
    %s96 = sadd.s32 %s95, 1
    %s97 = scalar_select %p94, %s95, %s96
    %p100 = pneg %p94
    %p101 = scmp.eq.s32.totalorder %s8, 1
    %p102 = por %p100, %p101
    %p103 = scmp.ne.s32.totalorder %s95, %s98
    %p104 = scmp.eq.s32.totalorder %s8, 0
    %p105 = por %p103, %p104
    %p106 = scmp.ne.s32.totalorder %s95, %s98
    %p107 = scmp.eq.s32.totalorder %s13, 1
    %p108 = por %p106, %p107
    %p109 = scmp.ne.s32.totalorder %s98, %s99
    %p110 = scmp.eq.s32.totalorder %s13, 0
    %p111 = por %p109, %p110
    %p112 = scmp.ne.s32.totalorder %s98, %s99
    %p113 = scmp.eq.s32.totalorder %s14, 1
    %p114 = por %p112, %p113
    %p116 = scmp.ne.s32.totalorder %s99, %s115
    %p117 = scmp.eq.s32.totalorder %s14, 0
    %p118 = por %p116, %p117
    %p119 = scmp.le.s32.totalorder 1, %s8
    %p120 = scmp.lt.s32.totalorder %s8, 3
    %p121 = pnand %p119, %p120
    %p122 = pneg %p121
    // Predicated region
    $region9: #{_lambda_.37} parent=5 // pred_check
      _
    $region10: #{_lambda_.37} parent=5 // pred_check_branch
      %124 = sbr.rel (%p121) target = $region12
    $region11: #{_lambda_.37} parent=5 // pred_region
      %s125 = ssub.s32 %s8, 1
      // Predicated region
      $region13: #{_lambda_.37} parent=11 // pred_check
        %p126 = pneg %p53
      $region14: #{_lambda_.37} parent=11 // pred_check_branch
        %128 = sbr.rel (%p126) target = $region16
      $region15: #{_lambda_.37} parent=11 // pred_region
        %p129 = scmp.lt.s32.totalorder %s19, 0
        %s130 = scalar_select %p129, %s19, 0
        %s131 = smul.addr %s130, 4
        %s132 = smul.addr %s131, 2
        %s133 = scalar_lea.vmem %s0, %s132
      $region16: #{_lambda_.37} parent=11 // pred_fallthru
        _
    $region12: #{_lambda_.37} parent=5 // pred_fallthru
      _
    %p134 = scmp.lt.s32.totalorder %s8, 2
    // Predicated region
    $region17: #{_lambda_.37} parent=5 // pred_check
      %p135 = pneg %p134
    $region18: #{_lambda_.37} parent=5 // pred_check_branch
      %137 = sbr.rel (%p135) target = $region20
    $region19: #{_lambda_.37} parent=5 // pred_region
      // Predicated region
      $region21: #{_lambda_.37} parent=19 // pred_check
        %p138 = pneg %p75
      $region22: #{_lambda_.37} parent=19 // pred_check_branch
        %140 = sbr.rel (%p138) target = $region24
      $region23: #{_lambda_.37} parent=19 // pred_region
        %s141 = smul.u32 2, %s17
        %p142 = scmp.lt.s32.totalorder %s15, 1
        %s143 = scalar_select %p142, %s15, 1
        %p144 = scmp.lt.s32.totalorder %s141, 1
        %s145 = scalar_select %p144, %s141, 1
        %s146 = smul.addr %s143, 98
        %s147 = sadd.s32 %s145, %s146
        %s148 = smul.addr %s147, 4
        %s149 = scalar_lea.vmem %s1, %s148
        %s150 = smul.u32 2, %s17
      $region24: #{_lambda_.37} parent=19 // pred_fallthru
        _
    $region20: #{_lambda_.37} parent=5 // pred_fallthru
      _
    %p151 = scmp.le.s32.totalorder 1, %s8
    %p152 = scmp.lt.s32.totalorder %s8, 3
    %p153 = pnand %p151, %p152
    %p154 = pneg %p153
    // Predicated region
    $region25: #{_lambda_.37} parent=5 // pred_check
      _
    $region26: #{_lambda_.37} parent=5 // pred_check_branch
      %156 = sbr.rel (%p153) target = $region28
    $region27: #{_lambda_.37} parent=5 // pred_region
      %s157 = ssub.s32 %s8, 1
      %p158 = scmp.lt.s32.totalorder %s19, 0
      %s159 = scalar_select %p158, %s19, 0
      %s160 = smul.addr %s159, 4
      %s161 = smul.addr %s160, 2
      %s162 = scalar_lea.vmem %s0, %s161
      %p163 = pneg %p53
      %p164 = pneg %p50
      %s165 = smul.u32 2, %s20
      %p166 = scmp.lt.s32.totalorder %s18, 1
      %s167 = scalar_select %p166, %s18, 1
      %p168 = scmp.lt.s32.totalorder %s165, 1
      %s169 = scalar_select %p168, %s165, 1
      %s170 = smul.addr %s167, 98
      %s171 = sadd.s32 %s169, %s170
      %s172 = smul.addr %s171, 4
      %s173 = scalar_lea.vmem %s1, %s172
      %p174 = pneg %p81
      %p175 = pneg %p78
      %p176 = pneg %p111
      %p177 = pneg %p108
      %s178 = smul.u32 2, %s20
      %p179 = scmp.lt.s32.totalorder %s18, 1
      %s180 = scalar_select %p179, %s18, 1
      %p181 = scmp.lt.s32.totalorder %s19, 0
      %s182 = scalar_select %p181, %s19, 0
      %p183 = scmp.lt.s32.totalorder %s178, 1
      %s184 = scalar_select %p183, %s178, 1
      %s185 = smul.addr %s182, 2
      %s186 = sadd.s32 %s184, %s185
      %s187 = smul.addr %s180, 2
      %s188 = sadd.s32 %s186, %s187
      %s189 = smul.addr %s188, 4
      %s190 = scalar_lea.vmem %s2, %s189
      %p191 = scmp.lt.s32.totalorder %s19, 0
      %s192 = scalar_select %p191, %s19, 0
      %s193 = smul.addr %s192, 4
      %s194 = smul.addr %s193, 2
      %s195 = scalar_lea.vmem %s0, %s194
      %s196 = smul.u32 2, %s20
      %p197 = scmp.lt.s32.totalorder %s18, 1
      %s198 = scalar_select %p197, %s18, 1
      %p199 = scmp.lt.s32.totalorder %s196, 1
      %s200 = scalar_select %p199, %s196, 1
      %s201 = smul.addr %s198, 98
      %s202 = sadd.s32 %s200, %s201
      %s203 = smul.addr %s202, 4
      %s204 = scalar_lea.vmem %s1, %s203
      %s205 = smul.u32 2, %s20
      %s206 = smul.u32 2, %s20
      %p207 = scmp.lt.s32.totalorder %s18, 1
      %s208 = scalar_select %p207, %s18, 1
      %p209 = scmp.lt.s32.totalorder %s19, 0
      %s210 = scalar_select %p209, %s19, 0
      %p211 = scmp.lt.s32.totalorder %s206, 1
      %s212 = scalar_select %p211, %s206, 1
      %s213 = smul.addr %s210, 2
      %s214 = sadd.s32 %s212, %s213
      %s215 = smul.addr %s208, 2
      %s216 = sadd.s32 %s214, %s215
      %s217 = smul.addr %s216, 4
      %s218 = scalar_lea.vmem %s2, %s217
      %s219 = smul.u32 2, %s20
      %v221 = vld [vmem:[%s195] sm:$0xff]
      %v222 = vld [vmem:[%s204] sm:$0xff]
      %v223 = vld [vmem:[%s204 + $0x8] sm:$0xff]
      %v224 = vld [vmem:[%s204 + $0x10] sm:$0xff]
      %v225 = vld [vmem:[%s204 + $0x18] sm:$0xff]
      %v226 = vld [vmem:[%s204 + $0x20] sm:$0xff]
      %v227 = vld [vmem:[%s204 + $0x28] sm:$0xff]
      %v228 = vld [vmem:[%s204 + $0x30] sm:$0xff]
      %v229 = vld [vmem:[%s204 + $0x38] sm:$0xff]
      %v230 = vld [vmem:[%s204 + $0x40] sm:$0xff]
      %v231 = vld [vmem:[%s204 + $0x48] sm:$0xff]
      %v232 = vld [vmem:[%s204 + $0x50] sm:$0xff]
      %v233 = vld [vmem:[%s204 + $0x58] sm:$0xff]
      %v234 = vld [vmem:[%s204 + $0x60] sm:$0xff]
      %v235 = vld [vmem:[%s204 + $0x68] sm:$0xff]
      %v236 = vld [vmem:[%s204 + $0x70] sm:$0xff]
      %v237 = vld [vmem:[%s204 + $0x78] sm:$0xff]
      %v238 = vld [vmem:[%s204 + $0x80] sm:$0xff]
      %v239 = vld [vmem:[%s204 + $0x88] sm:$0xff]
      %v240 = vld [vmem:[%s204 + $0x90] sm:$0xff]
      %v241 = vld [vmem:[%s204 + $0x98] sm:$0xff]
      %v242 = vld [vmem:[%s204 + $0xa0] sm:$0xff]
      %v243 = vld [vmem:[%s204 + $0xa8] sm:$0xff]
      %v244 = vld [vmem:[%s204 + $0xb0] sm:$0xff]
      %v245 = vld [vmem:[%s204 + $0xb8] sm:$0xff]
      %v246 = vld [vmem:[%s204 + $0xc0] sm:$0xff]
      %v247 = vld [vmem:[%s204 + $0xc8] sm:$0xff]
      %v248 = vld [vmem:[%s204 + $0xd0] sm:$0xff]
      %v249 = vld [vmem:[%s204 + $0xd8] sm:$0xff]
      %v250 = vld [vmem:[%s204 + $0xe0] sm:$0xff]
      %v251 = vld [vmem:[%s204 + $0xe8] sm:$0xff]
      %v252 = vld [vmem:[%s204 + $0xf0] sm:$0xff]
      %v253 = vld [vmem:[%s204 + $0xf8] sm:$0xff]
      %v254 = vld [vmem:[%s204 + $0x100] sm:$0xff]
      %v255 = vld [vmem:[%s204 + $0x108] sm:$0xff]
      %v256 = vld [vmem:[%s204 + $0x110] sm:$0xff]
      %v257 = vld [vmem:[%s204 + $0x118] sm:$0xff]
      %v258 = vld [vmem:[%s204 + $0x120] sm:$0xff]
      %v259 = vld [vmem:[%s204 + $0x128] sm:$0xff]
      %v260 = vld [vmem:[%s204 + $0x130] sm:$0xff]
      %v261 = vld [vmem:[%s204 + $0x138] sm:$0xff]
      %v262 = vld [vmem:[%s204 + $0x140] sm:$0xff]
      %v263 = vld [vmem:[%s204 + $0x148] sm:$0xff]
      %v264 = vld [vmem:[%s204 + $0x150] sm:$0xff]
      %v265 = vld [vmem:[%s204 + $0x158] sm:$0xff]
      %v266 = vld [vmem:[%s204 + $0x160] sm:$0xff]
      %v267 = vld [vmem:[%s204 + $0x168] sm:$0xff]
      %v268 = vld [vmem:[%s204 + $0x170] sm:$0xff]
      %v269 = vld [vmem:[%s204 + $0x178] sm:$0xff]
      %v270 = vld [vmem:[%s204 + $0x180] sm:$0xff]
      %v272 = vcombine.high %v221, %v221
      %v274 = vunpack.c.l.s4 1983009808
      %v275 = vunpack.c.0.s8 %v274
      %v276 = vlaneseq
      %v277 = vshrl.u32 %v276, 7
      %v278 = vsub.s32 %v275, %v277
      %v279 = vrot.slane %v221, %v278
      %v281 = vunpack.c.l.s4 1983009808
      %v282 = vunpack.c.0.s8 %v281
      %v283 = vlaneseq
      %v284 = vshrl.u32 %v283, 7
      %v285 = vsub.s32 %v282, %v284
      %v286 = vrot.slane %v272, %v285
      %v287 = vcombine.high %v279, %v279
      %v288 = vcombine.high %v286, %v286
      %v341 = vunpack.c.l.b16 %v222
      %v342 = vunpack.c.h.b16 %v222
      %v343 = vunpack.c.l.b16 %v223
      %v344 = vunpack.c.h.b16 %v223
      %v345 = vunpack.c.l.b16 %v224
      %v346 = vunpack.c.h.b16 %v224
      %v347 = vunpack.c.l.b16 %v225
      %v348 = vunpack.c.h.b16 %v225
      %v349 = vunpack.c.l.b16 %v226
      %v350 = vunpack.c.h.b16 %v226
      %v351 = vunpack.c.l.b16 %v227
      %v352 = vunpack.c.h.b16 %v227
      %v353 = vunpack.c.l.b16 %v228
      %v354 = vunpack.c.h.b16 %v228
      %v355 = vunpack.c.l.b16 %v229
      %v356 = vunpack.c.h.b16 %v229
      %v357 = vunpack.c.l.b16 %v230
      %v358 = vunpack.c.h.b16 %v230
      %v359 = vunpack.c.l.b16 %v231
      %v360 = vunpack.c.h.b16 %v231
      %v361 = vunpack.c.l.b16 %v232
      %v362 = vunpack.c.h.b16 %v232
      %v363 = vunpack.c.l.b16 %v233
      %v364 = vunpack.c.h.b16 %v233
      %v365 = vunpack.c.l.b16 %v234
      %v366 = vunpack.c.h.b16 %v234
      %v367 = vunpack.c.l.b16 %v235
      %v368 = vunpack.c.h.b16 %v235
      %v369 = vunpack.c.l.b16 %v236
      %v370 = vunpack.c.h.b16 %v236
      %v371 = vunpack.c.l.b16 %v237
      %v372 = vunpack.c.h.b16 %v237
      %v373 = vunpack.c.l.b16 %v238
      %v374 = vunpack.c.h.b16 %v238
      %v375 = vunpack.c.l.b16 %v239
      %v376 = vunpack.c.h.b16 %v239
      %v377 = vunpack.c.l.b16 %v240
      %v378 = vunpack.c.h.b16 %v240
      %v379 = vunpack.c.l.b16 %v241
      %v380 = vunpack.c.h.b16 %v241
      %v381 = vunpack.c.l.b16 %v242
      %v382 = vunpack.c.h.b16 %v242
      %v383 = vunpack.c.l.b16 %v243
      %v384 = vunpack.c.h.b16 %v243
      %v385 = vunpack.c.l.b16 %v244
      %v386 = vunpack.c.h.b16 %v244
      %v387 = vunpack.c.l.b16 %v245
      %v388 = vunpack.c.h.b16 %v245
      %v389 = vunpack.c.l.b16 %v246
      %v390 = vunpack.c.h.b16 %v246
      %v391 = vunpack.c.l.b16 %v247
      %v392 = vunpack.c.h.b16 %v247
      %v393 = vunpack.c.l.b16 %v248
      %v394 = vunpack.c.h.b16 %v248
      %v395 = vunpack.c.l.b16 %v249
      %v396 = vunpack.c.h.b16 %v249
      %v397 = vunpack.c.l.b16 %v250
      %v398 = vunpack.c.h.b16 %v250
      %v399 = vunpack.c.l.b16 %v251
      %v400 = vunpack.c.h.b16 %v251
      %v401 = vunpack.c.l.b16 %v252
      %v402 = vunpack.c.h.b16 %v252
      %v403 = vunpack.c.l.b16 %v253
      %v404 = vunpack.c.h.b16 %v253
      %v405 = vunpack.c.l.b16 %v254
      %v406 = vunpack.c.h.b16 %v254
      %v407 = vunpack.c.l.b16 %v255
      %v408 = vunpack.c.h.b16 %v255
      %v409 = vunpack.c.l.b16 %v256
      %v410 = vunpack.c.h.b16 %v256
      %v411 = vunpack.c.l.b16 %v257
      %v412 = vunpack.c.h.b16 %v257
      %v413 = vunpack.c.l.b16 %v258
      %v414 = vunpack.c.h.b16 %v258
      %v415 = vunpack.c.l.b16 %v259
      %v416 = vunpack.c.h.b16 %v259
      %v417 = vunpack.c.l.b16 %v260
      %v418 = vunpack.c.h.b16 %v260
      %v419 = vunpack.c.l.b16 %v261
      %v420 = vunpack.c.h.b16 %v261
      %v421 = vunpack.c.l.b16 %v262
      %v422 = vunpack.c.h.b16 %v262
      %v423 = vunpack.c.l.b16 %v263
      %v424 = vunpack.c.h.b16 %v263
      %v425 = vunpack.c.l.b16 %v264
      %v426 = vunpack.c.h.b16 %v264
      %v427 = vunpack.c.l.b16 %v265
      %v428 = vunpack.c.h.b16 %v265
      %v429 = vunpack.c.l.b16 %v266
      %v430 = vunpack.c.h.b16 %v266
      %v431 = vunpack.c.l.b16 %v267
      %v432 = vunpack.c.h.b16 %v267
      %v433 = vunpack.c.l.b16 %v268
      %v434 = vunpack.c.h.b16 %v268
      %v435 = vunpack.c.l.b16 %v269
      %v436 = vunpack.c.h.b16 %v269
      %v437 = vunpack.c.l.b16 %v270
      %v438 = vunpack.c.h.b16 %v270
      %v439 = vpack.c.b16 %v343, %v341
      %v440 = vpack.c.b16 %v344, %v342
      %v441 = vpack.c.b16 %v347, %v345
      %v442 = vpack.c.b16 %v348, %v346
      %v443 = vpack.c.b16 %v351, %v349
      %v444 = vpack.c.b16 %v352, %v350
      %v445 = vpack.c.b16 %v355, %v353
      %v446 = vpack.c.b16 %v356, %v354
      %v447 = vpack.c.b16 %v359, %v357
      %v448 = vpack.c.b16 %v360, %v358
      %v449 = vpack.c.b16 %v363, %v361
      %v450 = vpack.c.b16 %v364, %v362
      %v451 = vpack.c.b16 %v367, %v365
      %v452 = vpack.c.b16 %v368, %v366
      %v453 = vpack.c.b16 %v371, %v369
      %v454 = vpack.c.b16 %v372, %v370
      %v455 = vpack.c.b16 %v375, %v373
      %v456 = vpack.c.b16 %v376, %v374
      %v457 = vpack.c.b16 %v379, %v377
      %v458 = vpack.c.b16 %v380, %v378
      %v459 = vpack.c.b16 %v383, %v381
      %v460 = vpack.c.b16 %v384, %v382
      %v461 = vpack.c.b16 %v387, %v385
      %v462 = vpack.c.b16 %v388, %v386
      %v463 = vpack.c.b16 %v391, %v389
      %v464 = vpack.c.b16 %v392, %v390
      %v465 = vpack.c.b16 %v395, %v393
      %v466 = vpack.c.b16 %v396, %v394
      %v467 = vpack.c.b16 %v399, %v397
      %v468 = vpack.c.b16 %v400, %v398
      %v469 = vpack.c.b16 %v403, %v401
      %v470 = vpack.c.b16 %v404, %v402
      %v471 = vpack.c.b16 %v407, %v405
      %v472 = vpack.c.b16 %v408, %v406
      %v473 = vpack.c.b16 %v411, %v409
      %v474 = vpack.c.b16 %v412, %v410
      %v475 = vpack.c.b16 %v415, %v413
      %v476 = vpack.c.b16 %v416, %v414
      %v477 = vpack.c.b16 %v419, %v417
      %v478 = vpack.c.b16 %v420, %v418
      %v479 = vpack.c.b16 %v423, %v421
      %v480 = vpack.c.b16 %v424, %v422
      %v481 = vpack.c.b16 %v427, %v425
      %v482 = vpack.c.b16 %v428, %v426
      %v483 = vpack.c.b16 %v431, %v429
      %v484 = vpack.c.b16 %v432, %v430
      %v485 = vpack.c.b16 %v435, %v433
      %v486 = vpack.c.b16 %v436, %v434
      %v487 = vpack.c.b16 %v437, %v437
      %v488 = vpack.c.b16 %v438, %v438
      %vm537 = vcmask 64512
      %v539 = vsel %vm537, %v288, 0
      %vm541 = vcmask 1043456
      %v543 = vsel %vm541, %v487, 0
      %v546 = vsel %vm541, %v488, 0
      %548 = vmatprep.subr.bf16.mxu0 %v440
      %549 = vmatpush1.bf16.msra.mxu0 %v439
      %550 = vmatprep.subr.bf16.mxu0 %v442
      %551 = vmatpush1.bf16.msra.mxu0 %v441
      %552 = vmatprep.subr.bf16.mxu0 %v444
      %553 = vmatpush1.bf16.msra.mxu0 %v443
      %554 = vmatprep.subr.bf16.mxu0 %v446
      %555 = vmatpush1.bf16.msra.mxu0 %v445
      %556 = vmatprep.subr.bf16.mxu0 %v448
      %557 = vmatpush1.bf16.msra.mxu0 %v447
      %558 = vmatprep.subr.bf16.mxu0 %v450
      %559 = vmatpush1.bf16.msra.mxu0 %v449
      %560 = vmatprep.subr.bf16.mxu0 %v452
      %561 = vmatpush1.bf16.msra.mxu0 %v451
      %562 = vmatprep.subr.bf16.mxu0 %v454
      %563 = vmatpush1.bf16.msra.mxu0 %v453
      %564 = vmatprep.subr.bf16.mxu0 %v456
      %565 = vmatpush1.bf16.msra.mxu0 %v455
      %566 = vmatprep.subr.bf16.mxu0 %v458
      %567 = vmatpush1.bf16.msra.mxu0 %v457
      %568 = vmatprep.subr.bf16.mxu0 %v460
      %569 = vmatpush1.bf16.msra.mxu0 %v459
      %570 = vmatprep.subr.bf16.mxu0 %v462
      %571 = vmatpush1.bf16.msra.mxu0 %v461
      %572 = vmatprep.subr.bf16.mxu0 %v464
      %573 = vmatpush1.bf16.msra.mxu0 %v463
      %574 = vmatprep.subr.bf16.mxu0 %v466
      %575 = vmatpush1.bf16.msra.mxu0 %v465
      %576 = vmatprep.subr.bf16.mxu0 %v468
      %577 = vmatpush1.bf16.msra.mxu0 %v467
      %578 = vmatprep.subr.bf16.mxu0 %v470
      %579 = vmatpush1.bf16.msra.mxu0 %v469
      %580 = vmatprep.mubr.bf16.mxu0 %v287
      %581 = vmatmul.mubr.bf16.gmra.mrb[0].mxu0 %v279
      %v582 = vpop.f32.mrb[0].mxu0
      %v583 = vadd.f32 0.0, %v582
      %v584 = vpop.f32.mrb[0].mxu0
      %v585 = vadd.f32 0.0, %v584
      %v586 = vpop.f32.mrb[0].mxu0
      %v587 = vpop.f32.mrb[0].mxu0
      %588 = vdwg.mxu0
      %589 = vmatprep.subr.bf16.mxu0 %v472
      %590 = vmatpush1.bf16.msra.mxu0 %v471
      %591 = vmatprep.subr.bf16.mxu0 %v474
      %592 = vmatpush1.bf16.msra.mxu0 %v473
      %593 = vmatprep.subr.bf16.mxu0 %v476
      %594 = vmatpush1.bf16.msra.mxu0 %v475
      %595 = vmatprep.subr.bf16.mxu0 %v478
      %596 = vmatpush1.bf16.msra.mxu0 %v477
      %597 = vmatprep.subr.bf16.mxu0 %v480
      %598 = vmatpush1.bf16.msra.mxu0 %v479
      %599 = vmatprep.subr.bf16.mxu0 %v482
      %600 = vmatpush1.bf16.msra.mxu0 %v481
      %601 = vmatprep.subr.bf16.mxu0 %v484
      %602 = vmatpush1.bf16.msra.mxu0 %v483
      %603 = vmatprep.subr.bf16.mxu0 %v486
      %604 = vmatpush1.bf16.msra.mxu0 %v485
      %605 = vmatprep.subr.bf16.mxu0 %v546
      %606 = vmatpush1.bf16.msra.mxu0 %v543
      %607 = vmatprep.subr.bf16.mxu0 0
      %608 = vmatpush1.bf16.msra.mxu0 0
      %609 = vmatprep.subr.bf16.mxu0 0
      %610 = vmatpush1.bf16.msra.mxu0 0
      %611 = vmatprep.subr.bf16.mxu0 0
      %612 = vmatpush1.bf16.msra.mxu0 0
      %613 = vmatprep.subr.bf16.mxu0 0
      %614 = vmatpush1.bf16.msra.mxu0 0
      %615 = vmatprep.subr.bf16.mxu0 0
      %616 = vmatpush1.bf16.msra.mxu0 0
      %617 = vmatprep.subr.bf16.mxu0 0
      %618 = vmatpush1.bf16.msra.mxu0 0
      %619 = vmatprep.subr.bf16.mxu0 0
      %620 = vmatpush1.bf16.msra.mxu0 0
      %621 = vmatprep.mubr.bf16.mxu0 %v539
      %622 = vmatmul.mubr.bf16.gmra.mrb[0].mxu0 %v286
      %v623 = vpop.f32.mrb[0].mxu0
      %v624 = vadd.f32 %v583, %v623
      %v625 = vpop.f32.mrb[0].mxu0
      %v626 = vadd.f32 %v585, %v625
      %v627 = vpop.f32.mrb[0].mxu0
      %v628 = vpop.f32.mrb[0].mxu0
      %629 = vdwg.mxu0
      %v630 = vtanh.pop %v624
      %v631 = vtanh.pop %v626
      %v634 = vcombine.low %v630, %v631
      %636 = vst [vmem:[%s218] sm:$0x77] %v634
      %s637 = smul.u32 2, %s20
      %p638 = scmp.lt.s32.totalorder %s18, 1
      %s639 = scalar_select %p638, %s18, 1
      %p640 = scmp.lt.s32.totalorder %s19, 0
      %s641 = scalar_select %p640, %s19, 0
      %p642 = scmp.lt.s32.totalorder %s637, 1
      %s643 = scalar_select %p642, %s637, 1
      %s644 = smul.addr %s641, 2
      %s645 = sadd.s32 %s643, %s644
      %s646 = smul.addr %s639, 2
      %s647 = sadd.s32 %s645, %s646
      %s648 = smul.addr %s647, 4
      %s649 = scalar_lea.vmem %s2, %s648
      // Predicated region
      $region29: #{_lambda_.37} parent=27 // pred_check
        %p650 = pneg %p108
      $region30: #{_lambda_.37} parent=27 // pred_check_branch
        %652 = sbr.rel (%p650) target = $region32
      $region31: #{_lambda_.37} parent=27 // pred_region
        %s653 = smul.u32 2, %s20
      $region32: #{_lambda_.37} parent=27 // pred_fallthru
        _
    $region28: #{_lambda_.37} parent=5 // pred_fallthru
      _
    %p654 = scmp.le.s32.totalorder 2, %s8
    // Predicated region
    $region33: #{_lambda_.37} parent=5 // pred_check
      %p655 = pneg %p654
    $region34: #{_lambda_.37} parent=5 // pred_check_branch
      %657 = sbr.rel (%p655) target = $region36
    $region35: #{_lambda_.37} parent=5 // pred_region
      %s658 = ssub.s32 %s8, 2
      // Predicated region
      $region37: #{_lambda_.37} parent=35 // pred_check
        %p659 = pneg %p114
      $region38: #{_lambda_.37} parent=35 // pred_check_branch
        %661 = sbr.rel (%p659) target = $region40
      $region39: #{_lambda_.37} parent=35 // pred_region
        %s662 = smul.u32 2, %s23
        %p663 = scmp.lt.s32.totalorder %s21, 1
        %s664 = scalar_select %p663, %s21, 1
        %p665 = scmp.lt.s32.totalorder %s22, 0
        %s666 = scalar_select %p665, %s22, 0
        %p667 = scmp.lt.s32.totalorder %s662, 1
        %s668 = scalar_select %p667, %s662, 1
        %s669 = smul.addr %s666, 2
        %s670 = sadd.s32 %s668, %s669
        %s671 = smul.addr %s664, 2
        %s672 = sadd.s32 %s670, %s671
        %s673 = smul.addr %s672, 4
        %s674 = scalar_lea.vmem %s2, %s673
      $region40: #{_lambda_.37} parent=35 // pred_fallthru
        _
    $region36: #{_lambda_.37} parent=5 // pred_fallthru
      _
  $region6: #{_lambda_.37} parent=0 // loop_footer
    %s12 = sadd.s32 1, %s8
  $region7: #{_lambda_.37} parent=0 // loop_footer_branch
    %7 = sbr.rel target = $region3
  $region8: #{_lambda_.37} parent=0 // loop_exit
    _

</llo_original>
